<compile_context>
chip_gen: v7x
topology: tpu7x:2x2x1
jax: 0.10.0
libtpu: 0.0.40
codegen_flags: <defaults>
</compile_context>

<pallas_src>
import jax
import jax.numpy as jnp
from jax.experimental import pallas as pl
from jax.experimental.pallas import tpu as pltpu


def multi_modal_fusion_kernel(rgb_ref, nrm_ref, w1_ref, w2_ref, wsa_ref,
                              wr_ref, br_ref, lnw_ref, lnb_ref, o_ref,
                              saout_ref):
    f32 = jnp.float32
    B, Ch, L = rgb_ref.shape
    C = 2 * Ch
    K = wsa_ref.shape[1]
    P = (K - 1) // 2
    dt = rgb_ref.dtype

    # -------- Channel attention: per-modality pooling, MLP widened across batch --------
    # pooled columns = [mean_b0 .. mean_{B-1} | max_b0 .. max_{B-1}], rows = fused channel.
    mean_cols, max_cols = [], []
    for b in range(B):                      # B is tiny and static -> unrolled
        xr = rgb_ref[b]                     # (Ch, L), input dtype
        xn = nrm_ref[b]
        mean_cols.append(jnp.concatenate(
            [jnp.sum(xr, axis=-1, keepdims=True, dtype=f32),
             jnp.sum(xn, axis=-1, keepdims=True, dtype=f32)], axis=0) * (1.0 / L))
        max_cols.append(jnp.concatenate(
            [jnp.max(xr, axis=-1, keepdims=True),
             jnp.max(xn, axis=-1, keepdims=True)], axis=0).astype(f32))
    pooled = jnp.concatenate(mean_cols + max_cols, axis=1)                     # (C, 2B)

    h = jnp.maximum(jnp.dot(w1_ref[...], pooled, preferred_element_type=f32), 0.0)  # (H, 2B)
    o2 = jnp.dot(w2_ref[...], h, preferred_element_type=f32)                        # (C, 2B)
    ca = jax.nn.sigmoid(o2[:, 0:B] + o2[:, B:2 * B])                                # (C, B)

    # Hoisted small constants used inside the batch loop.
    wsa = wsa_ref[...].astype(f32)                                             # (2, K)
    lane = jax.lax.broadcasted_iota(jnp.int32, (2, L), 1)                      # conv edge masks

    # -------- Per batch: CA scale, spatial attention, write sa_out in (C, B*L) layout --------
    for b in range(B):
        xr = rgb_ref[b]                                                        # (Ch, L)
        xn = nrm_ref[b]
        ca_b = ca[:, b:b + 1]                                                  # (C, 1)
        car = xr * ca_b[0:Ch].astype(dt)                                       # (Ch, L)
        can = xn * ca_b[Ch:C].astype(dt)                                       # (Ch, L)

        # Channel mean/max across BOTH modality slabs (fused channel axis), no concat.
        avg_c = (jnp.sum(car, axis=0, keepdims=True, dtype=f32)
                 + jnp.sum(can, axis=0, keepdims=True, dtype=f32)) * (1.0 / C)  # (1, L)
        max_c = jnp.maximum(jnp.max(car, axis=0, keepdims=True),
                            jnp.max(can, axis=0, keepdims=True)).astype(f32)    # (1, L)
        ams = jnp.concatenate([avg_c, max_c], axis=0)                            # (2, L)

        # k=7 'same' conv along L: XLU rolls + edge masks, no misaligned slice copies.
        # out[:, l] += wsa[:, k] * ams[:, l + (k - P)], zero-padded at the edges.
        conv = jnp.zeros((2, L), dtype=f32)
        for k in range(K):
            s = k - P
            if s == 0:
                term = ams
            else:
                rolled = pltpu.roll(ams, shift=(-s) % L, axis=1)  # rolled[:, l] = ams[:, (l+s)%L]
                valid = jnp.logical_and(lane + s >= 0, lane + s < L)
                term = jnp.where(valid, rolled, 0.0)
            conv = conv + term * wsa[:, k:k + 1]
        sa = jax.nn.sigmoid(jnp.sum(conv, axis=0, keepdims=True))               # (1, L)

        # sa_out goes straight into the widened (C, B*L) matmul operand:
        # rows 0:Ch <- rgb channels, rows Ch:C <- normal channels, lanes b*L:(b+1)*L <- batch b.
        saout_ref[0:Ch, b * L:(b + 1) * L] = car * sa.astype(dt)
        saout_ref[Ch:C, b * L:(b + 1) * L] = can * sa.astype(dt)

    # -------- conv_reduce: ONE lane-dense MXU matmul over the whole batch --------
    red = (jnp.dot(wr_ref[...], saout_ref[...], preferred_element_type=f32)
           + br_ref[...].astype(f32))                                           # (Cout, B*L) f32

    # -------- LayerNorm over (Cout, L): single-pass stats (f32), per batch --------
    inv_n = 1.0 / (red.shape[0] * L)
    for b in range(B):
        rb = red[:, b * L:(b + 1) * L]                                          # (Cout, L)
        s1 = jnp.sum(rb, keepdims=True)                                         # (1, 1)
        s2 = jnp.sum(rb * rb, keepdims=True)                                    # (1, 1)
        mu = s1 * inv_n
        var = s2 * inv_n - mu * mu
        inv = jax.lax.rsqrt(var + 1e-5)
        y = (rb - mu) * inv * lnw_ref[...].astype(f32) + lnb_ref[...].astype(f32)
        o_ref[b] = y.astype(o_ref.dtype)


def multi_modal_fusion(rgb, normal, w1, w2, w_sa, w_r, b_r, ln_w, ln_b):
    """rgb/normal: (B, C/2, L); w1: (H, C); w2: (C, H); w_sa: (2, K);
    w_r: (Cout, C); b_r: (Cout,); ln_w/ln_b: (Cout, L).  Returns (B, Cout, L)."""
    B, Ch, L = rgb.shape
    C = 2 * Ch
    H = w1.shape[0]
    Cout = w_r.shape[0]
    K = w_sa.shape[1]

    return pl.pallas_call(
        multi_modal_fusion_kernel,
        out_shape=jax.ShapeDtypeStruct((B, Cout, L), rgb.dtype),
        grid_spec=pltpu.PrefetchScalarGridSpec(
            num_scalar_prefetch=0,
            grid=(1,),                                  # whole batch in one step: no per-step overhead
            in_specs=[
                pl.BlockSpec((B, Ch, L), lambda i: (0, 0, 0)),   # rgb
                pl.BlockSpec((B, Ch, L), lambda i: (0, 0, 0)),   # normal
                pl.BlockSpec((H, C), lambda i: (0, 0)),          # fc1 weight (bias-free per module)
                pl.BlockSpec((C, H), lambda i: (0, 0)),          # fc2 weight (bias-free per module)
                pl.BlockSpec((2, K), lambda i: (0, 0)),          # spatial conv weight (bias-free)
                pl.BlockSpec((Cout, C), lambda i: (0, 0)),       # conv_reduce weight
                pl.BlockSpec((Cout, 1), lambda i: (0, 0)),       # conv_reduce bias
                pl.BlockSpec((Cout, L), lambda i: (0, 0)),       # LayerNorm gamma
                pl.BlockSpec((Cout, L), lambda i: (0, 0)),       # LayerNorm beta
            ],
            out_specs=pl.BlockSpec((B, Cout, L), lambda i: (0, 0, 0)),
            scratch_shapes=[pltpu.VMEM((C, B * L), rgb.dtype)],  # widened sa_out matmul operand
        ),
        compiler_params=pltpu.CompilerParams(
            dimension_semantics=("arbitrary",),
            vmem_limit_bytes=32 * 1024 * 1024,
        ),
    )(rgb, normal, w1, w2, w_sa, w_r, b_r.reshape(Cout, 1), ln_w, ln_b)


def multi_modal_fusion_ref(rgb, normal, w1, w2, w_sa, w_r, b_r, ln_w, ln_b):
    """Pure-JAX reference matching the PyTorch forward."""
    fused = jnp.concatenate([rgb, normal], axis=1)                 # (B, C, L)
    B, C, L = fused.shape

    # Channel attention
    avg = jnp.mean(fused, axis=-1, keepdims=True)
    mx = jnp.max(fused, axis=-1, keepdims=True)

    def mlp(p):
        h = jnp.maximum(jnp.einsum("hc,bcl->bhl", w1, p), 0.0)
        return jnp.einsum("ch,bhl->bcl", w2, h)

    ca = jax.nn.sigmoid(mlp(avg) + mlp(mx))                        # (B, C, 1)
    ca_out = fused * ca

    # Spatial attention
    avg_c = jnp.mean(ca_out, axis=1, keepdims=True)
    max_c = jnp.max(ca_out, axis=1, keepdims=True)
    ams = jnp.concatenate([avg_c, max_c], axis=1)                  # (B, 2, L)
    K = w_sa.shape[1]
    P = (K - 1) // 2
    padded = jnp.pad(ams, ((0, 0), (0, 0), (P, P)))
    conv = jnp.zeros((B, L), dtype=fused.dtype)
    for k in range(K):
        conv = conv + jnp.einsum("c,bcl->bl", w_sa[:, k], padded[:, :, k:k + L])
    sa = jax.nn.sigmoid(conv)[:, None, :]                          # (B, 1, L)
    sa_out = ca_out * sa

    # conv_reduce + LayerNorm over (Cout, L)
    red = jnp.einsum("oc,bcl->bol", w_r, sa_out) + b_r[None, :, None]
    mu = jnp.mean(red, axis=(1, 2), keepdims=True)
    var = jnp.mean((red - mu) ** 2, axis=(1, 2), keepdims=True)
    y = (red - mu) / jnp.sqrt(var + 1e-5)
    return y * ln_w[None] + ln_b[None]


if __name__ == "__main__":
    # Shapes consistent with the module: in_channels=32 (rgb 16 + normal 16),
    # reduction=4 -> H=8, out_channels=16, kernel_size=7, L=768 (fixed by
    # LayerNorm((out_channels, 768))).  All lane/sublane aligned.
    B = 2
    in_channels = 32
    out_channels = 16
    reduction = 4
    kernel_size = 7
    L = 768
    Ch = in_channels // 2
    H = in_channels // reduction

    key = jax.random.PRNGKey(0)
    ks = jax.random.split(key, 9)
    rgb = jax.random.normal(ks[0], (B, Ch, L), dtype=jnp.float32)
    normal = jax.random.normal(ks[1], (B, Ch, L), dtype=jnp.float32)
    w1 = jax.random.normal(ks[2], (H, in_channels), jnp.float32) / jnp.sqrt(in_channels)
    w2 = jax.random.normal(ks[3], (in_channels, H), jnp.float32) / jnp.sqrt(H)
    w_sa = jax.random.normal(ks[4], (2, kernel_size), jnp.float32) / jnp.sqrt(2.0 * kernel_size)
    w_r = jax.random.normal(ks[5], (out_channels, in_channels), jnp.float32) / jnp.sqrt(in_channels)
    b_r = 0.1 * jax.random.normal(ks[6], (out_channels,), jnp.float32)
    ln_w = 1.0 + 0.1 * jax.random.normal(ks[7], (out_channels, L), jnp.float32)
    ln_b = 0.1 * jax.random.normal(ks[8], (out_channels, L), jnp.float32)

    out = multi_modal_fusion(rgb, normal, w1, w2, w_sa, w_r, b_r, ln_w, ln_b)
    out = jax.block_until_ready(out)

    ref = multi_modal_fusion_ref(rgb, normal, w1, w2, w_sa, w_r, b_r, ln_w, ln_b)
    assert out.shape == (B, out_channels, L)
    # Tolerance covers MXU-vs-XLA matmul precision differences and the one-pass LN stats.
    assert jnp.allclose(out, ref, atol=1e-2, rtol=1e-2), "mismatch vs reference"

    print("KERNEL_OK")
</pallas_src>

<mosaic_0001>
module attributes {stable_mosaic.version = 11 : i64} {
  func.func @multi_modal_fusion_kernel(%arg0: i32, %arg1: memref<2x16x768xf32, #tpu.memory_space<vmem>>, %arg2: memref<2x16x768xf32, #tpu.memory_space<vmem>>, %arg3: memref<8x32xf32, #tpu.memory_space<vmem>>, %arg4: memref<32x8xf32, #tpu.memory_space<vmem>>, %arg5: memref<2x7xf32, #tpu.memory_space<vmem>>, %arg6: memref<16x32xf32, #tpu.memory_space<vmem>>, %arg7: memref<16x1xf32, #tpu.memory_space<vmem>>, %arg8: memref<16x768xf32, #tpu.memory_space<vmem>>, %arg9: memref<16x768xf32, #tpu.memory_space<vmem>>, %arg10: memref<2x16x768xf32, #tpu.memory_space<vmem>>, %arg11: memref<32x1536xf32, #tpu.memory_space<vmem>>) attributes {dimension_semantics = [#tpu.dimension_semantics<arbitrary>], iteration_bounds = array<i64: 1>, scalar_prefetch = 0 : i64, scratch_operands = 1 : i64, tpu.core_type = #tpu.core_type<tc>, window_params = [{pipeline_mode = #tpu.pipeline_mode<synchronous>, transform_indices = @transform_0, window_bounds = array<i64: 2, 16, 768>}, {pipeline_mode = #tpu.pipeline_mode<synchronous>, transform_indices = @transform_1, window_bounds = array<i64: 2, 16, 768>}, {pipeline_mode = #tpu.pipeline_mode<synchronous>, transform_indices = @transform_2, window_bounds = array<i64: 8, 32>}, {pipeline_mode = #tpu.pipeline_mode<synchronous>, transform_indices = @transform_3, window_bounds = array<i64: 32, 8>}, {pipeline_mode = #tpu.pipeline_mode<synchronous>, transform_indices = @transform_4, window_bounds = array<i64: 2, 7>}, {pipeline_mode = #tpu.pipeline_mode<synchronous>, transform_indices = @transform_5, window_bounds = array<i64: 16, 32>}, {pipeline_mode = #tpu.pipeline_mode<synchronous>, transform_indices = @transform_6, window_bounds = array<i64: 16, 1>}, {pipeline_mode = #tpu.pipeline_mode<synchronous>, transform_indices = @transform_7, window_bounds = array<i64: 16, 768>}, {pipeline_mode = #tpu.pipeline_mode<synchronous>, transform_indices = @transform_8, window_bounds = array<i64: 16, 768>}, {pipeline_mode = #tpu.pipeline_mode<synchronous>, transform_indices = @transform_9, window_bounds = array<i64: 2, 16, 768>}]} {
    %c0 = arith.constant 0 : index
    %c0_0 = arith.constant 0 : index
    %c0_1 = arith.constant 0 : index
    %0 = vector.load %arg1[%c0, %c0_0, %c0_1] : memref<2x16x768xf32, #tpu.memory_space<vmem>>, vector<1x16x768xf32>
    %1 = vector.shape_cast %0 : vector<1x16x768xf32> to vector<16x768xf32>
    %c0_2 = arith.constant 0 : index
    %c0_3 = arith.constant 0 : index
    %c0_4 = arith.constant 0 : index
    %2 = vector.load %arg2[%c0_2, %c0_3, %c0_4] : memref<2x16x768xf32, #tpu.memory_space<vmem>>, vector<1x16x768xf32>
    %3 = vector.shape_cast %2 : vector<1x16x768xf32> to vector<16x768xf32>
    %cst = arith.constant dense<0.000000e+00> : vector<16xf32>
    %4 = vector.multi_reduction <add>, %1, %cst [1] : vector<16x768xf32> to vector<16xf32>
    %5 = vector.shape_cast %4 : vector<16xf32> to vector<16x1xf32>
    %cst_5 = arith.constant dense<0.000000e+00> : vector<16xf32>
    %6 = vector.multi_reduction <add>, %3, %cst_5 [1] : vector<16x768xf32> to vector<16xf32>
    %7 = vector.shape_cast %6 : vector<16xf32> to vector<16x1xf32>
    %8 = tpu.concatenate %5, %7 in 0 : vector<16x1xf32>, vector<16x1xf32> -> vector<32x1xf32>
    %cst_6 = arith.constant 0.00130208337 : f32
    %9 = vector.broadcast %cst_6 : f32 to vector<32x1xf32>
    %10 = arith.mulf %8, %9 : vector<32x1xf32>
    %cst_7 = arith.constant dense<0xFF800000> : vector<16xf32>
    %11 = vector.multi_reduction <maximumf>, %1, %cst_7 [1] : vector<16x768xf32> to vector<16xf32>
    %12 = vector.shape_cast %11 : vector<16xf32> to vector<16x1xf32>
    %cst_8 = arith.constant dense<0xFF800000> : vector<16xf32>
    %13 = vector.multi_reduction <maximumf>, %3, %cst_8 [1] : vector<16x768xf32> to vector<16xf32>
    %14 = vector.shape_cast %13 : vector<16xf32> to vector<16x1xf32>
    %15 = tpu.concatenate %12, %14 in 0 : vector<16x1xf32>, vector<16x1xf32> -> vector<32x1xf32>
    %c1 = arith.constant 1 : index
    %c0_9 = arith.constant 0 : index
    %c0_10 = arith.constant 0 : index
    %16 = vector.load %arg1[%c1, %c0_9, %c0_10] : memref<2x16x768xf32, #tpu.memory_space<vmem>>, vector<1x16x768xf32>
    %17 = vector.shape_cast %16 : vector<1x16x768xf32> to vector<16x768xf32>
    %c1_11 = arith.constant 1 : index
    %c0_12 = arith.constant 0 : index
    %c0_13 = arith.constant 0 : index
    %18 = vector.load %arg2[%c1_11, %c0_12, %c0_13] : memref<2x16x768xf32, #tpu.memory_space<vmem>>, vector<1x16x768xf32>
    %19 = vector.shape_cast %18 : vector<1x16x768xf32> to vector<16x768xf32>
    %cst_14 = arith.constant dense<0.000000e+00> : vector<16xf32>
    %20 = vector.multi_reduction <add>, %17, %cst_14 [1] : vector<16x768xf32> to vector<16xf32>
    %21 = vector.shape_cast %20 : vector<16xf32> to vector<16x1xf32>
    %cst_15 = arith.constant dense<0.000000e+00> : vector<16xf32>
    %22 = vector.multi_reduction <add>, %19, %cst_15 [1] : vector<16x768xf32> to vector<16xf32>
    %23 = vector.shape_cast %22 : vector<16xf32> to vector<16x1xf32>
    %24 = tpu.concatenate %21, %23 in 0 : vector<16x1xf32>, vector<16x1xf32> -> vector<32x1xf32>
    %cst_16 = arith.constant 0.00130208337 : f32
    %25 = vector.broadcast %cst_16 : f32 to vector<32x1xf32>
    %26 = arith.mulf %24, %25 : vector<32x1xf32>
    %cst_17 = arith.constant dense<0xFF800000> : vector<16xf32>
    %27 = vector.multi_reduction <maximumf>, %17, %cst_17 [1] : vector<16x768xf32> to vector<16xf32>
    %28 = vector.shape_cast %27 : vector<16xf32> to vector<16x1xf32>
    %cst_18 = arith.constant dense<0xFF800000> : vector<16xf32>
    %29 = vector.multi_reduction <maximumf>, %19, %cst_18 [1] : vector<16x768xf32> to vector<16xf32>
    %30 = vector.shape_cast %29 : vector<16xf32> to vector<16x1xf32>
    %31 = tpu.concatenate %28, %30 in 0 : vector<16x1xf32>, vector<16x1xf32> -> vector<32x1xf32>
    %32 = tpu.concatenate %10, %26, %15, %31 in 1 : vector<32x1xf32>, vector<32x1xf32>, vector<32x1xf32>, vector<32x1xf32> -> vector<32x4xf32>
    %c0_19 = arith.constant 0 : index
    %c0_20 = arith.constant 0 : index
    %33 = vector.load %arg3[%c0_19, %c0_20] : memref<8x32xf32, #tpu.memory_space<vmem>>, vector<8x32xf32>
    %cst_21 = arith.constant dense<0.000000e+00> : vector<8x4xf32>
    %34 = tpu.matmul %33, %32, %cst_21 {dimension_numbers = #tpu.dot_dimension_numbers<[1], [0], [0], [1], [0, 0, 1, 1], [], []>} : vector<8x32xf32>, vector<32x4xf32>, vector<8x4xf32> -> vector<8x4xf32>
    %cst_22 = arith.constant 0.000000e+00 : f32
    %35 = vector.broadcast %cst_22 : f32 to vector<8x4xf32>
    %36 = arith.maximumf %34, %35 : vector<8x4xf32>
    %c0_23 = arith.constant 0 : index
    %c0_24 = arith.constant 0 : index
    %37 = vector.load %arg4[%c0_23, %c0_24] : memref<32x8xf32, #tpu.memory_space<vmem>>, vector<32x8xf32>
    %cst_25 = arith.constant dense<0.000000e+00> : vector<32x4xf32>
    %38 = tpu.matmul %37, %36, %cst_25 {dimension_numbers = #tpu.dot_dimension_numbers<[1], [0], [0], [1], [0, 0, 1, 1], [], []>} : vector<32x8xf32>, vector<8x4xf32>, vector<32x4xf32> -> vector<32x4xf32>
    %39 = vector.extract_strided_slice %38 {offsets = [0, 0], sizes = [32, 2], strides = [1, 1]} : vector<32x4xf32> to vector<32x2xf32>
    %40 = vector.extract_strided_slice %38 {offsets = [0, 2], sizes = [32, 2], strides = [1, 1]} : vector<32x4xf32> to vector<32x2xf32>
    %41 = arith.addf %39, %40 : vector<32x2xf32>
    %42 = arith.negf %41 : vector<32x2xf32>
    %43 = math.exp %42 : vector<32x2xf32>
    %cst_26 = arith.constant 1.000000e+00 : f32
    %44 = vector.broadcast %cst_26 : f32 to vector<32x2xf32>
    %45 = arith.addf %44, %43 : vector<32x2xf32>
    %46 = arith.divf %44, %45 : vector<32x2xf32>
    %c0_27 = arith.constant 0 : index
    %c0_28 = arith.constant 0 : index
    %47 = vector.load %arg5[%c0_27, %c0_28] : memref<2x7xf32, #tpu.memory_space<vmem>>, vector<2x7xf32>
    %48 = tpu.iota {dimensions = array<i32: 1>} : vector<2x768xi32>
    %c0_29 = arith.constant 0 : index
    %c0_30 = arith.constant 0 : index
    %c0_31 = arith.constant 0 : index
    %49 = vector.load %arg1[%c0_29, %c0_30, %c0_31] : memref<2x16x768xf32, #tpu.memory_space<vmem>>, vector<1x16x768xf32>
    %50 = vector.shape_cast %49 : vector<1x16x768xf32> to vector<16x768xf32>
    %c0_32 = arith.constant 0 : index
    %c0_33 = arith.constant 0 : index
    %c0_34 = arith.constant 0 : index
    %51 = vector.load %arg2[%c0_32, %c0_33, %c0_34] : memref<2x16x768xf32, #tpu.memory_space<vmem>>, vector<1x16x768xf32>
    %52 = vector.shape_cast %51 : vector<1x16x768xf32> to vector<16x768xf32>
    %53 = vector.extract_strided_slice %46 {offsets = [0, 0], sizes = [32, 1], strides = [1, 1]} : vector<32x2xf32> to vector<32x1xf32>
    %54 = vector.extract_strided_slice %53 {offsets = [0, 0], sizes = [16, 1], strides = [1, 1]} : vector<32x1xf32> to vector<16x1xf32>
    %55 = vector.broadcast %54 : vector<16x1xf32> to vector<16x768xf32>
    %56 = arith.mulf %50, %55 : vector<16x768xf32>
    %57 = vector.extract_strided_slice %53 {offsets = [16, 0], sizes = [16, 1], strides = [1, 1]} : vector<32x1xf32> to vector<16x1xf32>
    %58 = vector.broadcast %57 : vector<16x1xf32> to vector<16x768xf32>
    %59 = arith.mulf %52, %58 : vector<16x768xf32>
    %cst_35 = arith.constant dense<0.000000e+00> : vector<768xf32>
    %60 = vector.multi_reduction <add>, %56, %cst_35 [0] : vector<16x768xf32> to vector<768xf32>
    %61 = vector.shape_cast %60 : vector<768xf32> to vector<1x768xf32>
    %cst_36 = arith.constant dense<0.000000e+00> : vector<768xf32>
    %62 = vector.multi_reduction <add>, %59, %cst_36 [0] : vector<16x768xf32> to vector<768xf32>
    %63 = vector.shape_cast %62 : vector<768xf32> to vector<1x768xf32>
    %64 = arith.addf %61, %63 : vector<1x768xf32>
    %cst_37 = arith.constant 3.125000e-02 : f32
    %65 = vector.broadcast %cst_37 : f32 to vector<1x768xf32>
    %66 = arith.mulf %64, %65 : vector<1x768xf32>
    %cst_38 = arith.constant dense<0xFF800000> : vector<768xf32>
    %67 = vector.multi_reduction <maximumf>, %56, %cst_38 [0] : vector<16x768xf32> to vector<768xf32>
    %68 = vector.shape_cast %67 : vector<768xf32> to vector<1x768xf32>
    %cst_39 = arith.constant dense<0xFF800000> : vector<768xf32>
    %69 = vector.multi_reduction <maximumf>, %59, %cst_39 [0] : vector<16x768xf32> to vector<768xf32>
    %70 = vector.shape_cast %69 : vector<768xf32> to vector<1x768xf32>
    %71 = arith.maximumf %68, %70 : vector<1x768xf32>
    %72 = tpu.concatenate %66, %71 in 0 : vector<1x768xf32>, vector<1x768xf32> -> vector<2x768xf32>
    %cst_40 = arith.constant 0.000000e+00 : f32
    %73 = vector.broadcast %cst_40 : f32 to vector<2x768xf32>
    %c3_i32 = arith.constant 3 : i32
    %74 = tpu.dynamic_rotate %72 by %c3_i32 dim 1 : vector<2x768xf32>, i32 -> vector<2x768xf32>
    %c-3_i32 = arith.constant -3 : i32
    %75 = vector.broadcast %c-3_i32 : i32 to vector<2x768xi32>
    %76 = arith.addi %48, %75 : vector<2x768xi32>
    %c0_i32 = arith.constant 0 : i32
    %77 = vector.broadcast %c0_i32 : i32 to vector<2x768xi32>
    %78 = arith.cmpi sge, %76, %77 : vector<2x768xi32>
    %c-3_i32_41 = arith.constant -3 : i32
    %79 = vector.broadcast %c-3_i32_41 : i32 to vector<2x768xi32>
    %80 = arith.addi %48, %79 : vector<2x768xi32>
    %c768_i32 = arith.constant 768 : i32
    %81 = vector.broadcast %c768_i32 : i32 to vector<2x768xi32>
    %82 = arith.cmpi slt, %80, %81 : vector<2x768xi32>
    %83 = arith.andi %78, %82 : vector<2x768xi1>
    %cst_42 = arith.constant 0.000000e+00 : f32
    %84 = vector.broadcast %cst_42 : f32 to vector<2x768xf32>
    %85 = arith.select %83, %74, %84 : vector<2x768xi1>, vector<2x768xf32>
    %86 = vector.extract_strided_slice %47 {offsets = [0, 0], sizes = [2, 1], strides = [1, 1]} : vector<2x7xf32> to vector<2x1xf32>
    %87 = vector.broadcast %86 : vector<2x1xf32> to vector<2x768xf32>
    %88 = arith.mulf %85, %87 : vector<2x768xf32>
    %89 = arith.addf %73, %88 : vector<2x768xf32>
    %c2_i32 = arith.constant 2 : i32
    %90 = tpu.dynamic_rotate %72 by %c2_i32 dim 1 : vector<2x768xf32>, i32 -> vector<2x768xf32>
    %c-2_i32 = arith.constant -2 : i32
    %91 = vector.broadcast %c-2_i32 : i32 to vector<2x768xi32>
    %92 = arith.addi %48, %91 : vector<2x768xi32>
    %c0_i32_43 = arith.constant 0 : i32
    %93 = vector.broadcast %c0_i32_43 : i32 to vector<2x768xi32>
    %94 = arith.cmpi sge, %92, %93 : vector<2x768xi32>
    %c-2_i32_44 = arith.constant -2 : i32
    %95 = vector.broadcast %c-2_i32_44 : i32 to vector<2x768xi32>
    %96 = arith.addi %48, %95 : vector<2x768xi32>
    %c768_i32_45 = arith.constant 768 : i32
    %97 = vector.broadcast %c768_i32_45 : i32 to vector<2x768xi32>
    %98 = arith.cmpi slt, %96, %97 : vector<2x768xi32>
    %99 = arith.andi %94, %98 : vector<2x768xi1>
    %cst_46 = arith.constant 0.000000e+00 : f32
    %100 = vector.broadcast %cst_46 : f32 to vector<2x768xf32>
    %101 = arith.select %99, %90, %100 : vector<2x768xi1>, vector<2x768xf32>
    %102 = vector.extract_strided_slice %47 {offsets = [0, 1], sizes = [2, 1], strides = [1, 1]} : vector<2x7xf32> to vector<2x1xf32>
    %103 = vector.broadcast %102 : vector<2x1xf32> to vector<2x768xf32>
    %104 = arith.mulf %101, %103 : vector<2x768xf32>
    %105 = arith.addf %89, %104 : vector<2x768xf32>
    %c1_i32 = arith.constant 1 : i32
    %106 = tpu.dynamic_rotate %72 by %c1_i32 dim 1 : vector<2x768xf32>, i32 -> vector<2x768xf32>
    %c-1_i32 = arith.constant -1 : i32
    %107 = vector.broadcast %c-1_i32 : i32 to vector<2x768xi32>
    %108 = arith.addi %48, %107 : vector<2x768xi32>
    %c0_i32_47 = arith.constant 0 : i32
    %109 = vector.broadcast %c0_i32_47 : i32 to vector<2x768xi32>
    %110 = arith.cmpi sge, %108, %109 : vector<2x768xi32>
    %c-1_i32_48 = arith.constant -1 : i32
    %111 = vector.broadcast %c-1_i32_48 : i32 to vector<2x768xi32>
    %112 = arith.addi %48, %111 : vector<2x768xi32>
    %c768_i32_49 = arith.constant 768 : i32
    %113 = vector.broadcast %c768_i32_49 : i32 to vector<2x768xi32>
    %114 = arith.cmpi slt, %112, %113 : vector<2x768xi32>
    %115 = arith.andi %110, %114 : vector<2x768xi1>
    %cst_50 = arith.constant 0.000000e+00 : f32
    %116 = vector.broadcast %cst_50 : f32 to vector<2x768xf32>
    %117 = arith.select %115, %106, %116 : vector<2x768xi1>, vector<2x768xf32>
    %118 = vector.extract_strided_slice %47 {offsets = [0, 2], sizes = [2, 1], strides = [1, 1]} : vector<2x7xf32> to vector<2x1xf32>
    %119 = vector.broadcast %118 : vector<2x1xf32> to vector<2x768xf32>
    %120 = arith.mulf %117, %119 : vector<2x768xf32>
    %121 = arith.addf %105, %120 : vector<2x768xf32>
    %122 = vector.extract_strided_slice %47 {offsets = [0, 3], sizes = [2, 1], strides = [1, 1]} : vector<2x7xf32> to vector<2x1xf32>
    %123 = vector.broadcast %122 : vector<2x1xf32> to vector<2x768xf32>
    %124 = arith.mulf %72, %123 : vector<2x768xf32>
    %125 = arith.addf %121, %124 : vector<2x768xf32>
    %c767_i32 = arith.constant 767 : i32
    %126 = tpu.dynamic_rotate %72 by %c767_i32 dim 1 : vector<2x768xf32>, i32 -> vector<2x768xf32>
    %c1_i32_51 = arith.constant 1 : i32
    %127 = vector.broadcast %c1_i32_51 : i32 to vector<2x768xi32>
    %128 = arith.addi %48, %127 : vector<2x768xi32>
    %c0_i32_52 = arith.constant 0 : i32
    %129 = vector.broadcast %c0_i32_52 : i32 to vector<2x768xi32>
    %130 = arith.cmpi sge, %128, %129 : vector<2x768xi32>
    %c1_i32_53 = arith.constant 1 : i32
    %131 = vector.broadcast %c1_i32_53 : i32 to vector<2x768xi32>
    %132 = arith.addi %48, %131 : vector<2x768xi32>
    %c768_i32_54 = arith.constant 768 : i32
    %133 = vector.broadcast %c768_i32_54 : i32 to vector<2x768xi32>
    %134 = arith.cmpi slt, %132, %133 : vector<2x768xi32>
    %135 = arith.andi %130, %134 : vector<2x768xi1>
    %cst_55 = arith.constant 0.000000e+00 : f32
    %136 = vector.broadcast %cst_55 : f32 to vector<2x768xf32>
    %137 = arith.select %135, %126, %136 : vector<2x768xi1>, vector<2x768xf32>
    %138 = vector.extract_strided_slice %47 {offsets = [0, 4], sizes = [2, 1], strides = [1, 1]} : vector<2x7xf32> to vector<2x1xf32>
    %139 = vector.broadcast %138 : vector<2x1xf32> to vector<2x768xf32>
    %140 = arith.mulf %137, %139 : vector<2x768xf32>
    %141 = arith.addf %125, %140 : vector<2x768xf32>
    %c766_i32 = arith.constant 766 : i32
    %142 = tpu.dynamic_rotate %72 by %c766_i32 dim 1 : vector<2x768xf32>, i32 -> vector<2x768xf32>
    %c2_i32_56 = arith.constant 2 : i32
    %143 = vector.broadcast %c2_i32_56 : i32 to vector<2x768xi32>
    %144 = arith.addi %48, %143 : vector<2x768xi32>
    %c0_i32_57 = arith.constant 0 : i32
    %145 = vector.broadcast %c0_i32_57 : i32 to vector<2x768xi32>
    %146 = arith.cmpi sge, %144, %145 : vector<2x768xi32>
    %c2_i32_58 = arith.constant 2 : i32
    %147 = vector.broadcast %c2_i32_58 : i32 to vector<2x768xi32>
    %148 = arith.addi %48, %147 : vector<2x768xi32>
    %c768_i32_59 = arith.constant 768 : i32
    %149 = vector.broadcast %c768_i32_59 : i32 to vector<2x768xi32>
    %150 = arith.cmpi slt, %148, %149 : vector<2x768xi32>
    %151 = arith.andi %146, %150 : vector<2x768xi1>
    %cst_60 = arith.constant 0.000000e+00 : f32
    %152 = vector.broadcast %cst_60 : f32 to vector<2x768xf32>
    %153 = arith.select %151, %142, %152 : vector<2x768xi1>, vector<2x768xf32>
    %154 = vector.extract_strided_slice %47 {offsets = [0, 5], sizes = [2, 1], strides = [1, 1]} : vector<2x7xf32> to vector<2x1xf32>
    %155 = vector.broadcast %154 : vector<2x1xf32> to vector<2x768xf32>
    %156 = arith.mulf %153, %155 : vector<2x768xf32>
    %157 = arith.addf %141, %156 : vector<2x768xf32>
    %c765_i32 = arith.constant 765 : i32
    %158 = tpu.dynamic_rotate %72 by %c765_i32 dim 1 : vector<2x768xf32>, i32 -> vector<2x768xf32>
    %c3_i32_61 = arith.constant 3 : i32
    %159 = vector.broadcast %c3_i32_61 : i32 to vector<2x768xi32>
    %160 = arith.addi %48, %159 : vector<2x768xi32>
    %c0_i32_62 = arith.constant 0 : i32
    %161 = vector.broadcast %c0_i32_62 : i32 to vector<2x768xi32>
    %162 = arith.cmpi sge, %160, %161 : vector<2x768xi32>
    %c3_i32_63 = arith.constant 3 : i32
    %163 = vector.broadcast %c3_i32_63 : i32 to vector<2x768xi32>
    %164 = arith.addi %48, %163 : vector<2x768xi32>
    %c768_i32_64 = arith.constant 768 : i32
    %165 = vector.broadcast %c768_i32_64 : i32 to vector<2x768xi32>
    %166 = arith.cmpi slt, %164, %165 : vector<2x768xi32>
    %167 = arith.andi %162, %166 : vector<2x768xi1>
    %cst_65 = arith.constant 0.000000e+00 : f32
    %168 = vector.broadcast %cst_65 : f32 to vector<2x768xf32>
    %169 = arith.select %167, %158, %168 : vector<2x768xi1>, vector<2x768xf32>
    %170 = vector.extract_strided_slice %47 {offsets = [0, 6], sizes = [2, 1], strides = [1, 1]} : vector<2x7xf32> to vector<2x1xf32>
    %171 = vector.broadcast %170 : vector<2x1xf32> to vector<2x768xf32>
    %172 = arith.mulf %169, %171 : vector<2x768xf32>
    %173 = arith.addf %157, %172 : vector<2x768xf32>
    %cst_66 = arith.constant dense<0.000000e+00> : vector<768xf32>
    %174 = vector.multi_reduction <add>, %173, %cst_66 [0] : vector<2x768xf32> to vector<768xf32>
    %175 = vector.shape_cast %174 : vector<768xf32> to vector<1x768xf32>
    %176 = arith.negf %175 : vector<1x768xf32>
    %177 = math.exp %176 : vector<1x768xf32>
    %cst_67 = arith.constant 1.000000e+00 : f32
    %178 = vector.broadcast %cst_67 : f32 to vector<1x768xf32>
    %179 = arith.addf %178, %177 : vector<1x768xf32>
    %180 = arith.divf %178, %179 : vector<1x768xf32>
    %181 = vector.broadcast %180 : vector<1x768xf32> to vector<16x768xf32>
    %182 = arith.mulf %56, %181 : vector<16x768xf32>
    %c0_68 = arith.constant 0 : index
    %c0_69 = arith.constant 0 : index
    %183 = vector.load %arg11[%c0_68, %c0_69] : memref<32x1536xf32, #tpu.memory_space<vmem>>, vector<16x768xf32>
    tpu.vector_store %arg11[%c0_68, %c0_69], %182 {strides = array<i32>} : memref<32x1536xf32, #tpu.memory_space<vmem>>, vector<16x768xf32>,
    %184 = vector.broadcast %180 : vector<1x768xf32> to vector<16x768xf32>
    %185 = arith.mulf %59, %184 : vector<16x768xf32>
    %c16 = arith.constant 16 : index
    %c0_70 = arith.constant 0 : index
    %186 = vector.load %arg11[%c16, %c0_70] : memref<32x1536xf32, #tpu.memory_space<vmem>>, vector<16x768xf32>
    tpu.vector_store %arg11[%c16, %c0_70], %185 {strides = array<i32>} : memref<32x1536xf32, #tpu.memory_space<vmem>>, vector<16x768xf32>,
    %c1_71 = arith.constant 1 : index
    %c0_72 = arith.constant 0 : index
    %c0_73 = arith.constant 0 : index
    %187 = vector.load %arg1[%c1_71, %c0_72, %c0_73] : memref<2x16x768xf32, #tpu.memory_space<vmem>>, vector<1x16x768xf32>
    %188 = vector.shape_cast %187 : vector<1x16x768xf32> to vector<16x768xf32>
    %c1_74 = arith.constant 1 : index
    %c0_75 = arith.constant 0 : index
    %c0_76 = arith.constant 0 : index
    %189 = vector.load %arg2[%c1_74, %c0_75, %c0_76] : memref<2x16x768xf32, #tpu.memory_space<vmem>>, vector<1x16x768xf32>
    %190 = vector.shape_cast %189 : vector<1x16x768xf32> to vector<16x768xf32>
    %191 = vector.extract_strided_slice %46 {offsets = [0, 1], sizes = [32, 1], strides = [1, 1]} : vector<32x2xf32> to vector<32x1xf32>
    %192 = vector.extract_strided_slice %191 {offsets = [0, 0], sizes = [16, 1], strides = [1, 1]} : vector<32x1xf32> to vector<16x1xf32>
    %193 = vector.broadcast %192 : vector<16x1xf32> to vector<16x768xf32>
    %194 = arith.mulf %188, %193 : vector<16x768xf32>
    %195 = vector.extract_strided_slice %191 {offsets = [16, 0], sizes = [16, 1], strides = [1, 1]} : vector<32x1xf32> to vector<16x1xf32>
    %196 = vector.broadcast %195 : vector<16x1xf32> to vector<16x768xf32>
    %197 = arith.mulf %190, %196 : vector<16x768xf32>
    %cst_77 = arith.constant dense<0.000000e+00> : vector<768xf32>
    %198 = vector.multi_reduction <add>, %194, %cst_77 [0] : vector<16x768xf32> to vector<768xf32>
    %199 = vector.shape_cast %198 : vector<768xf32> to vector<1x768xf32>
    %cst_78 = arith.constant dense<0.000000e+00> : vector<768xf32>
    %200 = vector.multi_reduction <add>, %197, %cst_78 [0] : vector<16x768xf32> to vector<768xf32>
    %201 = vector.shape_cast %200 : vector<768xf32> to vector<1x768xf32>
    %202 = arith.addf %199, %201 : vector<1x768xf32>
    %cst_79 = arith.constant 3.125000e-02 : f32
    %203 = vector.broadcast %cst_79 : f32 to vector<1x768xf32>
    %204 = arith.mulf %202, %203 : vector<1x768xf32>
    %cst_80 = arith.constant dense<0xFF800000> : vector<768xf32>
    %205 = vector.multi_reduction <maximumf>, %194, %cst_80 [0] : vector<16x768xf32> to vector<768xf32>
    %206 = vector.shape_cast %205 : vector<768xf32> to vector<1x768xf32>
    %cst_81 = arith.constant dense<0xFF800000> : vector<768xf32>
    %207 = vector.multi_reduction <maximumf>, %197, %cst_81 [0] : vector<16x768xf32> to vector<768xf32>
    %208 = vector.shape_cast %207 : vector<768xf32> to vector<1x768xf32>
    %209 = arith.maximumf %206, %208 : vector<1x768xf32>
    %210 = tpu.concatenate %204, %209 in 0 : vector<1x768xf32>, vector<1x768xf32> -> vector<2x768xf32>
    %cst_82 = arith.constant 0.000000e+00 : f32
    %211 = vector.broadcast %cst_82 : f32 to vector<2x768xf32>
    %c3_i32_83 = arith.constant 3 : i32
    %212 = tpu.dynamic_rotate %210 by %c3_i32_83 dim 1 : vector<2x768xf32>, i32 -> vector<2x768xf32>
    %c-3_i32_84 = arith.constant -3 : i32
    %213 = vector.broadcast %c-3_i32_84 : i32 to vector<2x768xi32>
    %214 = arith.addi %48, %213 : vector<2x768xi32>
    %c0_i32_85 = arith.constant 0 : i32
    %215 = vector.broadcast %c0_i32_85 : i32 to vector<2x768xi32>
    %216 = arith.cmpi sge, %214, %215 : vector<2x768xi32>
    %c-3_i32_86 = arith.constant -3 : i32
    %217 = vector.broadcast %c-3_i32_86 : i32 to vector<2x768xi32>
    %218 = arith.addi %48, %217 : vector<2x768xi32>
    %c768_i32_87 = arith.constant 768 : i32
    %219 = vector.broadcast %c768_i32_87 : i32 to vector<2x768xi32>
    %220 = arith.cmpi slt, %218, %219 : vector<2x768xi32>
    %221 = arith.andi %216, %220 : vector<2x768xi1>
    %cst_88 = arith.constant 0.000000e+00 : f32
    %222 = vector.broadcast %cst_88 : f32 to vector<2x768xf32>
    %223 = arith.select %221, %212, %222 : vector<2x768xi1>, vector<2x768xf32>
    %224 = vector.extract_strided_slice %47 {offsets = [0, 0], sizes = [2, 1], strides = [1, 1]} : vector<2x7xf32> to vector<2x1xf32>
    %225 = vector.broadcast %224 : vector<2x1xf32> to vector<2x768xf32>
    %226 = arith.mulf %223, %225 : vector<2x768xf32>
    %227 = arith.addf %211, %226 : vector<2x768xf32>
    %c2_i32_89 = arith.constant 2 : i32
    %228 = tpu.dynamic_rotate %210 by %c2_i32_89 dim 1 : vector<2x768xf32>, i32 -> vector<2x768xf32>
    %c-2_i32_90 = arith.constant -2 : i32
    %229 = vector.broadcast %c-2_i32_90 : i32 to vector<2x768xi32>
    %230 = arith.addi %48, %229 : vector<2x768xi32>
    %c0_i32_91 = arith.constant 0 : i32
    %231 = vector.broadcast %c0_i32_91 : i32 to vector<2x768xi32>
    %232 = arith.cmpi sge, %230, %231 : vector<2x768xi32>
    %c-2_i32_92 = arith.constant -2 : i32
    %233 = vector.broadcast %c-2_i32_92 : i32 to vector<2x768xi32>
    %234 = arith.addi %48, %233 : vector<2x768xi32>
    %c768_i32_93 = arith.constant 768 : i32
    %235 = vector.broadcast %c768_i32_93 : i32 to vector<2x768xi32>
    %236 = arith.cmpi slt, %234, %235 : vector<2x768xi32>
    %237 = arith.andi %232, %236 : vector<2x768xi1>
    %cst_94 = arith.constant 0.000000e+00 : f32
    %238 = vector.broadcast %cst_94 : f32 to vector<2x768xf32>
    %239 = arith.select %237, %228, %238 : vector<2x768xi1>, vector<2x768xf32>
    %240 = vector.extract_strided_slice %47 {offsets = [0, 1], sizes = [2, 1], strides = [1, 1]} : vector<2x7xf32> to vector<2x1xf32>
    %241 = vector.broadcast %240 : vector<2x1xf32> to vector<2x768xf32>
    %242 = arith.mulf %239, %241 : vector<2x768xf32>
    %243 = arith.addf %227, %242 : vector<2x768xf32>
    %c1_i32_95 = arith.constant 1 : i32
    %244 = tpu.dynamic_rotate %210 by %c1_i32_95 dim 1 : vector<2x768xf32>, i32 -> vector<2x768xf32>
    %c-1_i32_96 = arith.constant -1 : i32
    %245 = vector.broadcast %c-1_i32_96 : i32 to vector<2x768xi32>
    %246 = arith.addi %48, %245 : vector<2x768xi32>
    %c0_i32_97 = arith.constant 0 : i32
    %247 = vector.broadcast %c0_i32_97 : i32 to vector<2x768xi32>
    %248 = arith.cmpi sge, %246, %247 : vector<2x768xi32>
    %c-1_i32_98 = arith.constant -1 : i32
    %249 = vector.broadcast %c-1_i32_98 : i32 to vector<2x768xi32>
    %250 = arith.addi %48, %249 : vector<2x768xi32>
    %c768_i32_99 = arith.constant 768 : i32
    %251 = vector.broadcast %c768_i32_99 : i32 to vector<2x768xi32>
    %252 = arith.cmpi slt, %250, %251 : vector<2x768xi32>
    %253 = arith.andi %248, %252 : vector<2x768xi1>
    %cst_100 = arith.constant 0.000000e+00 : f32
    %254 = vector.broadcast %cst_100 : f32 to vector<2x768xf32>
    %255 = arith.select %253, %244, %254 : vector<2x768xi1>, vector<2x768xf32>
    %256 = vector.extract_strided_slice %47 {offsets = [0, 2], sizes = [2, 1], strides = [1, 1]} : vector<2x7xf32> to vector<2x1xf32>
    %257 = vector.broadcast %256 : vector<2x1xf32> to vector<2x768xf32>
    %258 = arith.mulf %255, %257 : vector<2x768xf32>
    %259 = arith.addf %243, %258 : vector<2x768xf32>
    %260 = vector.extract_strided_slice %47 {offsets = [0, 3], sizes = [2, 1], strides = [1, 1]} : vector<2x7xf32> to vector<2x1xf32>
    %261 = vector.broadcast %260 : vector<2x1xf32> to vector<2x768xf32>
    %262 = arith.mulf %210, %261 : vector<2x768xf32>
    %263 = arith.addf %259, %262 : vector<2x768xf32>
    %c767_i32_101 = arith.constant 767 : i32
    %264 = tpu.dynamic_rotate %210 by %c767_i32_101 dim 1 : vector<2x768xf32>, i32 -> vector<2x768xf32>
    %c1_i32_102 = arith.constant 1 : i32
    %265 = vector.broadcast %c1_i32_102 : i32 to vector<2x768xi32>
    %266 = arith.addi %48, %265 : vector<2x768xi32>
    %c0_i32_103 = arith.constant 0 : i32
    %267 = vector.broadcast %c0_i32_103 : i32 to vector<2x768xi32>
    %268 = arith.cmpi sge, %266, %267 : vector<2x768xi32>
    %c1_i32_104 = arith.constant 1 : i32
    %269 = vector.broadcast %c1_i32_104 : i32 to vector<2x768xi32>
    %270 = arith.addi %48, %269 : vector<2x768xi32>
    %c768_i32_105 = arith.constant 768 : i32
    %271 = vector.broadcast %c768_i32_105 : i32 to vector<2x768xi32>
    %272 = arith.cmpi slt, %270, %271 : vector<2x768xi32>
    %273 = arith.andi %268, %272 : vector<2x768xi1>
    %cst_106 = arith.constant 0.000000e+00 : f32
    %274 = vector.broadcast %cst_106 : f32 to vector<2x768xf32>
    %275 = arith.select %273, %264, %274 : vector<2x768xi1>, vector<2x768xf32>
    %276 = vector.extract_strided_slice %47 {offsets = [0, 4], sizes = [2, 1], strides = [1, 1]} : vector<2x7xf32> to vector<2x1xf32>
    %277 = vector.broadcast %276 : vector<2x1xf32> to vector<2x768xf32>
    %278 = arith.mulf %275, %277 : vector<2x768xf32>
    %279 = arith.addf %263, %278 : vector<2x768xf32>
    %c766_i32_107 = arith.constant 766 : i32
    %280 = tpu.dynamic_rotate %210 by %c766_i32_107 dim 1 : vector<2x768xf32>, i32 -> vector<2x768xf32>
    %c2_i32_108 = arith.constant 2 : i32
    %281 = vector.broadcast %c2_i32_108 : i32 to vector<2x768xi32>
    %282 = arith.addi %48, %281 : vector<2x768xi32>
    %c0_i32_109 = arith.constant 0 : i32
    %283 = vector.broadcast %c0_i32_109 : i32 to vector<2x768xi32>
    %284 = arith.cmpi sge, %282, %283 : vector<2x768xi32>
    %c2_i32_110 = arith.constant 2 : i32
    %285 = vector.broadcast %c2_i32_110 : i32 to vector<2x768xi32>
    %286 = arith.addi %48, %285 : vector<2x768xi32>
    %c768_i32_111 = arith.constant 768 : i32
    %287 = vector.broadcast %c768_i32_111 : i32 to vector<2x768xi32>
    %288 = arith.cmpi slt, %286, %287 : vector<2x768xi32>
    %289 = arith.andi %284, %288 : vector<2x768xi1>
    %cst_112 = arith.constant 0.000000e+00 : f32
    %290 = vector.broadcast %cst_112 : f32 to vector<2x768xf32>
    %291 = arith.select %289, %280, %290 : vector<2x768xi1>, vector<2x768xf32>
    %292 = vector.extract_strided_slice %47 {offsets = [0, 5], sizes = [2, 1], strides = [1, 1]} : vector<2x7xf32> to vector<2x1xf32>
    %293 = vector.broadcast %292 : vector<2x1xf32> to vector<2x768xf32>
    %294 = arith.mulf %291, %293 : vector<2x768xf32>
    %295 = arith.addf %279, %294 : vector<2x768xf32>
    %c765_i32_113 = arith.constant 765 : i32
    %296 = tpu.dynamic_rotate %210 by %c765_i32_113 dim 1 : vector<2x768xf32>, i32 -> vector<2x768xf32>
    %c3_i32_114 = arith.constant 3 : i32
    %297 = vector.broadcast %c3_i32_114 : i32 to vector<2x768xi32>
    %298 = arith.addi %48, %297 : vector<2x768xi32>
    %c0_i32_115 = arith.constant 0 : i32
    %299 = vector.broadcast %c0_i32_115 : i32 to vector<2x768xi32>
    %300 = arith.cmpi sge, %298, %299 : vector<2x768xi32>
    %c3_i32_116 = arith.constant 3 : i32
    %301 = vector.broadcast %c3_i32_116 : i32 to vector<2x768xi32>
    %302 = arith.addi %48, %301 : vector<2x768xi32>
    %c768_i32_117 = arith.constant 768 : i32
    %303 = vector.broadcast %c768_i32_117 : i32 to vector<2x768xi32>
    %304 = arith.cmpi slt, %302, %303 : vector<2x768xi32>
    %305 = arith.andi %300, %304 : vector<2x768xi1>
    %cst_118 = arith.constant 0.000000e+00 : f32
    %306 = vector.broadcast %cst_118 : f32 to vector<2x768xf32>
    %307 = arith.select %305, %296, %306 : vector<2x768xi1>, vector<2x768xf32>
    %308 = vector.extract_strided_slice %47 {offsets = [0, 6], sizes = [2, 1], strides = [1, 1]} : vector<2x7xf32> to vector<2x1xf32>
    %309 = vector.broadcast %308 : vector<2x1xf32> to vector<2x768xf32>
    %310 = arith.mulf %307, %309 : vector<2x768xf32>
    %311 = arith.addf %295, %310 : vector<2x768xf32>
    %cst_119 = arith.constant dense<0.000000e+00> : vector<768xf32>
    %312 = vector.multi_reduction <add>, %311, %cst_119 [0] : vector<2x768xf32> to vector<768xf32>
    %313 = vector.shape_cast %312 : vector<768xf32> to vector<1x768xf32>
    %314 = arith.negf %313 : vector<1x768xf32>
    %315 = math.exp %314 : vector<1x768xf32>
    %cst_120 = arith.constant 1.000000e+00 : f32
    %316 = vector.broadcast %cst_120 : f32 to vector<1x768xf32>
    %317 = arith.addf %316, %315 : vector<1x768xf32>
    %318 = arith.divf %316, %317 : vector<1x768xf32>
    %319 = vector.broadcast %318 : vector<1x768xf32> to vector<16x768xf32>
    %320 = arith.mulf %194, %319 : vector<16x768xf32>
    %c0_121 = arith.constant 0 : index
    %c768 = arith.constant 768 : index
    %321 = vector.load %arg11[%c0_121, %c768] : memref<32x1536xf32, #tpu.memory_space<vmem>>, vector<16x768xf32>
    tpu.vector_store %arg11[%c0_121, %c768], %320 {strides = array<i32>} : memref<32x1536xf32, #tpu.memory_space<vmem>>, vector<16x768xf32>,
    %322 = vector.broadcast %318 : vector<1x768xf32> to vector<16x768xf32>
    %323 = arith.mulf %197, %322 : vector<16x768xf32>
    %c16_122 = arith.constant 16 : index
    %c768_123 = arith.constant 768 : index
    %324 = vector.load %arg11[%c16_122, %c768_123] : memref<32x1536xf32, #tpu.memory_space<vmem>>, vector<16x768xf32>
    tpu.vector_store %arg11[%c16_122, %c768_123], %323 {strides = array<i32>} : memref<32x1536xf32, #tpu.memory_space<vmem>>, vector<16x768xf32>,
    %c0_124 = arith.constant 0 : index
    %c0_125 = arith.constant 0 : index
    %325 = vector.load %arg6[%c0_124, %c0_125] : memref<16x32xf32, #tpu.memory_space<vmem>>, vector<16x32xf32>
    %c0_126 = arith.constant 0 : index
    %c0_127 = arith.constant 0 : index
    %326 = vector.load %arg11[%c0_126, %c0_127] : memref<32x1536xf32, #tpu.memory_space<vmem>>, vector<32x1536xf32>
    %cst_128 = arith.constant dense<0.000000e+00> : vector<16x1536xf32>
    %327 = tpu.matmul %325, %326, %cst_128 {dimension_numbers = #tpu.dot_dimension_numbers<[1], [0], [0], [1], [0, 0, 1, 1], [], []>} : vector<16x32xf32>, vector<32x1536xf32>, vector<16x1536xf32> -> vector<16x1536xf32>
    %c0_129 = arith.constant 0 : index
    %c0_130 = arith.constant 0 : index
    %328 = vector.load %arg7[%c0_129, %c0_130] : memref<16x1xf32, #tpu.memory_space<vmem>>, vector<16x1xf32>
    %329 = vector.broadcast %328 : vector<16x1xf32> to vector<16x1536xf32>
    %330 = arith.addf %327, %329 : vector<16x1536xf32>
    %331 = vector.extract_strided_slice %330 {offsets = [0, 0], sizes = [16, 768], strides = [1, 1]} : vector<16x1536xf32> to vector<16x768xf32>
    %332 = vector.shape_cast %331 : vector<16x768xf32> to vector<1x16x768xf32>
    %cst_131 = arith.constant dense<0.000000e+00> : vector<1xf32>
    %333 = vector.multi_reduction <add>, %332, %cst_131 [1, 2] : vector<1x16x768xf32> to vector<1xf32>
    %334 = vector.shape_cast %333 : vector<1xf32> to vector<1x1x1xf32>
    %335 = vector.extract %334[0, 0, 0] : f32 from vector<1x1x1xf32>
    %336 = vector.broadcast %335 : f32 to vector<1x1xf32>
    %337 = arith.mulf %331, %331 : vector<16x768xf32>
    %338 = vector.shape_cast %337 : vector<16x768xf32> to vector<1x16x768xf32>
    %cst_132 = arith.constant dense<0.000000e+00> : vector<1xf32>
    %339 = vector.multi_reduction <add>, %338, %cst_132 [1, 2] : vector<1x16x768xf32> to vector<1xf32>
    %340 = vector.shape_cast %339 : vector<1xf32> to vector<1x1x1xf32>
    %341 = vector.extract %340[0, 0, 0] : f32 from vector<1x1x1xf32>
    %342 = vector.broadcast %341 : f32 to vector<1x1xf32>
    %cst_133 = arith.constant 8.13802107E-5 : f32
    %343 = vector.broadcast %cst_133 : f32 to vector<1x1xf32>
    %344 = arith.mulf %336, %343 : vector<1x1xf32>
    %cst_134 = arith.constant 8.13802107E-5 : f32
    %345 = vector.broadcast %cst_134 : f32 to vector<1x1xf32>
    %346 = arith.mulf %342, %345 : vector<1x1xf32>
    %347 = arith.mulf %344, %344 : vector<1x1xf32>
    %348 = arith.subf %346, %347 : vector<1x1xf32>
    %cst_135 = arith.constant 9.99999974E-6 : f32
    %349 = vector.broadcast %cst_135 : f32 to vector<1x1xf32>
    %350 = arith.addf %348, %349 : vector<1x1xf32>
    %351 = math.rsqrt %350 : vector<1x1xf32>
    %352 = vector.broadcast %344 : vector<1x1xf32> to vector<16x768xf32>
    %353 = arith.subf %331, %352 : vector<16x768xf32>
    %354 = vector.broadcast %351 : vector<1x1xf32> to vector<16x768xf32>
    %355 = arith.mulf %353, %354 : vector<16x768xf32>
    %c0_136 = arith.constant 0 : index
    %c0_137 = arith.constant 0 : index
    %356 = vector.load %arg8[%c0_136, %c0_137] : memref<16x768xf32, #tpu.memory_space<vmem>>, vector<16x768xf32>
    %357 = arith.mulf %355, %356 : vector<16x768xf32>
    %c0_138 = arith.constant 0 : index
    %c0_139 = arith.constant 0 : index
    %358 = vector.load %arg9[%c0_138, %c0_139] : memref<16x768xf32, #tpu.memory_space<vmem>>, vector<16x768xf32>
    %359 = arith.addf %357, %358 : vector<16x768xf32>
    %c0_140 = arith.constant 0 : index
    %c0_141 = arith.constant 0 : index
    %c0_142 = arith.constant 0 : index
    %360 = vector.load %arg10[%c0_140, %c0_141, %c0_142] : memref<2x16x768xf32, #tpu.memory_space<vmem>>, vector<1x16x768xf32>
    %361 = vector.shape_cast %360 : vector<1x16x768xf32> to vector<16x768xf32>
    %362 = vector.shape_cast %359 : vector<16x768xf32> to vector<1x16x768xf32>
    tpu.vector_store %arg10[%c0_140, %c0_141, %c0_142], %362 {strides = array<i32>} : memref<2x16x768xf32, #tpu.memory_space<vmem>>, vector<1x16x768xf32>,
    %363 = vector.extract_strided_slice %330 {offsets = [0, 768], sizes = [16, 768], strides = [1, 1]} : vector<16x1536xf32> to vector<16x768xf32>
    %364 = vector.shape_cast %363 : vector<16x768xf32> to vector<1x16x768xf32>
    %cst_143 = arith.constant dense<0.000000e+00> : vector<1xf32>
    %365 = vector.multi_reduction <add>, %364, %cst_143 [1, 2] : vector<1x16x768xf32> to vector<1xf32>
    %366 = vector.shape_cast %365 : vector<1xf32> to vector<1x1x1xf32>
    %367 = vector.extract %366[0, 0, 0] : f32 from vector<1x1x1xf32>
    %368 = vector.broadcast %367 : f32 to vector<1x1xf32>
    %369 = arith.mulf %363, %363 : vector<16x768xf32>
    %370 = vector.shape_cast %369 : vector<16x768xf32> to vector<1x16x768xf32>
    %cst_144 = arith.constant dense<0.000000e+00> : vector<1xf32>
    %371 = vector.multi_reduction <add>, %370, %cst_144 [1, 2] : vector<1x16x768xf32> to vector<1xf32>
    %372 = vector.shape_cast %371 : vector<1xf32> to vector<1x1x1xf32>
    %373 = vector.extract %372[0, 0, 0] : f32 from vector<1x1x1xf32>
    %374 = vector.broadcast %373 : f32 to vector<1x1xf32>
    %cst_145 = arith.constant 8.13802107E-5 : f32
    %375 = vector.broadcast %cst_145 : f32 to vector<1x1xf32>
    %376 = arith.mulf %368, %375 : vector<1x1xf32>
    %cst_146 = arith.constant 8.13802107E-5 : f32
    %377 = vector.broadcast %cst_146 : f32 to vector<1x1xf32>
    %378 = arith.mulf %374, %377 : vector<1x1xf32>
    %379 = arith.mulf %376, %376 : vector<1x1xf32>
    %380 = arith.subf %378, %379 : vector<1x1xf32>
    %cst_147 = arith.constant 9.99999974E-6 : f32
    %381 = vector.broadcast %cst_147 : f32 to vector<1x1xf32>
    %382 = arith.addf %380, %381 : vector<1x1xf32>
    %383 = math.rsqrt %382 : vector<1x1xf32>
    %384 = vector.broadcast %376 : vector<1x1xf32> to vector<16x768xf32>
    %385 = arith.subf %363, %384 : vector<16x768xf32>
    %386 = vector.broadcast %383 : vector<1x1xf32> to vector<16x768xf32>
    %387 = arith.mulf %385, %386 : vector<16x768xf32>
    %c0_148 = arith.constant 0 : index
    %c0_149 = arith.constant 0 : index
    %388 = vector.load %arg8[%c0_148, %c0_149] : memref<16x768xf32, #tpu.memory_space<vmem>>, vector<16x768xf32>
    %389 = arith.mulf %387, %388 : vector<16x768xf32>
    %c0_150 = arith.constant 0 : index
    %c0_151 = arith.constant 0 : index
    %390 = vector.load %arg9[%c0_150, %c0_151] : memref<16x768xf32, #tpu.memory_space<vmem>>, vector<16x768xf32>
    %391 = arith.addf %389, %390 : vector<16x768xf32>
    %c1_152 = arith.constant 1 : index
    %c0_153 = arith.constant 0 : index
    %c0_154 = arith.constant 0 : index
    %392 = vector.load %arg10[%c1_152, %c0_153, %c0_154] : memref<2x16x768xf32, #tpu.memory_space<vmem>>, vector<1x16x768xf32>
    %393 = vector.shape_cast %392 : vector<1x16x768xf32> to vector<16x768xf32>
    %394 = vector.shape_cast %391 : vector<16x768xf32> to vector<1x16x768xf32>
    tpu.vector_store %arg10[%c1_152, %c0_153, %c0_154], %394 {strides = array<i32>} : memref<2x16x768xf32, #tpu.memory_space<vmem>>, vector<1x16x768xf32>,
    return
  }
  func.func @transform_0(%arg0: i32) -> (i32, i32, i32) {
    %c0_i32 = arith.constant 0 : i32
    %c0_i32_0 = arith.constant 0 : i32
    %c0_i32_1 = arith.constant 0 : i32
    %c0_i32_2 = arith.constant 0 : i32
    return %c0_i32, %c0_i32_0, %c0_i32_1 : i32, i32, i32
  }
  func.func @transform_1(%arg0: i32) -> (i32, i32, i32) {
    %c0_i32 = arith.constant 0 : i32
    %c0_i32_0 = arith.constant 0 : i32
    %c0_i32_1 = arith.constant 0 : i32
    %c0_i32_2 = arith.constant 0 : i32
    return %c0_i32, %c0_i32_0, %c0_i32_1 : i32, i32, i32
  }
  func.func @transform_2(%arg0: i32) -> (i32, i32) {
    %c0_i32 = arith.constant 0 : i32
    %c0_i32_0 = arith.constant 0 : i32
    %c0_i32_1 = arith.constant 0 : i32
    return %c0_i32, %c0_i32_0 : i32, i32
  }
  func.func @transform_3(%arg0: i32) -> (i32, i32) {
    %c0_i32 = arith.constant 0 : i32
    %c0_i32_0 = arith.constant 0 : i32
    %c0_i32_1 = arith.constant 0 : i32
    return %c0_i32, %c0_i32_0 : i32, i32
  }
  func.func @transform_4(%arg0: i32) -> (i32, i32) {
    %c0_i32 = arith.constant 0 : i32
    %c0_i32_0 = arith.constant 0 : i32
    %c0_i32_1 = arith.constant 0 : i32
    return %c0_i32, %c0_i32_0 : i32, i32
  }
  func.func @transform_5(%arg0: i32) -> (i32, i32) {
    %c0_i32 = arith.constant 0 : i32
    %c0_i32_0 = arith.constant 0 : i32
    %c0_i32_1 = arith.constant 0 : i32
    return %c0_i32, %c0_i32_0 : i32, i32
  }
  func.func @transform_6(%arg0: i32) -> (i32, i32) {
    %c0_i32 = arith.constant 0 : i32
    %c0_i32_0 = arith.constant 0 : i32
    %c0_i32_1 = arith.constant 0 : i32
    return %c0_i32, %c0_i32_0 : i32, i32
  }
  func.func @transform_7(%arg0: i32) -> (i32, i32) {
    %c0_i32 = arith.constant 0 : i32
    %c0_i32_0 = arith.constant 0 : i32
    %c0_i32_1 = arith.constant 0 : i32
    return %c0_i32, %c0_i32_0 : i32, i32
  }
  func.func @transform_8(%arg0: i32) -> (i32, i32) {
    %c0_i32 = arith.constant 0 : i32
    %c0_i32_0 = arith.constant 0 : i32
    %c0_i32_1 = arith.constant 0 : i32
    return %c0_i32, %c0_i32_0 : i32, i32
  }
  func.func @transform_9(%arg0: i32) -> (i32, i32, i32) {
    %c0_i32 = arith.constant 0 : i32
    %c0_i32_0 = arith.constant 0 : i32
    %c0_i32_1 = arith.constant 0 : i32
    %c0_i32_2 = arith.constant 0 : i32
    return %c0_i32, %c0_i32_0, %c0_i32_1 : i32, i32, i32
  }
}

</mosaic_0001>

<llo_original>
// kernel: tpu_custom_call.1
$region0: #{tpu_custom_call.1}
  #allocation0 [shape = 'u32[]', space=smem, size = 0x4, offset = 0x4, fixed_abs, tag = 'smem constant byte address 0x4 - core index']
  #allocation1 [shape = 'u32[144,128]{1,0:T(1,128)}', space=vmem, size = 0x12000, scoped, tag = 'internal scratch']
  #allocation2 [shape = 'f32[32,1536]{1,0:T(8,128)}', space=vmem, size = 0x30000, scoped, tag = 'scratch operand']
  %s0 = inlined_call_operand.hbm [shape: f32[2,16,768], index: 0, kind: input, shape index: {}]
  %s1 = inlined_call_operand.hbm [shape: f32[2,16,768], index: 1, kind: input, shape index: {}]
  %s2 = inlined_call_operand.vmem [shape: f32[8,32], index: 2, kind: input, shape index: {}]
  %s3 = inlined_call_operand.vmem [shape: f32[32,8], index: 3, kind: input, shape index: {}]
  %s4 = inlined_call_operand.vmem [shape: f32[2,7], index: 4, kind: input, shape index: {}]
  %s5 = inlined_call_operand.vmem [shape: f32[16,32], index: 5, kind: input, shape index: {}]
  %s6 = inlined_call_operand.vmem [shape: f32[16,1], index: 6, kind: input, shape index: {}]
  %s7 = inlined_call_operand.hbm [shape: f32[16,768], index: 7, kind: input, shape index: {}]
  %s8 = inlined_call_operand.hbm [shape: f32[16,768], index: 8, kind: input, shape index: {}]
  %s9 = inlined_call_operand.hbm [shape: f32[2,16,768], index: 9, kind: output, shape index: {}]
  %s10 = sld [smem:[#allocation0]]
  $region62: #{tpu_custom_call.1} parent=0
    _
  %s12 = ssub.s32 1, %s10
  %s13 = scalar_select 0, %s12, %s10
  $region1: #{tpu_custom_call.1} parent=0
    #allocation3 [shape = 'u8[98304]{0}', space=vmem, size = 0x18000, scoped, tag = 'input window, operand 0, single buffered']
    #allocation4 [shape = 's32[1]{0}', space=sflag, size = 0x4, scoped, tag = 'scoped memory for tpu_custom_call.1']
    #allocation5 [shape = 's32[1]{0}', space=sflag, size = 0x4, scoped, tag = 'scoped memory for tpu_custom_call.1']
    #allocation6 [shape = 'u8[98304]{0}', space=vmem, size = 0x18000, scoped, tag = 'input window, operand 1, single buffered']
    #allocation7 [shape = 's32[1]{0}', space=sflag, size = 0x4, scoped, tag = 'scoped memory for tpu_custom_call.1']
    #allocation8 [shape = 'u8[49152]{0}', space=vmem, size = 0xc000, scoped, tag = 'input window, operand 7, single buffered']
    #allocation9 [shape = 'u8[49152]{0}', space=vmem, size = 0xc000, scoped, tag = 'input window, operand 8, single buffered']
    #allocation10 [shape = 's32[1]{0}', space=sflag, size = 0x4, scoped, tag = 'scoped memory for tpu_custom_call.1']
    #allocation11 [shape = 'u8[98304]{0}', space=vmem, size = 0x18000, scoped, tag = 'output window, operand 0, single buffered']
    %14 = vsyncpa [#allocation4], 0
    %15 = vsyncpa [#allocation7], 0
    %16 = vsyncpa [#allocation10], 0
    %17 = vsyncpa [#allocation5], 0
    // Predicated region
    $region2: #{tpu_custom_call.1} parent=1 // pred_check
      _
    $region3: #{tpu_custom_call.1} parent=1 // pred_check_branch
      %19 = sbr.rel (0) target = $region5
    $region4: #{tpu_custom_call.1} parent=1 // pred_region
      %s21 = ssub.s32 3072, 3072
      %22 = vsyncadd [#allocation4], %s21
      %s23 = sshll.u32 [#allocation3], 4
      %s24 = int_to_ptr.vmem [resolvable:$true] %s23
      %29 = dma.hbm_to_vmem [thread:$0]  %s0, 3072, %s24, [#allocation4], 768, 768, 48
    $region5: #{tpu_custom_call.1} parent=1 // pred_fallthru
      _
    // Predicated region
    $region6: #{tpu_custom_call.1} parent=1 // pred_check
      _
    $region7: #{tpu_custom_call.1} parent=1 // pred_check_branch
      %31 = sbr.rel (0) target = $region9
    $region8: #{tpu_custom_call.1} parent=1 // pred_region
      %s33 = ssub.s32 3072, 3072
      %34 = vsyncadd [#allocation7], %s33
      %s35 = sshll.u32 [#allocation6], 4
      %s36 = int_to_ptr.vmem [resolvable:$true] %s35
      %41 = dma.hbm_to_vmem [thread:$0]  %s1, 3072, %s36, [#allocation7], 768, 768, 48
    $region9: #{tpu_custom_call.1} parent=1 // pred_fallthru
      _
    // Predicated region
    $region10: #{tpu_custom_call.1} parent=1 // pred_check
      _
    $region11: #{tpu_custom_call.1} parent=1 // pred_check_branch
      %43 = sbr.rel (0) target = $region13
    $region12: #{tpu_custom_call.1} parent=1 // pred_region
      _
    $region13: #{tpu_custom_call.1} parent=1 // pred_fallthru
      _
    // Predicated region
    $region14: #{tpu_custom_call.1} parent=1 // pred_check
      _
    $region15: #{tpu_custom_call.1} parent=1 // pred_check_branch
      %45 = sbr.rel (0) target = $region17
    $region16: #{tpu_custom_call.1} parent=1 // pred_region
      _
    $region17: #{tpu_custom_call.1} parent=1 // pred_fallthru
      _
    // Predicated region
    $region18: #{tpu_custom_call.1} parent=1 // pred_check
      _
    $region19: #{tpu_custom_call.1} parent=1 // pred_check_branch
      %47 = sbr.rel (0) target = $region21
    $region20: #{tpu_custom_call.1} parent=1 // pred_region
      _
    $region21: #{tpu_custom_call.1} parent=1 // pred_fallthru
      _
    // Predicated region
    $region22: #{tpu_custom_call.1} parent=1 // pred_check
      _
    $region23: #{tpu_custom_call.1} parent=1 // pred_check_branch
      %49 = sbr.rel (0) target = $region25
    $region24: #{tpu_custom_call.1} parent=1 // pred_region
      _
    $region25: #{tpu_custom_call.1} parent=1 // pred_fallthru
      _
    // Predicated region
    $region26: #{tpu_custom_call.1} parent=1 // pred_check
      _
    $region27: #{tpu_custom_call.1} parent=1 // pred_check_branch
      %51 = sbr.rel (0) target = $region29
    $region28: #{tpu_custom_call.1} parent=1 // pred_region
      _
    $region29: #{tpu_custom_call.1} parent=1 // pred_fallthru
      _
    // Predicated region
    $region30: #{tpu_custom_call.1} parent=1 // pred_check
      _
    $region31: #{tpu_custom_call.1} parent=1 // pred_check_branch
      %53 = sbr.rel (0) target = $region33
    $region32: #{tpu_custom_call.1} parent=1 // pred_region
      %s55 = ssub.s32 1536, 1536
      %56 = vsyncadd [#allocation7], %s55
      %s57 = sshll.u32 [#allocation8], 4
      %s58 = int_to_ptr.vmem [resolvable:$true] %s57
      %63 = dma.hbm_to_vmem [thread:$0]  %s7, 1536, %s58, [#allocation7], 768, 768, 48
    $region33: #{tpu_custom_call.1} parent=1 // pred_fallthru
      _
    // Predicated region
    $region34: #{tpu_custom_call.1} parent=1 // pred_check
      _
    $region35: #{tpu_custom_call.1} parent=1 // pred_check_branch
      %65 = sbr.rel (0) target = $region37
    $region36: #{tpu_custom_call.1} parent=1 // pred_region
      %s67 = ssub.s32 1536, 1536
      %68 = vsyncadd [#allocation10], %s67
      %s69 = sshll.u32 [#allocation9], 4
      %s70 = int_to_ptr.vmem [resolvable:$true] %s69
      %75 = dma.hbm_to_vmem [thread:$0]  %s8, 1536, %s70, [#allocation10], 768, 768, 48
    $region37: #{tpu_custom_call.1} parent=1 // pred_fallthru
      _
    // Predicated region
    $region38: #{tpu_custom_call.1} parent=1 // pred_check
      _
    $region39: #{tpu_custom_call.1} parent=1 // pred_check_branch
      %77 = sbr.rel (0) target = $region41
    $region40: #{tpu_custom_call.1} parent=1 // pred_region
      %78 = dma.done [#allocation4], 3072
    $region41: #{tpu_custom_call.1} parent=1 // pred_fallthru
      _
    // Predicated region
    $region42: #{tpu_custom_call.1} parent=1 // pred_check
      _
    $region43: #{tpu_custom_call.1} parent=1 // pred_check_branch
      %80 = sbr.rel (0) target = $region45
    $region44: #{tpu_custom_call.1} parent=1 // pred_region
      %81 = dma.done [#allocation7], 3072
    $region45: #{tpu_custom_call.1} parent=1 // pred_fallthru
      _
    // Predicated region
    $region46: #{tpu_custom_call.1} parent=1 // pred_check
      _
    $region47: #{tpu_custom_call.1} parent=1 // pred_check_branch
      %83 = sbr.rel (0) target = $region49
    $region48: #{tpu_custom_call.1} parent=1 // pred_region
      %84 = dma.done [#allocation7], 1536
    $region49: #{tpu_custom_call.1} parent=1 // pred_fallthru
      _
    // Predicated region
    $region50: #{tpu_custom_call.1} parent=1 // pred_check
      _
    $region51: #{tpu_custom_call.1} parent=1 // pred_check_branch
      %86 = sbr.rel (0) target = $region53
    $region52: #{tpu_custom_call.1} parent=1 // pred_region
      %87 = dma.done [#allocation10], 1536
    $region53: #{tpu_custom_call.1} parent=1 // pred_fallthru
      _
    %v88 = vld [vmem:[#allocation3] sm:$0xff]
    %v89 = vld [vmem:[#allocation3 + $0x8] sm:$0xff]
    %v90 = vld [vmem:[#allocation3 + $0x10] sm:$0xff]
    %v91 = vld [vmem:[#allocation3 + $0x18] sm:$0xff]
    %v92 = vld [vmem:[#allocation3 + $0x20] sm:$0xff]
    %v93 = vld [vmem:[#allocation3 + $0x28] sm:$0xff]
    %v94 = vld [vmem:[#allocation3 + $0x30] sm:$0xff]
    %v95 = vld [vmem:[#allocation3 + $0x38] sm:$0xff]
    %v96 = vld [vmem:[#allocation3 + $0x40] sm:$0xff]
    %v97 = vld [vmem:[#allocation3 + $0x48] sm:$0xff]
    %v98 = vld [vmem:[#allocation3 + $0x50] sm:$0xff]
    %v99 = vld [vmem:[#allocation3 + $0x58] sm:$0xff]
    %v100 = vld [vmem:[#allocation6] sm:$0xff]
    %v101 = vld [vmem:[#allocation6 + $0x8] sm:$0xff]
    %v102 = vld [vmem:[#allocation6 + $0x10] sm:$0xff]
    %v103 = vld [vmem:[#allocation6 + $0x18] sm:$0xff]
    %v104 = vld [vmem:[#allocation6 + $0x20] sm:$0xff]
    %v105 = vld [vmem:[#allocation6 + $0x28] sm:$0xff]
    %v106 = vld [vmem:[#allocation6 + $0x30] sm:$0xff]
    %v107 = vld [vmem:[#allocation6 + $0x38] sm:$0xff]
    %v108 = vld [vmem:[#allocation6 + $0x40] sm:$0xff]
    %v109 = vld [vmem:[#allocation6 + $0x48] sm:$0xff]
    %v110 = vld [vmem:[#allocation6 + $0x50] sm:$0xff]
    %v111 = vld [vmem:[#allocation6 + $0x58] sm:$0xff]
    %v112 = vadd.f32 %v88, %v89
    %v113 = vadd.f32 %v112, %v90
    %v114 = vadd.f32 %v113, %v91
    %v115 = vadd.f32 %v114, %v92
    %v116 = vadd.f32 %v115, %v93
    %117 = vadd.xlane.f32.xlu0 %v116
    %v118 = vpop.xlane.xlu0 %117
    %v119 = vadd.f32 %v94, %v95
    %v120 = vadd.f32 %v119, %v96
    %v121 = vadd.f32 %v120, %v97
    %v122 = vadd.f32 %v121, %v98
    %v123 = vadd.f32 %v122, %v99
    %124 = vadd.xlane.f32.xlu0 %v123
    %v125 = vpop.xlane.xlu0 %124
    %v126 = vadd.f32 %v100, %v101
    %v127 = vadd.f32 %v126, %v102
    %v128 = vadd.f32 %v127, %v103
    %v129 = vadd.f32 %v128, %v104
    %v130 = vadd.f32 %v129, %v105
    %131 = vadd.xlane.f32.xlu0 %v130
    %v132 = vpop.xlane.xlu0 %131
    %v133 = vadd.f32 %v106, %v107
    %v134 = vadd.f32 %v133, %v108
    %v135 = vadd.f32 %v134, %v109
    %v136 = vadd.f32 %v135, %v110
    %v137 = vadd.f32 %v136, %v111
    %138 = vadd.xlane.f32.xlu0 %v137
    %v139 = vpop.xlane.xlu0 %138
    %v140 = vmul.f32 %v118, 0.0013020834
    %v141 = vmul.f32 %v125, 0.0013020834
    %v142 = vmul.f32 %v132, 0.0013020834
    %v143 = vmul.f32 %v139, 0.0013020834
    %v144 = vmax.f32 %v88, %v90
    %v145 = vmax.f32 %v89, %v91
    %v146 = vmax.f32 %v144, %v92
    %v147 = vmax.f32 %v145, %v93
    %v148 = vmax.f32 %v146, %v147
    %149 = vmax.xlane.f32.xlu0 %v148
    %v150 = vpop.xlane.xlu0 %149
    %v151 = vmax.f32 %v94, %v96
    %v152 = vmax.f32 %v95, %v97
    %v153 = vmax.f32 %v151, %v98
    %v154 = vmax.f32 %v152, %v99
    %v155 = vmax.f32 %v153, %v154
    %156 = vmax.xlane.f32.xlu0 %v155
    %v157 = vpop.xlane.xlu0 %156
    %v158 = vmax.f32 %v100, %v102
    %v159 = vmax.f32 %v101, %v103
    %v160 = vmax.f32 %v158, %v104
    %v161 = vmax.f32 %v159, %v105
    %v162 = vmax.f32 %v160, %v161
    %163 = vmax.xlane.f32.xlu0 %v162
    %v164 = vpop.xlane.xlu0 %163
    %v165 = vmax.f32 %v106, %v108
    %v166 = vmax.f32 %v107, %v109
    %v167 = vmax.f32 %v165, %v110
    %v168 = vmax.f32 %v166, %v111
    %v169 = vmax.f32 %v167, %v168
    %170 = vmax.xlane.f32.xlu0 %v169
    %v171 = vpop.xlane.xlu0 %170
    %s172 = scalar_lea.vmem [#allocation3], 96
    %v173 = vld [vmem:[%s172] sm:$0xff]
    %v174 = vld [vmem:[%s172 + $0x8] sm:$0xff]
    %v175 = vld [vmem:[%s172 + $0x10] sm:$0xff]
    %v176 = vld [vmem:[%s172 + $0x18] sm:$0xff]
    %v177 = vld [vmem:[%s172 + $0x20] sm:$0xff]
    %v178 = vld [vmem:[%s172 + $0x28] sm:$0xff]
    %v179 = vld [vmem:[%s172 + $0x30] sm:$0xff]
    %v180 = vld [vmem:[%s172 + $0x38] sm:$0xff]
    %v181 = vld [vmem:[%s172 + $0x40] sm:$0xff]
    %v182 = vld [vmem:[%s172 + $0x48] sm:$0xff]
    %v183 = vld [vmem:[%s172 + $0x50] sm:$0xff]
    %v184 = vld [vmem:[%s172 + $0x58] sm:$0xff]
    %s185 = scalar_lea.vmem [#allocation6], 96
    %v186 = vld [vmem:[%s185] sm:$0xff]
    %v187 = vld [vmem:[%s185 + $0x8] sm:$0xff]
    %v188 = vld [vmem:[%s185 + $0x10] sm:$0xff]
    %v189 = vld [vmem:[%s185 + $0x18] sm:$0xff]
    %v190 = vld [vmem:[%s185 + $0x20] sm:$0xff]
    %v191 = vld [vmem:[%s185 + $0x28] sm:$0xff]
    %v192 = vld [vmem:[%s185 + $0x30] sm:$0xff]
    %v193 = vld [vmem:[%s185 + $0x38] sm:$0xff]
    %v194 = vld [vmem:[%s185 + $0x40] sm:$0xff]
    %v195 = vld [vmem:[%s185 + $0x48] sm:$0xff]
    %v196 = vld [vmem:[%s185 + $0x50] sm:$0xff]
    %v197 = vld [vmem:[%s185 + $0x58] sm:$0xff]
    %v198 = vadd.f32 %v173, %v174
    %v199 = vadd.f32 %v198, %v175
    %v200 = vadd.f32 %v199, %v176
    %v201 = vadd.f32 %v200, %v177
    %v202 = vadd.f32 %v201, %v178
    %203 = vadd.xlane.f32.xlu0 %v202
    %v204 = vpop.xlane.xlu0 %203
    %v205 = vadd.f32 %v179, %v180
    %v206 = vadd.f32 %v205, %v181
    %v207 = vadd.f32 %v206, %v182
    %v208 = vadd.f32 %v207, %v183
    %v209 = vadd.f32 %v208, %v184
    %210 = vadd.xlane.f32.xlu0 %v209
    %v211 = vpop.xlane.xlu0 %210
    %v212 = vadd.f32 %v186, %v187
    %v213 = vadd.f32 %v212, %v188
    %v214 = vadd.f32 %v213, %v189
    %v215 = vadd.f32 %v214, %v190
    %v216 = vadd.f32 %v215, %v191
    %217 = vadd.xlane.f32.xlu0 %v216
    %v218 = vpop.xlane.xlu0 %217
    %v219 = vadd.f32 %v192, %v193
    %v220 = vadd.f32 %v219, %v194
    %v221 = vadd.f32 %v220, %v195
    %v222 = vadd.f32 %v221, %v196
    %v223 = vadd.f32 %v222, %v197
    %224 = vadd.xlane.f32.xlu0 %v223
    %v225 = vpop.xlane.xlu0 %224
    %v226 = vmul.f32 %v204, 0.0013020834
    %v227 = vmul.f32 %v211, 0.0013020834
    %v228 = vmul.f32 %v218, 0.0013020834
    %v229 = vmul.f32 %v225, 0.0013020834
    %v230 = vmax.f32 %v173, %v175
    %v231 = vmax.f32 %v174, %v176
    %v232 = vmax.f32 %v230, %v177
    %v233 = vmax.f32 %v231, %v178
    %v234 = vmax.f32 %v232, %v233
    %235 = vmax.xlane.f32.xlu0 %v234
    %v236 = vpop.xlane.xlu0 %235
    %v237 = vmax.f32 %v179, %v181
    %v238 = vmax.f32 %v180, %v182
    %v239 = vmax.f32 %v237, %v183
    %v240 = vmax.f32 %v238, %v184
    %v241 = vmax.f32 %v239, %v240
    %242 = vmax.xlane.f32.xlu0 %v241
    %v243 = vpop.xlane.xlu0 %242
    %v244 = vmax.f32 %v186, %v188
    %v245 = vmax.f32 %v187, %v189
    %v246 = vmax.f32 %v244, %v190
    %v247 = vmax.f32 %v245, %v191
    %v248 = vmax.f32 %v246, %v247
    %249 = vmax.xlane.f32.xlu0 %v248
    %v250 = vpop.xlane.xlu0 %249
    %v251 = vmax.f32 %v192, %v194
    %v252 = vmax.f32 %v193, %v195
    %v253 = vmax.f32 %v251, %v196
    %v254 = vmax.f32 %v252, %v197
    %v255 = vmax.f32 %v253, %v254
    %256 = vmax.xlane.f32.xlu0 %v255
    %v257 = vpop.xlane.xlu0 %256
    %262 = vrot.lane.b32.xlu0 %v226, 1
    %v263 = vpop.permute.xlu0 %262
    %264 = vrot.lane.b32.xlu0 %v227, 1
    %v265 = vpop.permute.xlu0 %264
    %266 = vrot.lane.b32.xlu0 %v228, 1
    %v267 = vpop.permute.xlu0 %266
    %268 = vrot.lane.b32.xlu0 %v229, 1
    %v269 = vpop.permute.xlu0 %268
    %278 = vrot.lane.b32.xlu0 %v150, 2
    %v279 = vpop.permute.xlu0 %278
    %280 = vrot.lane.b32.xlu0 %v157, 2
    %v281 = vpop.permute.xlu0 %280
    %282 = vrot.lane.b32.xlu0 %v164, 2
    %v283 = vpop.permute.xlu0 %282
    %284 = vrot.lane.b32.xlu0 %v171, 2
    %v285 = vpop.permute.xlu0 %284
    %294 = vrot.lane.b32.xlu0 %v236, 3
    %v295 = vpop.permute.xlu0 %294
    %296 = vrot.lane.b32.xlu0 %v243, 3
    %v297 = vpop.permute.xlu0 %296
    %298 = vrot.lane.b32.xlu0 %v250, 3
    %v299 = vpop.permute.xlu0 %298
    %300 = vrot.lane.b32.xlu0 %v257, 3
    %v301 = vpop.permute.xlu0 %300
    %vm306 = vcmask 7168
    %v307 = vsel %vm306, %v140, %v263
    %v308 = vsel %vm306, %v141, %v265
    %v309 = vsel %vm306, %v142, %v267
    %v310 = vsel %vm306, %v143, %v269
    %vm311 = vcmask 15360
    %v312 = vsel %vm311, %v307, %v279
    %v313 = vsel %vm311, %v308, %v281
    %v314 = vsel %vm311, %v309, %v283
    %v315 = vsel %vm311, %v310, %v285
    %vm316 = vcmask 23552
    %v317 = vsel %vm316, %v312, %v295
    %v318 = vsel %vm316, %v313, %v297
    %v319 = vsel %vm316, %v314, %v299
    %v320 = vsel %vm316, %v315, %v301
    %v321 = vld [vmem:[%s2] sm:$0xff]
    %vm322 = vcmask 261120
    %v324 = vsel %vm322, %v321, 0
    %326 = vmatprep.subr.mxu0 0.0
    %327 = vmatpush1.msra.mxu0 %v317
    %328 = vmatprep.subr.mxu0 0.0
    %329 = vmatpush1.msra.mxu0 %v318
    %330 = vmatprep.subr.mxu0 0.0
    %331 = vmatpush1.msra.mxu0 %v319
    %332 = vmatprep.subr.mxu0 0.0
    %333 = vmatpush1.msra.mxu0 %v320
    %334 = vmatprep.subr.mxu0 0.0
    %335 = vmatpush1.msra.mxu0 0.0
    %336 = vmatprep.subr.mxu0 0.0
    %337 = vmatpush1.msra.mxu0 0.0
    %338 = vmatprep.subr.mxu0 0.0
    %339 = vmatpush1.msra.mxu0 0.0
    %340 = vmatprep.subr.mxu0 0.0
    %341 = vmatpush1.msra.mxu0 0.0
    %342 = vmatprep.subr.mxu0 0.0
    %343 = vmatpush1.msra.mxu0 0.0
    %344 = vmatprep.subr.mxu0 0.0
    %345 = vmatpush1.msra.mxu0 0.0
    %346 = vmatprep.subr.mxu0 0.0
    %347 = vmatpush1.msra.mxu0 0.0
    %348 = vmatprep.subr.mxu0 0.0
    %349 = vmatpush1.msra.mxu0 0.0
    %350 = vmatprep.subr.mxu0 0.0
    %351 = vmatpush1.msra.mxu0 0.0
    %352 = vmatprep.subr.mxu0 0.0
    %353 = vmatpush1.msra.mxu0 0.0
    %354 = vmatprep.subr.mxu0 0.0
    %355 = vmatpush1.msra.mxu0 0.0
    %356 = vmatprep.subr.mxu0 0.0
    %357 = vmatpush1.msra.mxu0 0.0
    %358 = vmatprep.subr.mxu0 0.0
    %359 = vmatpush1.msra.mxu0 0.0
    %360 = vmatprep.subr.mxu0 0.0
    %361 = vmatpush1.msra.mxu0 0.0
    %362 = vmatprep.subr.mxu0 0.0
    %363 = vmatpush1.msra.mxu0 0.0
    %364 = vmatprep.subr.mxu0 0.0
    %365 = vmatpush1.msra.mxu0 0.0
    %366 = vmatprep.subr.mxu0 0.0
    %367 = vmatpush1.msra.mxu0 0.0
    %368 = vmatprep.subr.mxu0 0.0
    %369 = vmatpush1.msra.mxu0 0.0
    %370 = vmatprep.subr.mxu0 0.0
    %371 = vmatpush1.msra.mxu0 0.0
    %372 = vmatprep.subr.mxu0 0.0
    %373 = vmatpush1.msra.mxu0 0.0
    %374 = vmatprep.subr.mxu0 0.0
    %375 = vmatpush1.msra.mxu0 0.0
    %376 = vmatprep.subr.mxu0 0.0
    %377 = vmatpush1.msra.mxu0 0.0
    %378 = vmatprep.subr.mxu0 0.0
    %379 = vmatpush1.msra.mxu0 0.0
    %380 = vmatprep.subr.mxu0 0.0
    %381 = vmatpush1.msra.mxu0 0.0
    %382 = vmatprep.subr.mxu0 0.0
    %383 = vmatpush1.msra.mxu0 0.0
    %384 = vmatprep.subr.mxu0 0.0
    %385 = vmatpush1.msra.mxu0 0.0
    %386 = vmatprep.subr.mxu0 0.0
    %387 = vmatpush1.msra.mxu0 0.0
    %388 = vmatprep.subr.mxu0 0.0
    %389 = vmatpush1.msra.mxu0 0.0
    %390 = vmatprep.mubr.f32.mxu0 0.0
    %391 = vmatmul.mubr.f32.gmra.mrb[0].mxu0 %v324
    %v392 = vpop.f32.mrb[0].mxu0
    %v393 = vadd.f32 0.0, %v392
    %v394 = vpop.f32.mrb[0].mxu0
    %395 = vdwg.mxu0
    %v396 = vmax.f32 %v393, 0.0
    %v397 = vld [vmem:[%s3] sm:$0xff]
    %v398 = vld [vmem:[%s3 + $0x8] sm:$0xff]
    %v399 = vld [vmem:[%s3 + $0x10] sm:$0xff]
    %v400 = vld [vmem:[%s3 + $0x18] sm:$0xff]
    %vm401 = vcmask 64512
    %v403 = vsel %vm401, %v397, 0
    %v406 = vsel %vm401, %v398, 0
    %v409 = vsel %vm401, %v399, 0
    %v412 = vsel %vm401, %v400, 0
    %414 = vmatprep.subr.mxu0 0.0
    %415 = vmatpush1.msra.mxu0 %v396
    %416 = vmatprep.subr.mxu0 0.0
    %417 = vmatpush1.msra.mxu0 0.0
    %418 = vmatprep.subr.mxu0 0.0
    %419 = vmatpush1.msra.mxu0 0.0
    %420 = vmatprep.subr.mxu0 0.0
    %421 = vmatpush1.msra.mxu0 0.0
    %422 = vmatprep.subr.mxu0 0.0
    %423 = vmatpush1.msra.mxu0 0.0
    %424 = vmatprep.subr.mxu0 0.0
    %425 = vmatpush1.msra.mxu0 0.0
    %426 = vmatprep.subr.mxu0 0.0
    %427 = vmatpush1.msra.mxu0 0.0
    %428 = vmatprep.subr.mxu0 0.0
    %429 = vmatpush1.msra.mxu0 0.0
    %430 = vmatprep.subr.mxu0 0.0
    %431 = vmatpush1.msra.mxu0 0.0
    %432 = vmatprep.subr.mxu0 0.0
    %433 = vmatpush1.msra.mxu0 0.0
    %434 = vmatprep.subr.mxu0 0.0
    %435 = vmatpush1.msra.mxu0 0.0
    %436 = vmatprep.subr.mxu0 0.0
    %437 = vmatpush1.msra.mxu0 0.0
    %438 = vmatprep.subr.mxu0 0.0
    %439 = vmatpush1.msra.mxu0 0.0
    %440 = vmatprep.subr.mxu0 0.0
    %441 = vmatpush1.msra.mxu0 0.0
    %442 = vmatprep.subr.mxu0 0.0
    %443 = vmatpush1.msra.mxu0 0.0
    %444 = vmatprep.subr.mxu0 0.0
    %445 = vmatpush1.msra.mxu0 0.0
    %446 = vmatprep.subr.mxu0 0.0
    %447 = vmatpush1.msra.mxu0 0.0
    %448 = vmatprep.subr.mxu0 0.0
    %449 = vmatpush1.msra.mxu0 0.0
    %450 = vmatprep.subr.mxu0 0.0
    %451 = vmatpush1.msra.mxu0 0.0
    %452 = vmatprep.subr.mxu0 0.0
    %453 = vmatpush1.msra.mxu0 0.0
    %454 = vmatprep.subr.mxu0 0.0
    %455 = vmatpush1.msra.mxu0 0.0
    %456 = vmatprep.subr.mxu0 0.0
    %457 = vmatpush1.msra.mxu0 0.0
    %458 = vmatprep.subr.mxu0 0.0
    %459 = vmatpush1.msra.mxu0 0.0
    %460 = vmatprep.subr.mxu0 0.0
    %461 = vmatpush1.msra.mxu0 0.0
    %462 = vmatprep.subr.mxu0 0.0
    %463 = vmatpush1.msra.mxu0 0.0
    %464 = vmatprep.subr.mxu0 0.0
    %465 = vmatpush1.msra.mxu0 0.0
    %466 = vmatprep.subr.mxu0 0.0
    %467 = vmatpush1.msra.mxu0 0.0
    %468 = vmatprep.subr.mxu0 0.0
    %469 = vmatpush1.msra.mxu0 0.0
    %470 = vmatprep.subr.mxu0 0.0
    %471 = vmatpush1.msra.mxu0 0.0
    %472 = vmatprep.subr.mxu0 0.0
    %473 = vmatpush1.msra.mxu0 0.0
    %474 = vmatprep.subr.mxu0 0.0
    %475 = vmatpush1.msra.mxu0 0.0
    %476 = vmatprep.subr.mxu0 0.0
    %477 = vmatpush1.msra.mxu0 0.0
    %478 = vmatprep.mubr.f32.mxu0 0.0
    %479 = vmatmul.mubr.f32.gmra.mrb[0].mxu0 %v403
    %v480 = vpop.f32.mrb[0].mxu0
    %v481 = vadd.f32 0.0, %v480
    %v482 = vpop.f32.mrb[0].mxu0
    %483 = vmatprep.mubr.f32.mxu0 0.0
    %484 = vmatmul.mubr.f32.gmra.mrb[0].mxu0 %v406
    %v485 = vpop.f32.mrb[0].mxu0
    %v486 = vadd.f32 0.0, %v485
    %v487 = vpop.f32.mrb[0].mxu0
    %488 = vmatprep.mubr.f32.mxu0 0.0
    %489 = vmatmul.mubr.f32.gmra.mrb[0].mxu0 %v409
    %v490 = vpop.f32.mrb[0].mxu0
    %v491 = vadd.f32 0.0, %v490
    %v492 = vpop.f32.mrb[0].mxu0
    %493 = vmatprep.mubr.f32.mxu0 0.0
    %494 = vmatmul.mubr.f32.gmra.mrb[0].mxu0 %v412
    %v495 = vpop.f32.mrb[0].mxu0
    %v496 = vadd.f32 0.0, %v495
    %v497 = vpop.f32.mrb[0].mxu0
    %498 = vdwg.mxu0
    %503 = vrot.lane.b32.xlu0 %v481, 126
    %v504 = vpop.permute.xlu0 %503
    %505 = vrot.lane.b32.xlu0 %v486, 126
    %v506 = vpop.permute.xlu0 %505
    %507 = vrot.lane.b32.xlu0 %v491, 126
    %v508 = vpop.permute.xlu0 %507
    %509 = vrot.lane.b32.xlu0 %v496, 126
    %v510 = vpop.permute.xlu0 %509
    %v515 = vadd.f32 %v481, %v504
    %v516 = vadd.f32 %v486, %v506
    %v517 = vadd.f32 %v491, %v508
    %v518 = vadd.f32 %v496, %v510
    %v519 = vxor.u32 %v515, 2147483648
    %v520 = vxor.u32 %v516, 2147483648
    %v521 = vxor.u32 %v517, 2147483648
    %v522 = vxor.u32 %v518, 2147483648
    %v523 = vmul.f32 %v519, 1.442695
    %v524 = vpow.pop %v523
    %v525 = vmul.f32 %v520, 1.442695
    %v526 = vpow.pop %v525
    %v527 = vmul.f32 %v521, 1.442695
    %v528 = vpow.pop %v527
    %v529 = vmul.f32 %v522, 1.442695
    %v530 = vpow.pop %v529
    %v531 = vadd.f32 %v524, 1.0
    %v532 = vadd.f32 %v526, 1.0
    %v533 = vadd.f32 %v528, 1.0
    %v534 = vadd.f32 %v530, 1.0
    %v535 = vrcp.pop %v531
    %v536 = vmul.f32 1.0, %v535
    %v537 = vrcp.pop %v532
    %v538 = vmul.f32 1.0, %v537
    %v539 = vrcp.pop %v533
    %v540 = vmul.f32 1.0, %v539
    %v541 = vrcp.pop %v534
    %v542 = vmul.f32 1.0, %v541
    %v543 = vld [vmem:[%s4] sm:$0x3]
    %v544 = vlaneseq
    %v545 = vand.u32 %v544, 127
    %v546 = vadd.s32 %v545, 128
    %v547 = vadd.s32 %v545, 256
    %v548 = vadd.s32 %v545, 384
    %v549 = vadd.s32 %v545, 512
    %v550 = vadd.s32 %v545, 640
    %552 = vset.pattern.permute.xlu0 0
    %553 = vperm.xlu0 %552, %v536
    %v554 = vpop.permute.xlu0 %553
    %557 = vset.pattern.permute.xlu0 0
    %558 = vperm.xlu0 %557, %v538
    %v559 = vpop.permute.xlu0 %558
    %v561 = vmul.f32 %v88, %v554
    %v562 = vmul.f32 %v89, %v554
    %v563 = vmul.f32 %v90, %v554
    %v564 = vmul.f32 %v91, %v554
    %v565 = vmul.f32 %v92, %v554
    %v566 = vmul.f32 %v93, %v554
    %v567 = vmul.f32 %v94, %v559
    %v568 = vmul.f32 %v95, %v559
    %v569 = vmul.f32 %v96, %v559
    %v570 = vmul.f32 %v97, %v559
    %v571 = vmul.f32 %v98, %v559
    %v572 = vmul.f32 %v99, %v559
    %574 = vset.pattern.permute.xlu0 0
    %575 = vperm.xlu0 %574, %v540
    %v576 = vpop.permute.xlu0 %575
    %579 = vset.pattern.permute.xlu0 0
    %580 = vperm.xlu0 %579, %v542
    %v581 = vpop.permute.xlu0 %580
    %v583 = vmul.f32 %v100, %v576
    %v584 = vmul.f32 %v101, %v576
    %v585 = vmul.f32 %v102, %v576
    %v586 = vmul.f32 %v103, %v576
    %v587 = vmul.f32 %v104, %v576
    %v588 = vmul.f32 %v105, %v576
    %v589 = vmul.f32 %v106, %v581
    %v590 = vmul.f32 %v107, %v581
    %v591 = vmul.f32 %v108, %v581
    %v592 = vmul.f32 %v109, %v581
    %v593 = vmul.f32 %v110, %v581
    %v594 = vmul.f32 %v111, %v581
    %v595 = vadd.f32 %v561, %v567
    %v596 = vrot.slane %v595, 4
    %v597 = vadd.f32 %v595, %v596
    %v598 = vrot.slane %v597, 2
    %v599 = vadd.f32 %v597, %v598
    %v600 = vrot.slane %v599, 1
    %v601 = vadd.f32 %v599, %v600
    %v602 = vadd.f32 %v562, %v568
    %v603 = vrot.slane %v602, 4
    %v604 = vadd.f32 %v602, %v603
    %v605 = vrot.slane %v604, 2
    %v606 = vadd.f32 %v604, %v605
    %v607 = vrot.slane %v606, 1
    %v608 = vadd.f32 %v606, %v607
    %v609 = vadd.f32 %v563, %v569
    %v610 = vrot.slane %v609, 4
    %v611 = vadd.f32 %v609, %v610
    %v612 = vrot.slane %v611, 2
    %v613 = vadd.f32 %v611, %v612
    %v614 = vrot.slane %v613, 1
    %v615 = vadd.f32 %v613, %v614
    %v616 = vadd.f32 %v564, %v570
    %v617 = vrot.slane %v616, 4
    %v618 = vadd.f32 %v616, %v617
    %v619 = vrot.slane %v618, 2
    %v620 = vadd.f32 %v618, %v619
    %v621 = vrot.slane %v620, 1
    %v622 = vadd.f32 %v620, %v621
    %v623 = vadd.f32 %v565, %v571
    %v624 = vrot.slane %v623, 4
    %v625 = vadd.f32 %v623, %v624
    %v626 = vrot.slane %v625, 2
    %v627 = vadd.f32 %v625, %v626
    %v628 = vrot.slane %v627, 1
    %v629 = vadd.f32 %v627, %v628
    %v630 = vadd.f32 %v566, %v572
    %v631 = vrot.slane %v630, 4
    %v632 = vadd.f32 %v630, %v631
    %v633 = vrot.slane %v632, 2
    %v634 = vadd.f32 %v632, %v633
    %v635 = vrot.slane %v634, 1
    %v636 = vadd.f32 %v634, %v635
    %v637 = vadd.f32 %v583, %v589
    %v638 = vrot.slane %v637, 4
    %v639 = vadd.f32 %v637, %v638
    %v640 = vrot.slane %v639, 2
    %v641 = vadd.f32 %v639, %v640
    %v642 = vrot.slane %v641, 1
    %v643 = vadd.f32 %v641, %v642
    %v644 = vadd.f32 %v584, %v590
    %v645 = vrot.slane %v644, 4
    %v646 = vadd.f32 %v644, %v645
    %v647 = vrot.slane %v646, 2
    %v648 = vadd.f32 %v646, %v647
    %v649 = vrot.slane %v648, 1
    %v650 = vadd.f32 %v648, %v649
    %v651 = vadd.f32 %v585, %v591
    %v652 = vrot.slane %v651, 4
    %v653 = vadd.f32 %v651, %v652
    %v654 = vrot.slane %v653, 2
    %v655 = vadd.f32 %v653, %v654
    %v656 = vrot.slane %v655, 1
    %v657 = vadd.f32 %v655, %v656
    %v658 = vadd.f32 %v586, %v592
    %v659 = vrot.slane %v658, 4
    %v660 = vadd.f32 %v658, %v659
    %v661 = vrot.slane %v660, 2
    %v662 = vadd.f32 %v660, %v661
    %v663 = vrot.slane %v662, 1
    %v664 = vadd.f32 %v662, %v663
    %v665 = vadd.f32 %v587, %v593
    %v666 = vrot.slane %v665, 4
    %v667 = vadd.f32 %v665, %v666
    %v668 = vrot.slane %v667, 2
    %v669 = vadd.f32 %v667, %v668
    %v670 = vrot.slane %v669, 1
    %v671 = vadd.f32 %v669, %v670
    %v672 = vadd.f32 %v588, %v594
    %v673 = vrot.slane %v672, 4
    %v674 = vadd.f32 %v672, %v673
    %v675 = vrot.slane %v674, 2
    %v676 = vadd.f32 %v674, %v675
    %v677 = vrot.slane %v676, 1
    %v678 = vadd.f32 %v676, %v677
    %v679 = vadd.f32 %v601, %v643
    %v680 = vadd.f32 %v608, %v650
    %v681 = vadd.f32 %v615, %v657
    %v682 = vadd.f32 %v622, %v664
    %v683 = vadd.f32 %v629, %v671
    %v684 = vadd.f32 %v636, %v678
    %v685 = vmul.f32 %v679, 0.03125
    %v686 = vmul.f32 %v680, 0.03125
    %v687 = vmul.f32 %v681, 0.03125
    %v688 = vmul.f32 %v682, 0.03125
    %v689 = vmul.f32 %v683, 0.03125
    %v690 = vmul.f32 %v684, 0.03125
    %v691 = vmax.f32 %v561, %v567
    %v692 = vrot.slane %v691, 4
    %v693 = vmax.f32 %v691, %v692
    %v694 = vrot.slane %v693, 2
    %v695 = vmax.f32 %v693, %v694
    %v696 = vrot.slane %v695, 1
    %v697 = vmax.f32 %v695, %v696
    %v698 = vmax.f32 %v562, %v568
    %v699 = vrot.slane %v698, 4
    %v700 = vmax.f32 %v698, %v699
    %v701 = vrot.slane %v700, 2
    %v702 = vmax.f32 %v700, %v701
    %v703 = vrot.slane %v702, 1
    %v704 = vmax.f32 %v702, %v703
    %v705 = vmax.f32 %v563, %v569
    %v706 = vrot.slane %v705, 4
    %v707 = vmax.f32 %v705, %v706
    %v708 = vrot.slane %v707, 2
    %v709 = vmax.f32 %v707, %v708
    %v710 = vrot.slane %v709, 1
    %v711 = vmax.f32 %v709, %v710
    %v712 = vmax.f32 %v564, %v570
    %v713 = vrot.slane %v712, 4
    %v714 = vmax.f32 %v712, %v713
    %v715 = vrot.slane %v714, 2
    %v716 = vmax.f32 %v714, %v715
    %v717 = vrot.slane %v716, 1
    %v718 = vmax.f32 %v716, %v717
    %v719 = vmax.f32 %v565, %v571
    %v720 = vrot.slane %v719, 4
    %v721 = vmax.f32 %v719, %v720
    %v722 = vrot.slane %v721, 2
    %v723 = vmax.f32 %v721, %v722
    %v724 = vrot.slane %v723, 1
    %v725 = vmax.f32 %v723, %v724
    %v726 = vmax.f32 %v566, %v572
    %v727 = vrot.slane %v726, 4
    %v728 = vmax.f32 %v726, %v727
    %v729 = vrot.slane %v728, 2
    %v730 = vmax.f32 %v728, %v729
    %v731 = vrot.slane %v730, 1
    %v732 = vmax.f32 %v730, %v731
    %v733 = vmax.f32 %v583, %v589
    %v734 = vrot.slane %v733, 4
    %v735 = vmax.f32 %v733, %v734
    %v736 = vrot.slane %v735, 2
    %v737 = vmax.f32 %v735, %v736
    %v738 = vrot.slane %v737, 1
    %v739 = vmax.f32 %v737, %v738
    %v740 = vmax.f32 %v584, %v590
    %v741 = vrot.slane %v740, 4
    %v742 = vmax.f32 %v740, %v741
    %v743 = vrot.slane %v742, 2
    %v744 = vmax.f32 %v742, %v743
    %v745 = vrot.slane %v744, 1
    %v746 = vmax.f32 %v744, %v745
    %v747 = vmax.f32 %v585, %v591
    %v748 = vrot.slane %v747, 4
    %v749 = vmax.f32 %v747, %v748
    %v750 = vrot.slane %v749, 2
    %v751 = vmax.f32 %v749, %v750
    %v752 = vrot.slane %v751, 1
    %v753 = vmax.f32 %v751, %v752
    %v754 = vmax.f32 %v586, %v592
    %v755 = vrot.slane %v754, 4
    %v756 = vmax.f32 %v754, %v755
    %v757 = vrot.slane %v756, 2
    %v758 = vmax.f32 %v756, %v757
    %v759 = vrot.slane %v758, 1
    %v760 = vmax.f32 %v758, %v759
    %v761 = vmax.f32 %v587, %v593
    %v762 = vrot.slane %v761, 4
    %v763 = vmax.f32 %v761, %v762
    %v764 = vrot.slane %v763, 2
    %v765 = vmax.f32 %v763, %v764
    %v766 = vrot.slane %v765, 1
    %v767 = vmax.f32 %v765, %v766
    %v768 = vmax.f32 %v588, %v594
    %v769 = vrot.slane %v768, 4
    %v770 = vmax.f32 %v768, %v769
    %v771 = vrot.slane %v770, 2
    %v772 = vmax.f32 %v770, %v771
    %v773 = vrot.slane %v772, 1
    %v774 = vmax.f32 %v772, %v773
    %v775 = vmax.f32 %v697, %v739
    %v776 = vmax.f32 %v704, %v746
    %v777 = vmax.f32 %v711, %v753
    %v778 = vmax.f32 %v718, %v760
    %v779 = vmax.f32 %v725, %v767
    %v780 = vmax.f32 %v732, %v774
    %vm781 = vcmask 1040384
    %v782 = vsel %vm781, %v685, %v775
    %v783 = vsel %vm781, %v686, %v776
    %v784 = vsel %vm781, %v687, %v777
    %v785 = vsel %vm781, %v688, %v778
    %v786 = vsel %vm781, %v689, %v779
    %v787 = vsel %vm781, %v690, %v780
    %788 = vrot.lane.b32.xlu0 %v782, 3
    %v789 = vpop.permute.xlu0 %788
    %790 = vrot.lane.b32.xlu0 %v783, 3
    %v791 = vpop.permute.xlu0 %790
    %792 = vrot.lane.b32.xlu0 %v784, 3
    %v793 = vpop.permute.xlu0 %792
    %794 = vrot.lane.b32.xlu0 %v785, 3
    %v795 = vpop.permute.xlu0 %794
    %796 = vrot.lane.b32.xlu0 %v786, 3
    %v797 = vpop.permute.xlu0 %796
    %798 = vrot.lane.b32.xlu0 %v787, 3
    %v799 = vpop.permute.xlu0 %798
    %vm800 = vcmp.lt.s32.totalorder %v545, 3
    %v801 = vsel %vm800, %v797, %v799
    %v802 = vsel %vm800, %v795, %v797
    %v803 = vsel %vm800, %v793, %v795
    %v804 = vsel %vm800, %v791, %v793
    %v805 = vsel %vm800, %v789, %v791
    %v806 = vsel %vm800, %v799, %v789
    %v807 = vadd.s32 %v545, 4294967293
    %v808 = vadd.s32 %v546, 4294967293
    %v809 = vadd.s32 %v547, 4294967293
    %v810 = vadd.s32 %v548, 4294967293
    %v811 = vadd.s32 %v549, 4294967293
    %v812 = vadd.s32 %v550, 4294967293
    %vm813 = vcmp.ge.s32.totalorder %v807, 0
    %vm814 = vcmp.ge.s32.totalorder %v808, 0
    %vm815 = vcmp.ge.s32.totalorder %v809, 0
    %vm816 = vcmp.ge.s32.totalorder %v810, 0
    %vm817 = vcmp.ge.s32.totalorder %v811, 0
    %vm818 = vcmp.ge.s32.totalorder %v812, 0
    %vm819 = vcmp.lt.s32.totalorder %v807, 768
    %vm820 = vcmp.lt.s32.totalorder %v808, 768
    %vm821 = vcmp.lt.s32.totalorder %v809, 768
    %vm822 = vcmp.lt.s32.totalorder %v810, 768
    %vm823 = vcmp.lt.s32.totalorder %v811, 768
    %vm824 = vcmp.lt.s32.totalorder %v812, 768
    %vm825 = vmand %vm813, %vm819
    %vm826 = vmand %vm814, %vm820
    %vm827 = vmand %vm815, %vm821
    %vm828 = vmand %vm816, %vm822
    %vm829 = vmand %vm817, %vm823
    %vm830 = vmand %vm818, %vm824
    %v831 = vsel %vm825, %v806, 0.0
    %v832 = vsel %vm826, %v805, 0.0
    %v833 = vsel %vm827, %v804, 0.0
    %v834 = vsel %vm828, %v803, 0.0
    %v835 = vsel %vm829, %v802, 0.0
    %v836 = vsel %vm830, %v801, 0.0
    %838 = vset.pattern.permute.xlu0 0
    %839 = vperm.xlu0 %838, %v543
    %v840 = vpop.permute.xlu0 %839
    %v842 = vmul.f32 %v831, %v840
    %v843 = vmul.f32 %v832, %v840
    %v844 = vmul.f32 %v833, %v840
    %v845 = vmul.f32 %v834, %v840
    %v846 = vmul.f32 %v835, %v840
    %v847 = vmul.f32 %v836, %v840
    %v848 = vadd.f32 %v842, 0.0
    %v849 = vadd.f32 %v843, 0.0
    %v850 = vadd.f32 %v844, 0.0
    %v851 = vadd.f32 %v845, 0.0
    %v852 = vadd.f32 %v846, 0.0
    %v853 = vadd.f32 %v847, 0.0
    %854 = vrot.lane.b32.xlu0 %v782, 2
    %v855 = vpop.permute.xlu0 %854
    %856 = vrot.lane.b32.xlu0 %v783, 2
    %v857 = vpop.permute.xlu0 %856
    %858 = vrot.lane.b32.xlu0 %v784, 2
    %v859 = vpop.permute.xlu0 %858
    %860 = vrot.lane.b32.xlu0 %v785, 2
    %v861 = vpop.permute.xlu0 %860
    %862 = vrot.lane.b32.xlu0 %v786, 2
    %v863 = vpop.permute.xlu0 %862
    %864 = vrot.lane.b32.xlu0 %v787, 2
    %v865 = vpop.permute.xlu0 %864
    %vm866 = vcmp.lt.s32.totalorder %v545, 2
    %v867 = vsel %vm866, %v863, %v865
    %v868 = vsel %vm866, %v861, %v863
    %v869 = vsel %vm866, %v859, %v861
    %v870 = vsel %vm866, %v857, %v859
    %v871 = vsel %vm866, %v855, %v857
    %v872 = vsel %vm866, %v865, %v855
    %v873 = vadd.s32 %v545, 4294967294
    %v874 = vadd.s32 %v546, 4294967294
    %v875 = vadd.s32 %v547, 4294967294
    %v876 = vadd.s32 %v548, 4294967294
    %v877 = vadd.s32 %v549, 4294967294
    %v878 = vadd.s32 %v550, 4294967294
    %vm879 = vcmp.ge.s32.totalorder %v873, 0
    %vm880 = vcmp.ge.s32.totalorder %v874, 0
    %vm881 = vcmp.ge.s32.totalorder %v875, 0
    %vm882 = vcmp.ge.s32.totalorder %v876, 0
    %vm883 = vcmp.ge.s32.totalorder %v877, 0
    %vm884 = vcmp.ge.s32.totalorder %v878, 0
    %vm885 = vcmp.lt.s32.totalorder %v873, 768
    %vm886 = vcmp.lt.s32.totalorder %v874, 768
    %vm887 = vcmp.lt.s32.totalorder %v875, 768
    %vm888 = vcmp.lt.s32.totalorder %v876, 768
    %vm889 = vcmp.lt.s32.totalorder %v877, 768
    %vm890 = vcmp.lt.s32.totalorder %v878, 768
    %vm891 = vmand %vm879, %vm885
    %vm892 = vmand %vm880, %vm886
    %vm893 = vmand %vm881, %vm887
    %vm894 = vmand %vm882, %vm888
    %vm895 = vmand %vm883, %vm889
    %vm896 = vmand %vm884, %vm890
    %v897 = vsel %vm891, %v872, 0.0
    %v898 = vsel %vm892, %v871, 0.0
    %v899 = vsel %vm893, %v870, 0.0
    %v900 = vsel %vm894, %v869, 0.0
    %v901 = vsel %vm895, %v868, 0.0
    %v902 = vsel %vm896, %v867, 0.0
    %903 = vset.pattern.permute.xlu0 1
    %904 = vperm.xlu0 %903, %v543
    %v905 = vpop.permute.xlu0 %904
    %v907 = vmul.f32 %v897, %v905
    %v908 = vmul.f32 %v898, %v905
    %v909 = vmul.f32 %v899, %v905
    %v910 = vmul.f32 %v900, %v905
    %v911 = vmul.f32 %v901, %v905
    %v912 = vmul.f32 %v902, %v905
    %v913 = vadd.f32 %v848, %v907
    %v914 = vadd.f32 %v849, %v908
    %v915 = vadd.f32 %v850, %v909
    %v916 = vadd.f32 %v851, %v910
    %v917 = vadd.f32 %v852, %v911
    %v918 = vadd.f32 %v853, %v912
    %919 = vrot.lane.b32.xlu0 %v782, 1
    %v920 = vpop.permute.xlu0 %919
    %921 = vrot.lane.b32.xlu0 %v783, 1
    %v922 = vpop.permute.xlu0 %921
    %923 = vrot.lane.b32.xlu0 %v784, 1
    %v924 = vpop.permute.xlu0 %923
    %925 = vrot.lane.b32.xlu0 %v785, 1
    %v926 = vpop.permute.xlu0 %925
    %927 = vrot.lane.b32.xlu0 %v786, 1
    %v928 = vpop.permute.xlu0 %927
    %929 = vrot.lane.b32.xlu0 %v787, 1
    %v930 = vpop.permute.xlu0 %929
    %vm931 = vcmp.lt.s32.totalorder %v545, 1
    %v932 = vsel %vm931, %v928, %v930
    %v933 = vsel %vm931, %v926, %v928
    %v934 = vsel %vm931, %v924, %v926
    %v935 = vsel %vm931, %v922, %v924
    %v936 = vsel %vm931, %v920, %v922
    %v937 = vsel %vm931, %v930, %v920
    %v938 = vadd.s32 %v545, 4294967295
    %v939 = vadd.s32 %v546, 4294967295
    %v940 = vadd.s32 %v547, 4294967295
    %v941 = vadd.s32 %v548, 4294967295
    %v942 = vadd.s32 %v549, 4294967295
    %v943 = vadd.s32 %v550, 4294967295
    %vm944 = vcmp.ge.s32.totalorder %v938, 0
    %vm945 = vcmp.ge.s32.totalorder %v939, 0
    %vm946 = vcmp.ge.s32.totalorder %v940, 0
    %vm947 = vcmp.ge.s32.totalorder %v941, 0
    %vm948 = vcmp.ge.s32.totalorder %v942, 0
    %vm949 = vcmp.ge.s32.totalorder %v943, 0
    %vm950 = vcmp.lt.s32.totalorder %v938, 768
    %vm951 = vcmp.lt.s32.totalorder %v939, 768
    %vm952 = vcmp.lt.s32.totalorder %v940, 768
    %vm953 = vcmp.lt.s32.totalorder %v941, 768
    %vm954 = vcmp.lt.s32.totalorder %v942, 768
    %vm955 = vcmp.lt.s32.totalorder %v943, 768
    %vm956 = vmand %vm944, %vm950
    %vm957 = vmand %vm945, %vm951
    %vm958 = vmand %vm946, %vm952
    %vm959 = vmand %vm947, %vm953
    %vm960 = vmand %vm948, %vm954
    %vm961 = vmand %vm949, %vm955
    %v962 = vsel %vm956, %v937, 0.0
    %v963 = vsel %vm957, %v936, 0.0
    %v964 = vsel %vm958, %v935, 0.0
    %v965 = vsel %vm959, %v934, 0.0
    %v966 = vsel %vm960, %v933, 0.0
    %v967 = vsel %vm961, %v932, 0.0
    %968 = vset.pattern.permute.xlu0 2
    %969 = vperm.xlu0 %968, %v543
    %v970 = vpop.permute.xlu0 %969
    %v972 = vmul.f32 %v962, %v970
    %v973 = vmul.f32 %v963, %v970
    %v974 = vmul.f32 %v964, %v970
    %v975 = vmul.f32 %v965, %v970
    %v976 = vmul.f32 %v966, %v970
    %v977 = vmul.f32 %v967, %v970
    %v978 = vadd.f32 %v913, %v972
    %v979 = vadd.f32 %v914, %v973
    %v980 = vadd.f32 %v915, %v974
    %v981 = vadd.f32 %v916, %v975
    %v982 = vadd.f32 %v917, %v976
    %v983 = vadd.f32 %v918, %v977
    %984 = vset.pattern.permute.xlu0 3
    %985 = vperm.xlu0 %984, %v543
    %v986 = vpop.permute.xlu0 %985
    %v988 = vmul.f32 %v782, %v986
    %v989 = vmul.f32 %v783, %v986
    %v990 = vmul.f32 %v784, %v986
    %v991 = vmul.f32 %v785, %v986
    %v992 = vmul.f32 %v786, %v986
    %v993 = vmul.f32 %v787, %v986
    %v994 = vadd.f32 %v978, %v988
    %v995 = vadd.f32 %v979, %v989
    %v996 = vadd.f32 %v980, %v990
    %v997 = vadd.f32 %v981, %v991
    %v998 = vadd.f32 %v982, %v992
    %v999 = vadd.f32 %v983, %v993
    %1000 = vrot.lane.b32.xlu0 %v782, 127
    %v1001 = vpop.permute.xlu0 %1000
    %1002 = vrot.lane.b32.xlu0 %v783, 127
    %v1003 = vpop.permute.xlu0 %1002
    %1004 = vrot.lane.b32.xlu0 %v784, 127
    %v1005 = vpop.permute.xlu0 %1004
    %1006 = vrot.lane.b32.xlu0 %v785, 127
    %v1007 = vpop.permute.xlu0 %1006
    %1008 = vrot.lane.b32.xlu0 %v786, 127
    %v1009 = vpop.permute.xlu0 %1008
    %1010 = vrot.lane.b32.xlu0 %v787, 127
    %v1011 = vpop.permute.xlu0 %1010
    %vm1012 = vcmp.lt.s32.totalorder %v545, 127
    %v1013 = vsel %vm1012, %v1009, %v1011
    %v1014 = vsel %vm1012, %v1007, %v1009
    %v1015 = vsel %vm1012, %v1005, %v1007
    %v1016 = vsel %vm1012, %v1003, %v1005
    %v1017 = vsel %vm1012, %v1001, %v1003
    %v1018 = vsel %vm1012, %v1011, %v1001
    %v1019 = vadd.s32 %v545, 1
    %v1020 = vadd.s32 %v546, 1
    %v1021 = vadd.s32 %v547, 1
    %v1022 = vadd.s32 %v548, 1
    %v1023 = vadd.s32 %v549, 1
    %v1024 = vadd.s32 %v550, 1
    %vm1025 = vcmp.ge.s32.totalorder %v1019, 0
    %vm1026 = vcmp.ge.s32.totalorder %v1020, 0
    %vm1027 = vcmp.ge.s32.totalorder %v1021, 0
    %vm1028 = vcmp.ge.s32.totalorder %v1022, 0
    %vm1029 = vcmp.ge.s32.totalorder %v1023, 0
    %vm1030 = vcmp.ge.s32.totalorder %v1024, 0
    %vm1031 = vcmp.lt.s32.totalorder %v1019, 768
    %vm1032 = vcmp.lt.s32.totalorder %v1020, 768
    %vm1033 = vcmp.lt.s32.totalorder %v1021, 768
    %vm1034 = vcmp.lt.s32.totalorder %v1022, 768
    %vm1035 = vcmp.lt.s32.totalorder %v1023, 768
    %vm1036 = vcmp.lt.s32.totalorder %v1024, 768
    %vm1037 = vmand %vm1025, %vm1031
    %vm1038 = vmand %vm1026, %vm1032
    %vm1039 = vmand %vm1027, %vm1033
    %vm1040 = vmand %vm1028, %vm1034
    %vm1041 = vmand %vm1029, %vm1035
    %vm1042 = vmand %vm1030, %vm1036
    %v1043 = vsel %vm1037, %v1017, 0.0
    %v1044 = vsel %vm1038, %v1016, 0.0
    %v1045 = vsel %vm1039, %v1015, 0.0
    %v1046 = vsel %vm1040, %v1014, 0.0
    %v1047 = vsel %vm1041, %v1013, 0.0
    %v1048 = vsel %vm1042, %v1018, 0.0
    %1049 = vset.pattern.permute.xlu0 4
    %1050 = vperm.xlu0 %1049, %v543
    %v1051 = vpop.permute.xlu0 %1050
    %v1053 = vmul.f32 %v1043, %v1051
    %v1054 = vmul.f32 %v1044, %v1051
    %v1055 = vmul.f32 %v1045, %v1051
    %v1056 = vmul.f32 %v1046, %v1051
    %v1057 = vmul.f32 %v1047, %v1051
    %v1058 = vmul.f32 %v1048, %v1051
    %v1059 = vadd.f32 %v994, %v1053
    %v1060 = vadd.f32 %v995, %v1054
    %v1061 = vadd.f32 %v996, %v1055
    %v1062 = vadd.f32 %v997, %v1056
    %v1063 = vadd.f32 %v998, %v1057
    %v1064 = vadd.f32 %v999, %v1058
    %1065 = vrot.lane.b32.xlu0 %v782, 126
    %v1066 = vpop.permute.xlu0 %1065
    %1067 = vrot.lane.b32.xlu0 %v783, 126
    %v1068 = vpop.permute.xlu0 %1067
    %1069 = vrot.lane.b32.xlu0 %v784, 126
    %v1070 = vpop.permute.xlu0 %1069
    %1071 = vrot.lane.b32.xlu0 %v785, 126
    %v1072 = vpop.permute.xlu0 %1071
    %1073 = vrot.lane.b32.xlu0 %v786, 126
    %v1074 = vpop.permute.xlu0 %1073
    %1075 = vrot.lane.b32.xlu0 %v787, 126
    %v1076 = vpop.permute.xlu0 %1075
    %vm1077 = vcmp.lt.s32.totalorder %v545, 126
    %v1078 = vsel %vm1077, %v1074, %v1076
    %v1079 = vsel %vm1077, %v1072, %v1074
    %v1080 = vsel %vm1077, %v1070, %v1072
    %v1081 = vsel %vm1077, %v1068, %v1070
    %v1082 = vsel %vm1077, %v1066, %v1068
    %v1083 = vsel %vm1077, %v1076, %v1066
    %v1084 = vadd.s32 %v545, 2
    %v1085 = vadd.s32 %v546, 2
    %v1086 = vadd.s32 %v547, 2
    %v1087 = vadd.s32 %v548, 2
    %v1088 = vadd.s32 %v549, 2
    %v1089 = vadd.s32 %v550, 2
    %vm1090 = vcmp.ge.s32.totalorder %v1084, 0
    %vm1091 = vcmp.ge.s32.totalorder %v1085, 0
    %vm1092 = vcmp.ge.s32.totalorder %v1086, 0
    %vm1093 = vcmp.ge.s32.totalorder %v1087, 0
    %vm1094 = vcmp.ge.s32.totalorder %v1088, 0
    %vm1095 = vcmp.ge.s32.totalorder %v1089, 0
    %vm1096 = vcmp.lt.s32.totalorder %v1084, 768
    %vm1097 = vcmp.lt.s32.totalorder %v1085, 768
    %vm1098 = vcmp.lt.s32.totalorder %v1086, 768
    %vm1099 = vcmp.lt.s32.totalorder %v1087, 768
    %vm1100 = vcmp.lt.s32.totalorder %v1088, 768
    %vm1101 = vcmp.lt.s32.totalorder %v1089, 768
    %vm1102 = vmand %vm1090, %vm1096
    %vm1103 = vmand %vm1091, %vm1097
    %vm1104 = vmand %vm1092, %vm1098
    %vm1105 = vmand %vm1093, %vm1099
    %vm1106 = vmand %vm1094, %vm1100
    %vm1107 = vmand %vm1095, %vm1101
    %v1108 = vsel %vm1102, %v1082, 0.0
    %v1109 = vsel %vm1103, %v1081, 0.0
    %v1110 = vsel %vm1104, %v1080, 0.0
    %v1111 = vsel %vm1105, %v1079, 0.0
    %v1112 = vsel %vm1106, %v1078, 0.0
    %v1113 = vsel %vm1107, %v1083, 0.0
    %1114 = vset.pattern.permute.xlu0 5
    %1115 = vperm.xlu0 %1114, %v543
    %v1116 = vpop.permute.xlu0 %1115
    %v1118 = vmul.f32 %v1108, %v1116
    %v1119 = vmul.f32 %v1109, %v1116
    %v1120 = vmul.f32 %v1110, %v1116
    %v1121 = vmul.f32 %v1111, %v1116
    %v1122 = vmul.f32 %v1112, %v1116
    %v1123 = vmul.f32 %v1113, %v1116
    %v1124 = vadd.f32 %v1059, %v1118
    %v1125 = vadd.f32 %v1060, %v1119
    %v1126 = vadd.f32 %v1061, %v1120
    %v1127 = vadd.f32 %v1062, %v1121
    %v1128 = vadd.f32 %v1063, %v1122
    %v1129 = vadd.f32 %v1064, %v1123
    %1130 = vrot.lane.b32.xlu0 %v782, 125
    %v1131 = vpop.permute.xlu0 %1130
    %1132 = vrot.lane.b32.xlu0 %v783, 125
    %v1133 = vpop.permute.xlu0 %1132
    %1134 = vrot.lane.b32.xlu0 %v784, 125
    %v1135 = vpop.permute.xlu0 %1134
    %1136 = vrot.lane.b32.xlu0 %v785, 125
    %v1137 = vpop.permute.xlu0 %1136
    %1138 = vrot.lane.b32.xlu0 %v786, 125
    %v1139 = vpop.permute.xlu0 %1138
    %1140 = vrot.lane.b32.xlu0 %v787, 125
    %v1141 = vpop.permute.xlu0 %1140
    %vm1142 = vcmp.lt.s32.totalorder %v545, 125
    %v1143 = vsel %vm1142, %v1139, %v1141
    %v1144 = vsel %vm1142, %v1137, %v1139
    %v1145 = vsel %vm1142, %v1135, %v1137
    %v1146 = vsel %vm1142, %v1133, %v1135
    %v1147 = vsel %vm1142, %v1131, %v1133
    %v1148 = vsel %vm1142, %v1141, %v1131
    %v1149 = vadd.s32 %v545, 3
    %v1150 = vadd.s32 %v546, 3
    %v1151 = vadd.s32 %v547, 3
    %v1152 = vadd.s32 %v548, 3
    %v1153 = vadd.s32 %v549, 3
    %v1154 = vadd.s32 %v550, 3
    %vm1155 = vcmp.ge.s32.totalorder %v1149, 0
    %vm1156 = vcmp.ge.s32.totalorder %v1150, 0
    %vm1157 = vcmp.ge.s32.totalorder %v1151, 0
    %vm1158 = vcmp.ge.s32.totalorder %v1152, 0
    %vm1159 = vcmp.ge.s32.totalorder %v1153, 0
    %vm1160 = vcmp.ge.s32.totalorder %v1154, 0
    %vm1161 = vcmp.lt.s32.totalorder %v1149, 768
    %vm1162 = vcmp.lt.s32.totalorder %v1150, 768
    %vm1163 = vcmp.lt.s32.totalorder %v1151, 768
    %vm1164 = vcmp.lt.s32.totalorder %v1152, 768
    %vm1165 = vcmp.lt.s32.totalorder %v1153, 768
    %vm1166 = vcmp.lt.s32.totalorder %v1154, 768
    %vm1167 = vmand %vm1155, %vm1161
    %vm1168 = vmand %vm1156, %vm1162
    %vm1169 = vmand %vm1157, %vm1163
    %vm1170 = vmand %vm1158, %vm1164
    %vm1171 = vmand %vm1159, %vm1165
    %vm1172 = vmand %vm1160, %vm1166
    %v1173 = vsel %vm1167, %v1147, 0.0
    %v1174 = vsel %vm1168, %v1146, 0.0
    %v1175 = vsel %vm1169, %v1145, 0.0
    %v1176 = vsel %vm1170, %v1144, 0.0
    %v1177 = vsel %vm1171, %v1143, 0.0
    %v1178 = vsel %vm1172, %v1148, 0.0
    %1179 = vset.pattern.permute.xlu0 6
    %1180 = vperm.xlu0 %1179, %v543
    %v1181 = vpop.permute.xlu0 %1180
    %v1183 = vmul.f32 %v1173, %v1181
    %v1184 = vmul.f32 %v1174, %v1181
    %v1185 = vmul.f32 %v1175, %v1181
    %v1186 = vmul.f32 %v1176, %v1181
    %v1187 = vmul.f32 %v1177, %v1181
    %v1188 = vmul.f32 %v1178, %v1181
    %v1189 = vadd.f32 %v1124, %v1183
    %v1190 = vadd.f32 %v1125, %v1184
    %v1191 = vadd.f32 %v1126, %v1185
    %v1192 = vadd.f32 %v1127, %v1186
    %v1193 = vadd.f32 %v1128, %v1187
    %v1194 = vadd.f32 %v1129, %v1188
    %vm1195 = vcmask 1041408
    %v1196 = vsel %vm1195, %v1189, 0.0
    %v1197 = vrot.slane %v1196, 4
    %v1198 = vadd.f32 %v1196, %v1197
    %v1199 = vrot.slane %v1198, 2
    %v1200 = vadd.f32 %v1198, %v1199
    %v1201 = vrot.slane %v1200, 1
    %v1202 = vadd.f32 %v1200, %v1201
    %v1203 = vsel %vm1195, %v1190, 0.0
    %v1204 = vrot.slane %v1203, 4
    %v1205 = vadd.f32 %v1203, %v1204
    %v1206 = vrot.slane %v1205, 2
    %v1207 = vadd.f32 %v1205, %v1206
    %v1208 = vrot.slane %v1207, 1
    %v1209 = vadd.f32 %v1207, %v1208
    %v1210 = vsel %vm1195, %v1191, 0.0
    %v1211 = vrot.slane %v1210, 4
    %v1212 = vadd.f32 %v1210, %v1211
    %v1213 = vrot.slane %v1212, 2
    %v1214 = vadd.f32 %v1212, %v1213
    %v1215 = vrot.slane %v1214, 1
    %v1216 = vadd.f32 %v1214, %v1215
    %v1217 = vsel %vm1195, %v1192, 0.0
    %v1218 = vrot.slane %v1217, 4
    %v1219 = vadd.f32 %v1217, %v1218
    %v1220 = vrot.slane %v1219, 2
    %v1221 = vadd.f32 %v1219, %v1220
    %v1222 = vrot.slane %v1221, 1
    %v1223 = vadd.f32 %v1221, %v1222
    %v1224 = vsel %vm1195, %v1193, 0.0
    %v1225 = vrot.slane %v1224, 4
    %v1226 = vadd.f32 %v1224, %v1225
    %v1227 = vrot.slane %v1226, 2
    %v1228 = vadd.f32 %v1226, %v1227
    %v1229 = vrot.slane %v1228, 1
    %v1230 = vadd.f32 %v1228, %v1229
    %v1231 = vsel %vm1195, %v1194, 0.0
    %v1232 = vrot.slane %v1231, 4
    %v1233 = vadd.f32 %v1231, %v1232
    %v1234 = vrot.slane %v1233, 2
    %v1235 = vadd.f32 %v1233, %v1234
    %v1236 = vrot.slane %v1235, 1
    %v1237 = vadd.f32 %v1235, %v1236
    %v1238 = vxor.u32 %v1202, 2147483648
    %v1239 = vxor.u32 %v1209, 2147483648
    %v1240 = vxor.u32 %v1216, 2147483648
    %v1241 = vxor.u32 %v1223, 2147483648
    %v1242 = vxor.u32 %v1230, 2147483648
    %v1243 = vxor.u32 %v1237, 2147483648
    %v1244 = vmul.f32 %v1238, 1.442695
    %v1245 = vpow.pop %v1244
    %v1246 = vmul.f32 %v1239, 1.442695
    %v1247 = vpow.pop %v1246
    %v1248 = vmul.f32 %v1240, 1.442695
    %v1249 = vpow.pop %v1248
    %v1250 = vmul.f32 %v1241, 1.442695
    %v1251 = vpow.pop %v1250
    %v1252 = vmul.f32 %v1242, 1.442695
    %v1253 = vpow.pop %v1252
    %v1254 = vmul.f32 %v1243, 1.442695
    %v1255 = vpow.pop %v1254
    %v1256 = vadd.f32 %v1245, 1.0
    %v1257 = vadd.f32 %v1247, 1.0
    %v1258 = vadd.f32 %v1249, 1.0
    %v1259 = vadd.f32 %v1251, 1.0
    %v1260 = vadd.f32 %v1253, 1.0
    %v1261 = vadd.f32 %v1255, 1.0
    %v1262 = vrcp.pop %v1256
    %v1263 = vmul.f32 1.0, %v1262
    %v1264 = vrcp.pop %v1257
    %v1265 = vmul.f32 1.0, %v1264
    %v1266 = vrcp.pop %v1258
    %v1267 = vmul.f32 1.0, %v1266
    %v1268 = vrcp.pop %v1259
    %v1269 = vmul.f32 1.0, %v1268
    %v1270 = vrcp.pop %v1260
    %v1271 = vmul.f32 1.0, %v1270
    %v1272 = vrcp.pop %v1261
    %v1273 = vmul.f32 1.0, %v1272
    %v1274 = vmul.f32 %v561, %v1263
    %v1275 = vmul.f32 %v562, %v1265
    %v1276 = vmul.f32 %v563, %v1267
    %v1277 = vmul.f32 %v564, %v1269
    %v1278 = vmul.f32 %v565, %v1271
    %v1279 = vmul.f32 %v566, %v1273
    %v1280 = vmul.f32 %v567, %v1263
    %v1281 = vmul.f32 %v568, %v1265
    %v1282 = vmul.f32 %v569, %v1267
    %v1283 = vmul.f32 %v570, %v1269
    %v1284 = vmul.f32 %v571, %v1271
    %v1285 = vmul.f32 %v572, %v1273
    %1286 = vst [vmem:[#allocation2] sm:$0xff] %v1274
    %1287 = vst [vmem:[#allocation2 + $0x8] sm:$0xff] %v1275
    %1288 = vst [vmem:[#allocation2 + $0x10] sm:$0xff] %v1276
    %1289 = vst [vmem:[#allocation2 + $0x18] sm:$0xff] %v1277
    %1290 = vst [vmem:[#allocation2 + $0x20] sm:$0xff] %v1278
    %1291 = vst [vmem:[#allocation2 + $0x28] sm:$0xff] %v1279
    %1292 = vst [vmem:[#allocation2 + $0x60] sm:$0xff] %v1280
    %1293 = vst [vmem:[#allocation2 + $0x68] sm:$0xff] %v1281
    %1294 = vst [vmem:[#allocation2 + $0x70] sm:$0xff] %v1282
    %1295 = vst [vmem:[#allocation2 + $0x78] sm:$0xff] %v1283
    %1296 = vst [vmem:[#allocation2 + $0x80] sm:$0xff] %v1284
    %1297 = vst [vmem:[#allocation2 + $0x88] sm:$0xff] %v1285
    %v1298 = vmul.f32 %v583, %v1263
    %v1299 = vmul.f32 %v584, %v1265
    %v1300 = vmul.f32 %v585, %v1267
    %v1301 = vmul.f32 %v586, %v1269
    %v1302 = vmul.f32 %v587, %v1271
    %v1303 = vmul.f32 %v588, %v1273
    %v1304 = vmul.f32 %v589, %v1263
    %v1305 = vmul.f32 %v590, %v1265
    %v1306 = vmul.f32 %v591, %v1267
    %v1307 = vmul.f32 %v592, %v1269
    %v1308 = vmul.f32 %v593, %v1271
    %v1309 = vmul.f32 %v594, %v1273
    %1310 = vst [vmem:[#allocation2 + $0xc0] sm:$0xff] %v1298
    %1311 = vst [vmem:[#allocation2 + $0xc8] sm:$0xff] %v1299
    %1312 = vst [vmem:[#allocation2 + $0xd0] sm:$0xff] %v1300
    %1313 = vst [vmem:[#allocation2 + $0xd8] sm:$0xff] %v1301
    %1314 = vst [vmem:[#allocation2 + $0xe0] sm:$0xff] %v1302
    %1315 = vst [vmem:[#allocation2 + $0xe8] sm:$0xff] %v1303
    %1316 = vst [vmem:[#allocation2 + $0x120] sm:$0xff] %v1304
    %1317 = vst [vmem:[#allocation2 + $0x128] sm:$0xff] %v1305
    %1318 = vst [vmem:[#allocation2 + $0x130] sm:$0xff] %v1306
    %1319 = vst [vmem:[#allocation2 + $0x138] sm:$0xff] %v1307
    %1320 = vst [vmem:[#allocation2 + $0x140] sm:$0xff] %v1308
    %1321 = vst [vmem:[#allocation2 + $0x148] sm:$0xff] %v1309
    %v1322 = vld [vmem:[%s172] sm:$0xff]
    %v1323 = vld [vmem:[%s172 + $0x8] sm:$0xff]
    %v1324 = vld [vmem:[%s172 + $0x10] sm:$0xff]
    %v1325 = vld [vmem:[%s172 + $0x18] sm:$0xff]
    %v1326 = vld [vmem:[%s172 + $0x20] sm:$0xff]
    %v1327 = vld [vmem:[%s172 + $0x28] sm:$0xff]
    %v1328 = vld [vmem:[%s172 + $0x30] sm:$0xff]
    %v1329 = vld [vmem:[%s172 + $0x38] sm:$0xff]
    %v1330 = vld [vmem:[%s172 + $0x40] sm:$0xff]
    %v1331 = vld [vmem:[%s172 + $0x48] sm:$0xff]
    %v1332 = vld [vmem:[%s172 + $0x50] sm:$0xff]
    %v1333 = vld [vmem:[%s172 + $0x58] sm:$0xff]
    %v1334 = vld [vmem:[%s185] sm:$0xff]
    %v1335 = vld [vmem:[%s185 + $0x8] sm:$0xff]
    %v1336 = vld [vmem:[%s185 + $0x10] sm:$0xff]
    %v1337 = vld [vmem:[%s185 + $0x18] sm:$0xff]
    %v1338 = vld [vmem:[%s185 + $0x20] sm:$0xff]
    %v1339 = vld [vmem:[%s185 + $0x28] sm:$0xff]
    %v1340 = vld [vmem:[%s185 + $0x30] sm:$0xff]
    %v1341 = vld [vmem:[%s185 + $0x38] sm:$0xff]
    %v1342 = vld [vmem:[%s185 + $0x40] sm:$0xff]
    %v1343 = vld [vmem:[%s185 + $0x48] sm:$0xff]
    %v1344 = vld [vmem:[%s185 + $0x50] sm:$0xff]
    %v1345 = vld [vmem:[%s185 + $0x58] sm:$0xff]
    %1346 = vset.pattern.permute.xlu0 1
    %1347 = vperm.xlu0 %1346, %v536
    %v1348 = vpop.permute.xlu0 %1347
    %1350 = vset.pattern.permute.xlu0 1
    %1351 = vperm.xlu0 %1350, %v538
    %v1352 = vpop.permute.xlu0 %1351
    %v1354 = vmul.f32 %v1322, %v1348
    %v1355 = vmul.f32 %v1323, %v1348
    %v1356 = vmul.f32 %v1324, %v1348
    %v1357 = vmul.f32 %v1325, %v1348
    %v1358 = vmul.f32 %v1326, %v1348
    %v1359 = vmul.f32 %v1327, %v1348
    %v1360 = vmul.f32 %v1328, %v1352
    %v1361 = vmul.f32 %v1329, %v1352
    %v1362 = vmul.f32 %v1330, %v1352
    %v1363 = vmul.f32 %v1331, %v1352
    %v1364 = vmul.f32 %v1332, %v1352
    %v1365 = vmul.f32 %v1333, %v1352
    %1366 = vset.pattern.permute.xlu0 1
    %1367 = vperm.xlu0 %1366, %v540
    %v1368 = vpop.permute.xlu0 %1367
    %1370 = vset.pattern.permute.xlu0 1
    %1371 = vperm.xlu0 %1370, %v542
    %v1372 = vpop.permute.xlu0 %1371
    %v1374 = vmul.f32 %v1334, %v1368
    %v1375 = vmul.f32 %v1335, %v1368
    %v1376 = vmul.f32 %v1336, %v1368
    %v1377 = vmul.f32 %v1337, %v1368
    %v1378 = vmul.f32 %v1338, %v1368
    %v1379 = vmul.f32 %v1339, %v1368
    %v1380 = vmul.f32 %v1340, %v1372
    %v1381 = vmul.f32 %v1341, %v1372
    %v1382 = vmul.f32 %v1342, %v1372
    %v1383 = vmul.f32 %v1343, %v1372
    %v1384 = vmul.f32 %v1344, %v1372
    %v1385 = vmul.f32 %v1345, %v1372
    %v1386 = vadd.f32 %v1354, %v1360
    %v1387 = vrot.slane %v1386, 4
    %v1388 = vadd.f32 %v1386, %v1387
    %v1389 = vrot.slane %v1388, 2
    %v1390 = vadd.f32 %v1388, %v1389
    %v1391 = vrot.slane %v1390, 1
    %v1392 = vadd.f32 %v1390, %v1391
    %v1393 = vadd.f32 %v1355, %v1361
    %v1394 = vrot.slane %v1393, 4
    %v1395 = vadd.f32 %v1393, %v1394
    %v1396 = vrot.slane %v1395, 2
    %v1397 = vadd.f32 %v1395, %v1396
    %v1398 = vrot.slane %v1397, 1
    %v1399 = vadd.f32 %v1397, %v1398
    %v1400 = vadd.f32 %v1356, %v1362
    %v1401 = vrot.slane %v1400, 4
    %v1402 = vadd.f32 %v1400, %v1401
    %v1403 = vrot.slane %v1402, 2
    %v1404 = vadd.f32 %v1402, %v1403
    %v1405 = vrot.slane %v1404, 1
    %v1406 = vadd.f32 %v1404, %v1405
    %v1407 = vadd.f32 %v1357, %v1363
    %v1408 = vrot.slane %v1407, 4
    %v1409 = vadd.f32 %v1407, %v1408
    %v1410 = vrot.slane %v1409, 2
    %v1411 = vadd.f32 %v1409, %v1410
    %v1412 = vrot.slane %v1411, 1
    %v1413 = vadd.f32 %v1411, %v1412
    %v1414 = vadd.f32 %v1358, %v1364
    %v1415 = vrot.slane %v1414, 4
    %v1416 = vadd.f32 %v1414, %v1415
    %v1417 = vrot.slane %v1416, 2
    %v1418 = vadd.f32 %v1416, %v1417
    %v1419 = vrot.slane %v1418, 1
    %v1420 = vadd.f32 %v1418, %v1419
    %v1421 = vadd.f32 %v1359, %v1365
    %v1422 = vrot.slane %v1421, 4
    %v1423 = vadd.f32 %v1421, %v1422
    %v1424 = vrot.slane %v1423, 2
    %v1425 = vadd.f32 %v1423, %v1424
    %v1426 = vrot.slane %v1425, 1
    %v1427 = vadd.f32 %v1425, %v1426
    %v1428 = vadd.f32 %v1374, %v1380
    %v1429 = vrot.slane %v1428, 4
    %v1430 = vadd.f32 %v1428, %v1429
    %v1431 = vrot.slane %v1430, 2
    %v1432 = vadd.f32 %v1430, %v1431
    %v1433 = vrot.slane %v1432, 1
    %v1434 = vadd.f32 %v1432, %v1433
    %v1435 = vadd.f32 %v1375, %v1381
    %v1436 = vrot.slane %v1435, 4
    %v1437 = vadd.f32 %v1435, %v1436
    %v1438 = vrot.slane %v1437, 2
    %v1439 = vadd.f32 %v1437, %v1438
    %v1440 = vrot.slane %v1439, 1
    %v1441 = vadd.f32 %v1439, %v1440
    %v1442 = vadd.f32 %v1376, %v1382
    %v1443 = vrot.slane %v1442, 4
    %v1444 = vadd.f32 %v1442, %v1443
    %v1445 = vrot.slane %v1444, 2
    %v1446 = vadd.f32 %v1444, %v1445
    %v1447 = vrot.slane %v1446, 1
    %v1448 = vadd.f32 %v1446, %v1447
    %v1449 = vadd.f32 %v1377, %v1383
    %v1450 = vrot.slane %v1449, 4
    %v1451 = vadd.f32 %v1449, %v1450
    %v1452 = vrot.slane %v1451, 2
    %v1453 = vadd.f32 %v1451, %v1452
    %v1454 = vrot.slane %v1453, 1
    %v1455 = vadd.f32 %v1453, %v1454
    %v1456 = vadd.f32 %v1378, %v1384
    %v1457 = vrot.slane %v1456, 4
    %v1458 = vadd.f32 %v1456, %v1457
    %v1459 = vrot.slane %v1458, 2
    %v1460 = vadd.f32 %v1458, %v1459
    %v1461 = vrot.slane %v1460, 1
    %v1462 = vadd.f32 %v1460, %v1461
    %v1463 = vadd.f32 %v1379, %v1385
    %v1464 = vrot.slane %v1463, 4
    %v1465 = vadd.f32 %v1463, %v1464
    %v1466 = vrot.slane %v1465, 2
    %v1467 = vadd.f32 %v1465, %v1466
    %v1468 = vrot.slane %v1467, 1
    %v1469 = vadd.f32 %v1467, %v1468
    %v1470 = vadd.f32 %v1392, %v1434
    %v1471 = vadd.f32 %v1399, %v1441
    %v1472 = vadd.f32 %v1406, %v1448
    %v1473 = vadd.f32 %v1413, %v1455
    %v1474 = vadd.f32 %v1420, %v1462
    %v1475 = vadd.f32 %v1427, %v1469
    %v1476 = vmul.f32 %v1470, 0.03125
    %v1477 = vmul.f32 %v1471, 0.03125
    %v1478 = vmul.f32 %v1472, 0.03125
    %v1479 = vmul.f32 %v1473, 0.03125
    %v1480 = vmul.f32 %v1474, 0.03125
    %v1481 = vmul.f32 %v1475, 0.03125
    %v1482 = vmax.f32 %v1354, %v1360
    %v1483 = vrot.slane %v1482, 4
    %v1484 = vmax.f32 %v1482, %v1483
    %v1485 = vrot.slane %v1484, 2
    %v1486 = vmax.f32 %v1484, %v1485
    %v1487 = vrot.slane %v1486, 1
    %v1488 = vmax.f32 %v1486, %v1487
    %v1489 = vmax.f32 %v1355, %v1361
    %v1490 = vrot.slane %v1489, 4
    %v1491 = vmax.f32 %v1489, %v1490
    %v1492 = vrot.slane %v1491, 2
    %v1493 = vmax.f32 %v1491, %v1492
    %v1494 = vrot.slane %v1493, 1
    %v1495 = vmax.f32 %v1493, %v1494
    %v1496 = vmax.f32 %v1356, %v1362
    %v1497 = vrot.slane %v1496, 4
    %v1498 = vmax.f32 %v1496, %v1497
    %v1499 = vrot.slane %v1498, 2
    %v1500 = vmax.f32 %v1498, %v1499
    %v1501 = vrot.slane %v1500, 1
    %v1502 = vmax.f32 %v1500, %v1501
    %v1503 = vmax.f32 %v1357, %v1363
    %v1504 = vrot.slane %v1503, 4
    %v1505 = vmax.f32 %v1503, %v1504
    %v1506 = vrot.slane %v1505, 2
    %v1507 = vmax.f32 %v1505, %v1506
    %v1508 = vrot.slane %v1507, 1
    %v1509 = vmax.f32 %v1507, %v1508
    %v1510 = vmax.f32 %v1358, %v1364
    %v1511 = vrot.slane %v1510, 4
    %v1512 = vmax.f32 %v1510, %v1511
    %v1513 = vrot.slane %v1512, 2
    %v1514 = vmax.f32 %v1512, %v1513
    %v1515 = vrot.slane %v1514, 1
    %v1516 = vmax.f32 %v1514, %v1515
    %v1517 = vmax.f32 %v1359, %v1365
    %v1518 = vrot.slane %v1517, 4
    %v1519 = vmax.f32 %v1517, %v1518
    %v1520 = vrot.slane %v1519, 2
    %v1521 = vmax.f32 %v1519, %v1520
    %v1522 = vrot.slane %v1521, 1
    %v1523 = vmax.f32 %v1521, %v1522
    %v1524 = vmax.f32 %v1374, %v1380
    %v1525 = vrot.slane %v1524, 4
    %v1526 = vmax.f32 %v1524, %v1525
    %v1527 = vrot.slane %v1526, 2
    %v1528 = vmax.f32 %v1526, %v1527
    %v1529 = vrot.slane %v1528, 1
    %v1530 = vmax.f32 %v1528, %v1529
    %v1531 = vmax.f32 %v1375, %v1381
    %v1532 = vrot.slane %v1531, 4
    %v1533 = vmax.f32 %v1531, %v1532
    %v1534 = vrot.slane %v1533, 2
    %v1535 = vmax.f32 %v1533, %v1534
    %v1536 = vrot.slane %v1535, 1
    %v1537 = vmax.f32 %v1535, %v1536
    %v1538 = vmax.f32 %v1376, %v1382
    %v1539 = vrot.slane %v1538, 4
    %v1540 = vmax.f32 %v1538, %v1539
    %v1541 = vrot.slane %v1540, 2
    %v1542 = vmax.f32 %v1540, %v1541
    %v1543 = vrot.slane %v1542, 1
    %v1544 = vmax.f32 %v1542, %v1543
    %v1545 = vmax.f32 %v1377, %v1383
    %v1546 = vrot.slane %v1545, 4
    %v1547 = vmax.f32 %v1545, %v1546
    %v1548 = vrot.slane %v1547, 2
    %v1549 = vmax.f32 %v1547, %v1548
    %v1550 = vrot.slane %v1549, 1
    %v1551 = vmax.f32 %v1549, %v1550
    %v1552 = vmax.f32 %v1378, %v1384
    %v1553 = vrot.slane %v1552, 4
    %v1554 = vmax.f32 %v1552, %v1553
    %v1555 = vrot.slane %v1554, 2
    %v1556 = vmax.f32 %v1554, %v1555
    %v1557 = vrot.slane %v1556, 1
    %v1558 = vmax.f32 %v1556, %v1557
    %v1559 = vmax.f32 %v1379, %v1385
    %v1560 = vrot.slane %v1559, 4
    %v1561 = vmax.f32 %v1559, %v1560
    %v1562 = vrot.slane %v1561, 2
    %v1563 = vmax.f32 %v1561, %v1562
    %v1564 = vrot.slane %v1563, 1
    %v1565 = vmax.f32 %v1563, %v1564
    %v1566 = vmax.f32 %v1488, %v1530
    %v1567 = vmax.f32 %v1495, %v1537
    %v1568 = vmax.f32 %v1502, %v1544
    %v1569 = vmax.f32 %v1509, %v1551
    %v1570 = vmax.f32 %v1516, %v1558
    %v1571 = vmax.f32 %v1523, %v1565
    %v1572 = vsel %vm781, %v1476, %v1566
    %v1573 = vsel %vm781, %v1477, %v1567
    %v1574 = vsel %vm781, %v1478, %v1568
    %v1575 = vsel %vm781, %v1479, %v1569
    %v1576 = vsel %vm781, %v1480, %v1570
    %v1577 = vsel %vm781, %v1481, %v1571
    %1578 = vrot.lane.b32.xlu0 %v1572, 3
    %v1579 = vpop.permute.xlu0 %1578
    %1580 = vrot.lane.b32.xlu0 %v1573, 3
    %v1581 = vpop.permute.xlu0 %1580
    %1582 = vrot.lane.b32.xlu0 %v1574, 3
    %v1583 = vpop.permute.xlu0 %1582
    %1584 = vrot.lane.b32.xlu0 %v1575, 3
    %v1585 = vpop.permute.xlu0 %1584
    %1586 = vrot.lane.b32.xlu0 %v1576, 3
    %v1587 = vpop.permute.xlu0 %1586
    %1588 = vrot.lane.b32.xlu0 %v1577, 3
    %v1589 = vpop.permute.xlu0 %1588
    %v1590 = vsel %vm800, %v1587, %v1589
    %v1591 = vsel %vm800, %v1585, %v1587
    %v1592 = vsel %vm800, %v1583, %v1585
    %v1593 = vsel %vm800, %v1581, %v1583
    %v1594 = vsel %vm800, %v1579, %v1581
    %v1595 = vsel %vm800, %v1589, %v1579
    %v1596 = vsel %vm825, %v1595, 0.0
    %v1597 = vsel %vm826, %v1594, 0.0
    %v1598 = vsel %vm827, %v1593, 0.0
    %v1599 = vsel %vm828, %v1592, 0.0
    %v1600 = vsel %vm829, %v1591, 0.0
    %v1601 = vsel %vm830, %v1590, 0.0
    %v1602 = vmul.f32 %v1596, %v840
    %v1603 = vmul.f32 %v1597, %v840
    %v1604 = vmul.f32 %v1598, %v840
    %v1605 = vmul.f32 %v1599, %v840
    %v1606 = vmul.f32 %v1600, %v840
    %v1607 = vmul.f32 %v1601, %v840
    %v1608 = vadd.f32 %v1602, 0.0
    %v1609 = vadd.f32 %v1603, 0.0
    %v1610 = vadd.f32 %v1604, 0.0
    %v1611 = vadd.f32 %v1605, 0.0
    %v1612 = vadd.f32 %v1606, 0.0
    %v1613 = vadd.f32 %v1607, 0.0
    %1614 = vrot.lane.b32.xlu0 %v1572, 2
    %v1615 = vpop.permute.xlu0 %1614
    %1616 = vrot.lane.b32.xlu0 %v1573, 2
    %v1617 = vpop.permute.xlu0 %1616
    %1618 = vrot.lane.b32.xlu0 %v1574, 2
    %v1619 = vpop.permute.xlu0 %1618
    %1620 = vrot.lane.b32.xlu0 %v1575, 2
    %v1621 = vpop.permute.xlu0 %1620
    %1622 = vrot.lane.b32.xlu0 %v1576, 2
    %v1623 = vpop.permute.xlu0 %1622
    %1624 = vrot.lane.b32.xlu0 %v1577, 2
    %v1625 = vpop.permute.xlu0 %1624
    %v1626 = vsel %vm866, %v1623, %v1625
    %v1627 = vsel %vm866, %v1621, %v1623
    %v1628 = vsel %vm866, %v1619, %v1621
    %v1629 = vsel %vm866, %v1617, %v1619
    %v1630 = vsel %vm866, %v1615, %v1617
    %v1631 = vsel %vm866, %v1625, %v1615
    %v1632 = vsel %vm891, %v1631, 0.0
    %v1633 = vsel %vm892, %v1630, 0.0
    %v1634 = vsel %vm893, %v1629, 0.0
    %v1635 = vsel %vm894, %v1628, 0.0
    %v1636 = vsel %vm895, %v1627, 0.0
    %v1637 = vsel %vm896, %v1626, 0.0
    %v1638 = vmul.f32 %v1632, %v905
    %v1639 = vmul.f32 %v1633, %v905
    %v1640 = vmul.f32 %v1634, %v905
    %v1641 = vmul.f32 %v1635, %v905
    %v1642 = vmul.f32 %v1636, %v905
    %v1643 = vmul.f32 %v1637, %v905
    %v1644 = vadd.f32 %v1608, %v1638
    %v1645 = vadd.f32 %v1609, %v1639
    %v1646 = vadd.f32 %v1610, %v1640
    %v1647 = vadd.f32 %v1611, %v1641
    %v1648 = vadd.f32 %v1612, %v1642
    %v1649 = vadd.f32 %v1613, %v1643
    %1650 = vrot.lane.b32.xlu0 %v1572, 1
    %v1651 = vpop.permute.xlu0 %1650
    %1652 = vrot.lane.b32.xlu0 %v1573, 1
    %v1653 = vpop.permute.xlu0 %1652
    %1654 = vrot.lane.b32.xlu0 %v1574, 1
    %v1655 = vpop.permute.xlu0 %1654
    %1656 = vrot.lane.b32.xlu0 %v1575, 1
    %v1657 = vpop.permute.xlu0 %1656
    %1658 = vrot.lane.b32.xlu0 %v1576, 1
    %v1659 = vpop.permute.xlu0 %1658
    %1660 = vrot.lane.b32.xlu0 %v1577, 1
    %v1661 = vpop.permute.xlu0 %1660
    %v1662 = vsel %vm931, %v1659, %v1661
    %v1663 = vsel %vm931, %v1657, %v1659
    %v1664 = vsel %vm931, %v1655, %v1657
    %v1665 = vsel %vm931, %v1653, %v1655
    %v1666 = vsel %vm931, %v1651, %v1653
    %v1667 = vsel %vm931, %v1661, %v1651
    %v1668 = vsel %vm956, %v1667, 0.0
    %v1669 = vsel %vm957, %v1666, 0.0
    %v1670 = vsel %vm958, %v1665, 0.0
    %v1671 = vsel %vm959, %v1664, 0.0
    %v1672 = vsel %vm960, %v1663, 0.0
    %v1673 = vsel %vm961, %v1662, 0.0
    %v1674 = vmul.f32 %v1668, %v970
    %v1675 = vmul.f32 %v1669, %v970
    %v1676 = vmul.f32 %v1670, %v970
    %v1677 = vmul.f32 %v1671, %v970
    %v1678 = vmul.f32 %v1672, %v970
    %v1679 = vmul.f32 %v1673, %v970
    %v1680 = vadd.f32 %v1644, %v1674
    %v1681 = vadd.f32 %v1645, %v1675
    %v1682 = vadd.f32 %v1646, %v1676
    %v1683 = vadd.f32 %v1647, %v1677
    %v1684 = vadd.f32 %v1648, %v1678
    %v1685 = vadd.f32 %v1649, %v1679
    %v1686 = vmul.f32 %v1572, %v986
    %v1687 = vmul.f32 %v1573, %v986
    %v1688 = vmul.f32 %v1574, %v986
    %v1689 = vmul.f32 %v1575, %v986
    %v1690 = vmul.f32 %v1576, %v986
    %v1691 = vmul.f32 %v1577, %v986
    %v1692 = vadd.f32 %v1680, %v1686
    %v1693 = vadd.f32 %v1681, %v1687
    %v1694 = vadd.f32 %v1682, %v1688
    %v1695 = vadd.f32 %v1683, %v1689
    %v1696 = vadd.f32 %v1684, %v1690
    %v1697 = vadd.f32 %v1685, %v1691
    %1698 = vrot.lane.b32.xlu0 %v1572, 127
    %v1699 = vpop.permute.xlu0 %1698
    %1700 = vrot.lane.b32.xlu0 %v1573, 127
    %v1701 = vpop.permute.xlu0 %1700
    %1702 = vrot.lane.b32.xlu0 %v1574, 127
    %v1703 = vpop.permute.xlu0 %1702
    %1704 = vrot.lane.b32.xlu0 %v1575, 127
    %v1705 = vpop.permute.xlu0 %1704
    %1706 = vrot.lane.b32.xlu0 %v1576, 127
    %v1707 = vpop.permute.xlu0 %1706
    %1708 = vrot.lane.b32.xlu0 %v1577, 127
    %v1709 = vpop.permute.xlu0 %1708
    %v1710 = vsel %vm1012, %v1707, %v1709
    %v1711 = vsel %vm1012, %v1705, %v1707
    %v1712 = vsel %vm1012, %v1703, %v1705
    %v1713 = vsel %vm1012, %v1701, %v1703
    %v1714 = vsel %vm1012, %v1699, %v1701
    %v1715 = vsel %vm1012, %v1709, %v1699
    %v1716 = vsel %vm1037, %v1714, 0.0
    %v1717 = vsel %vm1038, %v1713, 0.0
    %v1718 = vsel %vm1039, %v1712, 0.0
    %v1719 = vsel %vm1040, %v1711, 0.0
    %v1720 = vsel %vm1041, %v1710, 0.0
    %v1721 = vsel %vm1042, %v1715, 0.0
    %v1722 = vmul.f32 %v1716, %v1051
    %v1723 = vmul.f32 %v1717, %v1051
    %v1724 = vmul.f32 %v1718, %v1051
    %v1725 = vmul.f32 %v1719, %v1051
    %v1726 = vmul.f32 %v1720, %v1051
    %v1727 = vmul.f32 %v1721, %v1051
    %v1728 = vadd.f32 %v1692, %v1722
    %v1729 = vadd.f32 %v1693, %v1723
    %v1730 = vadd.f32 %v1694, %v1724
    %v1731 = vadd.f32 %v1695, %v1725
    %v1732 = vadd.f32 %v1696, %v1726
    %v1733 = vadd.f32 %v1697, %v1727
    %1734 = vrot.lane.b32.xlu0 %v1572, 126
    %v1735 = vpop.permute.xlu0 %1734
    %1736 = vrot.lane.b32.xlu0 %v1573, 126
    %v1737 = vpop.permute.xlu0 %1736
    %1738 = vrot.lane.b32.xlu0 %v1574, 126
    %v1739 = vpop.permute.xlu0 %1738
    %1740 = vrot.lane.b32.xlu0 %v1575, 126
    %v1741 = vpop.permute.xlu0 %1740
    %1742 = vrot.lane.b32.xlu0 %v1576, 126
    %v1743 = vpop.permute.xlu0 %1742
    %1744 = vrot.lane.b32.xlu0 %v1577, 126
    %v1745 = vpop.permute.xlu0 %1744
    %v1746 = vsel %vm1077, %v1743, %v1745
    %v1747 = vsel %vm1077, %v1741, %v1743
    %v1748 = vsel %vm1077, %v1739, %v1741
    %v1749 = vsel %vm1077, %v1737, %v1739
    %v1750 = vsel %vm1077, %v1735, %v1737
    %v1751 = vsel %vm1077, %v1745, %v1735
    %v1752 = vsel %vm1102, %v1750, 0.0
    %v1753 = vsel %vm1103, %v1749, 0.0
    %v1754 = vsel %vm1104, %v1748, 0.0
    %v1755 = vsel %vm1105, %v1747, 0.0
    %v1756 = vsel %vm1106, %v1746, 0.0
    %v1757 = vsel %vm1107, %v1751, 0.0
    %v1758 = vmul.f32 %v1752, %v1116
    %v1759 = vmul.f32 %v1753, %v1116
    %v1760 = vmul.f32 %v1754, %v1116
    %v1761 = vmul.f32 %v1755, %v1116
    %v1762 = vmul.f32 %v1756, %v1116
    %v1763 = vmul.f32 %v1757, %v1116
    %v1764 = vadd.f32 %v1728, %v1758
    %v1765 = vadd.f32 %v1729, %v1759
    %v1766 = vadd.f32 %v1730, %v1760
    %v1767 = vadd.f32 %v1731, %v1761
    %v1768 = vadd.f32 %v1732, %v1762
    %v1769 = vadd.f32 %v1733, %v1763
    %1770 = vrot.lane.b32.xlu0 %v1572, 125
    %v1771 = vpop.permute.xlu0 %1770
    %1772 = vrot.lane.b32.xlu0 %v1573, 125
    %v1773 = vpop.permute.xlu0 %1772
    %1774 = vrot.lane.b32.xlu0 %v1574, 125
    %v1775 = vpop.permute.xlu0 %1774
    %1776 = vrot.lane.b32.xlu0 %v1575, 125
    %v1777 = vpop.permute.xlu0 %1776
    %1778 = vrot.lane.b32.xlu0 %v1576, 125
    %v1779 = vpop.permute.xlu0 %1778
    %1780 = vrot.lane.b32.xlu0 %v1577, 125
    %v1781 = vpop.permute.xlu0 %1780
    %v1782 = vsel %vm1142, %v1779, %v1781
    %v1783 = vsel %vm1142, %v1777, %v1779
    %v1784 = vsel %vm1142, %v1775, %v1777
    %v1785 = vsel %vm1142, %v1773, %v1775
    %v1786 = vsel %vm1142, %v1771, %v1773
    %v1787 = vsel %vm1142, %v1781, %v1771
    %v1788 = vsel %vm1167, %v1786, 0.0
    %v1789 = vsel %vm1168, %v1785, 0.0
    %v1790 = vsel %vm1169, %v1784, 0.0
    %v1791 = vsel %vm1170, %v1783, 0.0
    %v1792 = vsel %vm1171, %v1782, 0.0
    %v1793 = vsel %vm1172, %v1787, 0.0
    %v1794 = vmul.f32 %v1788, %v1181
    %v1795 = vmul.f32 %v1789, %v1181
    %v1796 = vmul.f32 %v1790, %v1181
    %v1797 = vmul.f32 %v1791, %v1181
    %v1798 = vmul.f32 %v1792, %v1181
    %v1799 = vmul.f32 %v1793, %v1181
    %v1800 = vadd.f32 %v1764, %v1794
    %v1801 = vadd.f32 %v1765, %v1795
    %v1802 = vadd.f32 %v1766, %v1796
    %v1803 = vadd.f32 %v1767, %v1797
    %v1804 = vadd.f32 %v1768, %v1798
    %v1805 = vadd.f32 %v1769, %v1799
    %v1806 = vsel %vm1195, %v1800, 0.0
    %v1807 = vrot.slane %v1806, 4
    %v1808 = vadd.f32 %v1806, %v1807
    %v1809 = vrot.slane %v1808, 2
    %v1810 = vadd.f32 %v1808, %v1809
    %v1811 = vrot.slane %v1810, 1
    %v1812 = vadd.f32 %v1810, %v1811
    %v1813 = vsel %vm1195, %v1801, 0.0
    %v1814 = vrot.slane %v1813, 4
    %v1815 = vadd.f32 %v1813, %v1814
    %v1816 = vrot.slane %v1815, 2
    %v1817 = vadd.f32 %v1815, %v1816
    %v1818 = vrot.slane %v1817, 1
    %v1819 = vadd.f32 %v1817, %v1818
    %v1820 = vsel %vm1195, %v1802, 0.0
    %v1821 = vrot.slane %v1820, 4
    %v1822 = vadd.f32 %v1820, %v1821
    %v1823 = vrot.slane %v1822, 2
    %v1824 = vadd.f32 %v1822, %v1823
    %v1825 = vrot.slane %v1824, 1
    %v1826 = vadd.f32 %v1824, %v1825
    %v1827 = vsel %vm1195, %v1803, 0.0
    %v1828 = vrot.slane %v1827, 4
    %v1829 = vadd.f32 %v1827, %v1828
    %v1830 = vrot.slane %v1829, 2
    %v1831 = vadd.f32 %v1829, %v1830
    %v1832 = vrot.slane %v1831, 1
    %v1833 = vadd.f32 %v1831, %v1832
    %v1834 = vsel %vm1195, %v1804, 0.0
    %v1835 = vrot.slane %v1834, 4
    %v1836 = vadd.f32 %v1834, %v1835
    %v1837 = vrot.slane %v1836, 2
    %v1838 = vadd.f32 %v1836, %v1837
    %v1839 = vrot.slane %v1838, 1
    %v1840 = vadd.f32 %v1838, %v1839
    %v1841 = vsel %vm1195, %v1805, 0.0
    %v1842 = vrot.slane %v1841, 4
    %v1843 = vadd.f32 %v1841, %v1842
    %v1844 = vrot.slane %v1843, 2
    %v1845 = vadd.f32 %v1843, %v1844
    %v1846 = vrot.slane %v1845, 1
    %v1847 = vadd.f32 %v1845, %v1846
    %v1848 = vxor.u32 %v1812, 2147483648
    %v1849 = vxor.u32 %v1819, 2147483648
    %v1850 = vxor.u32 %v1826, 2147483648
    %v1851 = vxor.u32 %v1833, 2147483648
    %v1852 = vxor.u32 %v1840, 2147483648
    %v1853 = vxor.u32 %v1847, 2147483648
    %v1854 = vmul.f32 %v1848, 1.442695
    %v1855 = vpow.pop %v1854
    %v1856 = vmul.f32 %v1849, 1.442695
    %v1857 = vpow.pop %v1856
    %v1858 = vmul.f32 %v1850, 1.442695
    %v1859 = vpow.pop %v1858
    %v1860 = vmul.f32 %v1851, 1.442695
    %v1861 = vpow.pop %v1860
    %v1862 = vmul.f32 %v1852, 1.442695
    %v1863 = vpow.pop %v1862
    %v1864 = vmul.f32 %v1853, 1.442695
    %v1865 = vpow.pop %v1864
    %v1866 = vadd.f32 %v1855, 1.0
    %v1867 = vadd.f32 %v1857, 1.0
    %v1868 = vadd.f32 %v1859, 1.0
    %v1869 = vadd.f32 %v1861, 1.0
    %v1870 = vadd.f32 %v1863, 1.0
    %v1871 = vadd.f32 %v1865, 1.0
    %v1872 = vrcp.pop %v1866
    %v1873 = vmul.f32 1.0, %v1872
    %v1874 = vrcp.pop %v1867
    %v1875 = vmul.f32 1.0, %v1874
    %v1876 = vrcp.pop %v1868
    %v1877 = vmul.f32 1.0, %v1876
    %v1878 = vrcp.pop %v1869
    %v1879 = vmul.f32 1.0, %v1878
    %v1880 = vrcp.pop %v1870
    %v1881 = vmul.f32 1.0, %v1880
    %v1882 = vrcp.pop %v1871
    %v1883 = vmul.f32 1.0, %v1882
    %v1884 = vmul.f32 %v1354, %v1873
    %v1885 = vmul.f32 %v1355, %v1875
    %v1886 = vmul.f32 %v1356, %v1877
    %v1887 = vmul.f32 %v1357, %v1879
    %v1888 = vmul.f32 %v1358, %v1881
    %v1889 = vmul.f32 %v1359, %v1883
    %v1890 = vmul.f32 %v1360, %v1873
    %v1891 = vmul.f32 %v1361, %v1875
    %v1892 = vmul.f32 %v1362, %v1877
    %v1893 = vmul.f32 %v1363, %v1879
    %v1894 = vmul.f32 %v1364, %v1881
    %v1895 = vmul.f32 %v1365, %v1883
    %1896 = vst [vmem:[#allocation2 + $0x30] sm:$0xff] %v1884
    %1897 = vst [vmem:[#allocation2 + $0x38] sm:$0xff] %v1885
    %1898 = vst [vmem:[#allocation2 + $0x40] sm:$0xff] %v1886
    %1899 = vst [vmem:[#allocation2 + $0x48] sm:$0xff] %v1887
    %1900 = vst [vmem:[#allocation2 + $0x50] sm:$0xff] %v1888
    %1901 = vst [vmem:[#allocation2 + $0x58] sm:$0xff] %v1889
    %1902 = vst [vmem:[#allocation2 + $0x90] sm:$0xff] %v1890
    %1903 = vst [vmem:[#allocation2 + $0x98] sm:$0xff] %v1891
    %1904 = vst [vmem:[#allocation2 + $0xa0] sm:$0xff] %v1892
    %1905 = vst [vmem:[#allocation2 + $0xa8] sm:$0xff] %v1893
    %1906 = vst [vmem:[#allocation2 + $0xb0] sm:$0xff] %v1894
    %1907 = vst [vmem:[#allocation2 + $0xb8] sm:$0xff] %v1895
    %v1908 = vmul.f32 %v1374, %v1873
    %v1909 = vmul.f32 %v1375, %v1875
    %v1910 = vmul.f32 %v1376, %v1877
    %v1911 = vmul.f32 %v1377, %v1879
    %v1912 = vmul.f32 %v1378, %v1881
    %v1913 = vmul.f32 %v1379, %v1883
    %v1914 = vmul.f32 %v1380, %v1873
    %v1915 = vmul.f32 %v1381, %v1875
    %v1916 = vmul.f32 %v1382, %v1877
    %v1917 = vmul.f32 %v1383, %v1879
    %v1918 = vmul.f32 %v1384, %v1881
    %v1919 = vmul.f32 %v1385, %v1883
    %1920 = vst [vmem:[#allocation2 + $0xf0] sm:$0xff] %v1908
    %1921 = vst [vmem:[#allocation2 + $0xf8] sm:$0xff] %v1909
    %1922 = vst [vmem:[#allocation2 + $0x100] sm:$0xff] %v1910
    %1923 = vst [vmem:[#allocation2 + $0x108] sm:$0xff] %v1911
    %1924 = vst [vmem:[#allocation2 + $0x110] sm:$0xff] %v1912
    %1925 = vst [vmem:[#allocation2 + $0x118] sm:$0xff] %v1913
    %1926 = vst [vmem:[#allocation2 + $0x150] sm:$0xff] %v1914
    %1927 = vst [vmem:[#allocation2 + $0x158] sm:$0xff] %v1915
    %1928 = vst [vmem:[#allocation2 + $0x160] sm:$0xff] %v1916
    %1929 = vst [vmem:[#allocation2 + $0x168] sm:$0xff] %v1917
    %1930 = vst [vmem:[#allocation2 + $0x170] sm:$0xff] %v1918
    %1931 = vst [vmem:[#allocation2 + $0x178] sm:$0xff] %v1919
    %v1932 = vld [vmem:[%s5] sm:$0xff]
    %v1933 = vld [vmem:[%s5 + $0x8] sm:$0xff]
    %v1934 = vld [vmem:[#allocation2] sm:$0xff]
    %v1935 = vld [vmem:[#allocation2 + $0x8] sm:$0xff]
    %v1936 = vld [vmem:[#allocation2 + $0x10] sm:$0xff]
    %v1937 = vld [vmem:[#allocation2 + $0x18] sm:$0xff]
    %v1938 = vld [vmem:[#allocation2 + $0x20] sm:$0xff]
    %v1939 = vld [vmem:[#allocation2 + $0x28] sm:$0xff]
    %v1940 = vld [vmem:[#allocation2 + $0x30] sm:$0xff]
    %v1941 = vld [vmem:[#allocation2 + $0x38] sm:$0xff]
    %v1942 = vld [vmem:[#allocation2 + $0x40] sm:$0xff]
    %v1943 = vld [vmem:[#allocation2 + $0x48] sm:$0xff]
    %v1944 = vld [vmem:[#allocation2 + $0x50] sm:$0xff]
    %v1945 = vld [vmem:[#allocation2 + $0x58] sm:$0xff]
    %v1946 = vld [vmem:[#allocation2 + $0x60] sm:$0xff]
    %v1947 = vld [vmem:[#allocation2 + $0x68] sm:$0xff]
    %v1948 = vld [vmem:[#allocation2 + $0x70] sm:$0xff]
    %v1949 = vld [vmem:[#allocation2 + $0x78] sm:$0xff]
    %v1950 = vld [vmem:[#allocation2 + $0x80] sm:$0xff]
    %v1951 = vld [vmem:[#allocation2 + $0x88] sm:$0xff]
    %v1952 = vld [vmem:[#allocation2 + $0x90] sm:$0xff]
    %v1953 = vld [vmem:[#allocation2 + $0x98] sm:$0xff]
    %v1954 = vld [vmem:[#allocation2 + $0xa0] sm:$0xff]
    %v1955 = vld [vmem:[#allocation2 + $0xa8] sm:$0xff]
    %v1956 = vld [vmem:[#allocation2 + $0xb0] sm:$0xff]
    %v1957 = vld [vmem:[#allocation2 + $0xb8] sm:$0xff]
    %v1958 = vld [vmem:[#allocation2 + $0xc0] sm:$0xff]
    %v1959 = vld [vmem:[#allocation2 + $0xc8] sm:$0xff]
    %v1960 = vld [vmem:[#allocation2 + $0xd0] sm:$0xff]
    %v1961 = vld [vmem:[#allocation2 + $0xd8] sm:$0xff]
    %v1962 = vld [vmem:[#allocation2 + $0xe0] sm:$0xff]
    %v1963 = vld [vmem:[#allocation2 + $0xe8] sm:$0xff]
    %v1964 = vld [vmem:[#allocation2 + $0xf0] sm:$0xff]
    %v1965 = vld [vmem:[#allocation2 + $0xf8] sm:$0xff]
    %v1966 = vld [vmem:[#allocation2 + $0x100] sm:$0xff]
    %v1967 = vld [vmem:[#allocation2 + $0x108] sm:$0xff]
    %v1968 = vld [vmem:[#allocation2 + $0x110] sm:$0xff]
    %v1969 = vld [vmem:[#allocation2 + $0x118] sm:$0xff]
    %v1970 = vld [vmem:[#allocation2 + $0x120] sm:$0xff]
    %v1971 = vld [vmem:[#allocation2 + $0x128] sm:$0xff]
    %v1972 = vld [vmem:[#allocation2 + $0x130] sm:$0xff]
    %v1973 = vld [vmem:[#allocation2 + $0x138] sm:$0xff]
    %v1974 = vld [vmem:[#allocation2 + $0x140] sm:$0xff]
    %v1975 = vld [vmem:[#allocation2 + $0x148] sm:$0xff]
    %v1976 = vld [vmem:[#allocation2 + $0x150] sm:$0xff]
    %v1977 = vld [vmem:[#allocation2 + $0x158] sm:$0xff]
    %v1978 = vld [vmem:[#allocation2 + $0x160] sm:$0xff]
    %v1979 = vld [vmem:[#allocation2 + $0x168] sm:$0xff]
    %v1980 = vld [vmem:[#allocation2 + $0x170] sm:$0xff]
    %v1981 = vld [vmem:[#allocation2 + $0x178] sm:$0xff]
    %v1982 = vld [vmem:[%s6] sm:$0xff]
    %v1983 = vld [vmem:[%s6 + $0x8] sm:$0xff]
    %1985 = vset.pattern.permute.xlu0 0
    %1986 = vperm.xlu0 %1985, %v1982
    %v1987 = vpop.permute.xlu0 %1986
    %1990 = vset.pattern.permute.xlu0 0
    %1991 = vperm.xlu0 %1990, %v1983
    %v1992 = vpop.permute.xlu0 %1991
    %v1995 = vsel %vm322, %v1932, 0
    %v1998 = vsel %vm322, %v1933, 0
    %2000 = vmatprep.subr.mxu0 %v1935
    %2001 = vmatpush1.msra.mxu0 %v1934
    %2002 = vmatprep.subr.mxu0 %v1947
    %2003 = vmatpush1.msra.mxu0 %v1946
    %2004 = vmatprep.subr.mxu0 %v1959
    %2005 = vmatpush1.msra.mxu0 %v1958
    %2006 = vmatprep.subr.mxu0 %v1971
    %2007 = vmatpush1.msra.mxu0 %v1970
    %2008 = vmatprep.subr.mxu0 0.0
    %2009 = vmatpush1.msra.mxu0 0.0
    %2010 = vmatprep.subr.mxu0 0.0
    %2011 = vmatpush1.msra.mxu0 0.0
    %2012 = vmatprep.subr.mxu0 0.0
    %2013 = vmatpush1.msra.mxu0 0.0
    %2014 = vmatprep.subr.mxu0 0.0
    %2015 = vmatpush1.msra.mxu0 0.0
    %2016 = vmatprep.subr.mxu0 0.0
    %2017 = vmatpush1.msra.mxu0 0.0
    %2018 = vmatprep.subr.mxu0 0.0
    %2019 = vmatpush1.msra.mxu0 0.0
    %2020 = vmatprep.subr.mxu0 0.0
    %2021 = vmatpush1.msra.mxu0 0.0
    %2022 = vmatprep.subr.mxu0 0.0
    %2023 = vmatpush1.msra.mxu0 0.0
    %2024 = vmatprep.subr.mxu0 0.0
    %2025 = vmatpush1.msra.mxu0 0.0
    %2026 = vmatprep.subr.mxu0 0.0
    %2027 = vmatpush1.msra.mxu0 0.0
    %2028 = vmatprep.subr.mxu0 0.0
    %2029 = vmatpush1.msra.mxu0 0.0
    %2030 = vmatprep.subr.mxu0 0.0
    %2031 = vmatpush1.msra.mxu0 0.0
    %2032 = vmatprep.subr.mxu0 0.0
    %2033 = vmatpush1.msra.mxu0 0.0
    %2034 = vmatprep.subr.mxu0 0.0
    %2035 = vmatpush1.msra.mxu0 0.0
    %2036 = vmatprep.subr.mxu0 0.0
    %2037 = vmatpush1.msra.mxu0 0.0
    %2038 = vmatprep.subr.mxu0 0.0
    %2039 = vmatpush1.msra.mxu0 0.0
    %2040 = vmatprep.subr.mxu0 0.0
    %2041 = vmatpush1.msra.mxu0 0.0
    %2042 = vmatprep.subr.mxu0 0.0
    %2043 = vmatpush1.msra.mxu0 0.0
    %2044 = vmatprep.subr.mxu0 0.0
    %2045 = vmatpush1.msra.mxu0 0.0
    %2046 = vmatprep.subr.mxu0 0.0
    %2047 = vmatpush1.msra.mxu0 0.0
    %2048 = vmatprep.subr.mxu0 0.0
    %2049 = vmatpush1.msra.mxu0 0.0
    %2050 = vmatprep.subr.mxu0 0.0
    %2051 = vmatpush1.msra.mxu0 0.0
    %2052 = vmatprep.subr.mxu0 0.0
    %2053 = vmatpush1.msra.mxu0 0.0
    %2054 = vmatprep.subr.mxu0 0.0
    %2055 = vmatpush1.msra.mxu0 0.0
    %2056 = vmatprep.subr.mxu0 0.0
    %2057 = vmatpush1.msra.mxu0 0.0
    %2058 = vmatprep.subr.mxu0 0.0
    %2059 = vmatpush1.msra.mxu0 0.0
    %2060 = vmatprep.subr.mxu0 0.0
    %2061 = vmatpush1.msra.mxu0 0.0
    %2062 = vmatprep.subr.mxu0 0.0
    %2063 = vmatpush1.msra.mxu0 0.0
    %2064 = vmatprep.mubr.f32.mxu0 0.0
    %2065 = vmatmul.mubr.f32.gmra.mrb[0].mxu0 %v1995
    %v2066 = vpop.f32.mrb[0].mxu0
    %v2067 = vadd.f32 %v1987, %v2066
    %v2068 = vpop.f32.mrb[0].mxu0
    %v2069 = vadd.f32 %v1987, %v2068
    %2070 = vmatprep.mubr.f32.mxu0 0.0
    %2071 = vmatmul.mubr.f32.gmra.mrb[0].mxu0 %v1998
    %v2072 = vpop.f32.mrb[0].mxu0
    %v2073 = vadd.f32 %v1992, %v2072
    %v2074 = vpop.f32.mrb[0].mxu0
    %v2075 = vadd.f32 %v1992, %v2074
    %2076 = vdwg.mxu0
    %2077 = vmatprep.subr.mxu0 %v1937
    %2078 = vmatpush1.msra.mxu0 %v1936
    %2079 = vmatprep.subr.mxu0 %v1949
    %2080 = vmatpush1.msra.mxu0 %v1948
    %2081 = vmatprep.subr.mxu0 %v1961
    %2082 = vmatpush1.msra.mxu0 %v1960
    %2083 = vmatprep.subr.mxu0 %v1973
    %2084 = vmatpush1.msra.mxu0 %v1972
    %2085 = vmatprep.subr.mxu0 0.0
    %2086 = vmatpush1.msra.mxu0 0.0
    %2087 = vmatprep.subr.mxu0 0.0
    %2088 = vmatpush1.msra.mxu0 0.0
    %2089 = vmatprep.subr.mxu0 0.0
    %2090 = vmatpush1.msra.mxu0 0.0
    %2091 = vmatprep.subr.mxu0 0.0
    %2092 = vmatpush1.msra.mxu0 0.0
    %2093 = vmatprep.subr.mxu0 0.0
    %2094 = vmatpush1.msra.mxu0 0.0
    %2095 = vmatprep.subr.mxu0 0.0
    %2096 = vmatpush1.msra.mxu0 0.0
    %2097 = vmatprep.subr.mxu0 0.0
    %2098 = vmatpush1.msra.mxu0 0.0
    %2099 = vmatprep.subr.mxu0 0.0
    %2100 = vmatpush1.msra.mxu0 0.0
    %2101 = vmatprep.subr.mxu0 0.0
    %2102 = vmatpush1.msra.mxu0 0.0
    %2103 = vmatprep.subr.mxu0 0.0
    %2104 = vmatpush1.msra.mxu0 0.0
    %2105 = vmatprep.subr.mxu0 0.0
    %2106 = vmatpush1.msra.mxu0 0.0
    %2107 = vmatprep.subr.mxu0 0.0
    %2108 = vmatpush1.msra.mxu0 0.0
    %2109 = vmatprep.subr.mxu0 0.0
    %2110 = vmatpush1.msra.mxu0 0.0
    %2111 = vmatprep.subr.mxu0 0.0
    %2112 = vmatpush1.msra.mxu0 0.0
    %2113 = vmatprep.subr.mxu0 0.0
    %2114 = vmatpush1.msra.mxu0 0.0
    %2115 = vmatprep.subr.mxu0 0.0
    %2116 = vmatpush1.msra.mxu0 0.0
    %2117 = vmatprep.subr.mxu0 0.0
    %2118 = vmatpush1.msra.mxu0 0.0
    %2119 = vmatprep.subr.mxu0 0.0
    %2120 = vmatpush1.msra.mxu0 0.0
    %2121 = vmatprep.subr.mxu0 0.0
    %2122 = vmatpush1.msra.mxu0 0.0
    %2123 = vmatprep.subr.mxu0 0.0
    %2124 = vmatpush1.msra.mxu0 0.0
    %2125 = vmatprep.subr.mxu0 0.0
    %2126 = vmatpush1.msra.mxu0 0.0
    %2127 = vmatprep.subr.mxu0 0.0
    %2128 = vmatpush1.msra.mxu0 0.0
    %2129 = vmatprep.subr.mxu0 0.0
    %2130 = vmatpush1.msra.mxu0 0.0
    %2131 = vmatprep.subr.mxu0 0.0
    %2132 = vmatpush1.msra.mxu0 0.0
    %2133 = vmatprep.subr.mxu0 0.0
    %2134 = vmatpush1.msra.mxu0 0.0
    %2135 = vmatprep.subr.mxu0 0.0
    %2136 = vmatpush1.msra.mxu0 0.0
    %2137 = vmatprep.subr.mxu0 0.0
    %2138 = vmatpush1.msra.mxu0 0.0
    %2139 = vmatprep.subr.mxu0 0.0
    %2140 = vmatpush1.msra.mxu0 0.0
    %2141 = vmatprep.mubr.f32.mxu0 0.0
    %2142 = vmatmul.mubr.f32.gmra.mrb[0].mxu0 %v1995
    %v2143 = vpop.f32.mrb[0].mxu0
    %v2144 = vadd.f32 %v1987, %v2143
    %v2145 = vpop.f32.mrb[0].mxu0
    %v2146 = vadd.f32 %v1987, %v2145
    %2147 = vmatprep.mubr.f32.mxu0 0.0
    %2148 = vmatmul.mubr.f32.gmra.mrb[0].mxu0 %v1998
    %v2149 = vpop.f32.mrb[0].mxu0
    %v2150 = vadd.f32 %v1992, %v2149
    %v2151 = vpop.f32.mrb[0].mxu0
    %v2152 = vadd.f32 %v1992, %v2151
    %2153 = vdwg.mxu0
    %2154 = vmatprep.subr.mxu0 %v1939
    %2155 = vmatpush1.msra.mxu0 %v1938
    %2156 = vmatprep.subr.mxu0 %v1951
    %2157 = vmatpush1.msra.mxu0 %v1950
    %2158 = vmatprep.subr.mxu0 %v1963
    %2159 = vmatpush1.msra.mxu0 %v1962
    %2160 = vmatprep.subr.mxu0 %v1975
    %2161 = vmatpush1.msra.mxu0 %v1974
    %2162 = vmatprep.subr.mxu0 0.0
    %2163 = vmatpush1.msra.mxu0 0.0
    %2164 = vmatprep.subr.mxu0 0.0
    %2165 = vmatpush1.msra.mxu0 0.0
    %2166 = vmatprep.subr.mxu0 0.0
    %2167 = vmatpush1.msra.mxu0 0.0
    %2168 = vmatprep.subr.mxu0 0.0
    %2169 = vmatpush1.msra.mxu0 0.0
    %2170 = vmatprep.subr.mxu0 0.0
    %2171 = vmatpush1.msra.mxu0 0.0
    %2172 = vmatprep.subr.mxu0 0.0
    %2173 = vmatpush1.msra.mxu0 0.0
    %2174 = vmatprep.subr.mxu0 0.0
    %2175 = vmatpush1.msra.mxu0 0.0
    %2176 = vmatprep.subr.mxu0 0.0
    %2177 = vmatpush1.msra.mxu0 0.0
    %2178 = vmatprep.subr.mxu0 0.0
    %2179 = vmatpush1.msra.mxu0 0.0
    %2180 = vmatprep.subr.mxu0 0.0
    %2181 = vmatpush1.msra.mxu0 0.0
    %2182 = vmatprep.subr.mxu0 0.0
    %2183 = vmatpush1.msra.mxu0 0.0
    %2184 = vmatprep.subr.mxu0 0.0
    %2185 = vmatpush1.msra.mxu0 0.0
    %2186 = vmatprep.subr.mxu0 0.0
    %2187 = vmatpush1.msra.mxu0 0.0
    %2188 = vmatprep.subr.mxu0 0.0
    %2189 = vmatpush1.msra.mxu0 0.0
    %2190 = vmatprep.subr.mxu0 0.0
    %2191 = vmatpush1.msra.mxu0 0.0
    %2192 = vmatprep.subr.mxu0 0.0
    %2193 = vmatpush1.msra.mxu0 0.0
    %2194 = vmatprep.subr.mxu0 0.0
    %2195 = vmatpush1.msra.mxu0 0.0
    %2196 = vmatprep.subr.mxu0 0.0
    %2197 = vmatpush1.msra.mxu0 0.0
    %2198 = vmatprep.subr.mxu0 0.0
    %2199 = vmatpush1.msra.mxu0 0.0
    %2200 = vmatprep.subr.mxu0 0.0
    %2201 = vmatpush1.msra.mxu0 0.0
    %2202 = vmatprep.subr.mxu0 0.0
    %2203 = vmatpush1.msra.mxu0 0.0
    %2204 = vmatprep.subr.mxu0 0.0
    %2205 = vmatpush1.msra.mxu0 0.0
    %2206 = vmatprep.subr.mxu0 0.0
    %2207 = vmatpush1.msra.mxu0 0.0
    %2208 = vmatprep.subr.mxu0 0.0
    %2209 = vmatpush1.msra.mxu0 0.0
    %2210 = vmatprep.subr.mxu0 0.0
    %2211 = vmatpush1.msra.mxu0 0.0
    %2212 = vmatprep.subr.mxu0 0.0
    %2213 = vmatpush1.msra.mxu0 0.0
    %2214 = vmatprep.subr.mxu0 0.0
    %2215 = vmatpush1.msra.mxu0 0.0
    %2216 = vmatprep.subr.mxu0 0.0
    %2217 = vmatpush1.msra.mxu0 0.0
    %2218 = vmatprep.mubr.f32.mxu0 0.0
    %2219 = vmatmul.mubr.f32.gmra.mrb[0].mxu0 %v1995
    %v2220 = vpop.f32.mrb[0].mxu0
    %v2221 = vadd.f32 %v1987, %v2220
    %v2222 = vpop.f32.mrb[0].mxu0
    %v2223 = vadd.f32 %v1987, %v2222
    %2224 = vmatprep.mubr.f32.mxu0 0.0
    %2225 = vmatmul.mubr.f32.gmra.mrb[0].mxu0 %v1998
    %v2226 = vpop.f32.mrb[0].mxu0
    %v2227 = vadd.f32 %v1992, %v2226
    %v2228 = vpop.f32.mrb[0].mxu0
    %v2229 = vadd.f32 %v1992, %v2228
    %2230 = vdwg.mxu0
    %2231 = vmatprep.subr.mxu0 %v1941
    %2232 = vmatpush1.msra.mxu0 %v1940
    %2233 = vmatprep.subr.mxu0 %v1953
    %2234 = vmatpush1.msra.mxu0 %v1952
    %2235 = vmatprep.subr.mxu0 %v1965
    %2236 = vmatpush1.msra.mxu0 %v1964
    %2237 = vmatprep.subr.mxu0 %v1977
    %2238 = vmatpush1.msra.mxu0 %v1976
    %2239 = vmatprep.subr.mxu0 0.0
    %2240 = vmatpush1.msra.mxu0 0.0
    %2241 = vmatprep.subr.mxu0 0.0
    %2242 = vmatpush1.msra.mxu0 0.0
    %2243 = vmatprep.subr.mxu0 0.0
    %2244 = vmatpush1.msra.mxu0 0.0
    %2245 = vmatprep.subr.mxu0 0.0
    %2246 = vmatpush1.msra.mxu0 0.0
    %2247 = vmatprep.subr.mxu0 0.0
    %2248 = vmatpush1.msra.mxu0 0.0
    %2249 = vmatprep.subr.mxu0 0.0
    %2250 = vmatpush1.msra.mxu0 0.0
    %2251 = vmatprep.subr.mxu0 0.0
    %2252 = vmatpush1.msra.mxu0 0.0
    %2253 = vmatprep.subr.mxu0 0.0
    %2254 = vmatpush1.msra.mxu0 0.0
    %2255 = vmatprep.subr.mxu0 0.0
    %2256 = vmatpush1.msra.mxu0 0.0
    %2257 = vmatprep.subr.mxu0 0.0
    %2258 = vmatpush1.msra.mxu0 0.0
    %2259 = vmatprep.subr.mxu0 0.0
    %2260 = vmatpush1.msra.mxu0 0.0
    %2261 = vmatprep.subr.mxu0 0.0
    %2262 = vmatpush1.msra.mxu0 0.0
    %2263 = vmatprep.subr.mxu0 0.0
    %2264 = vmatpush1.msra.mxu0 0.0
    %2265 = vmatprep.subr.mxu0 0.0
    %2266 = vmatpush1.msra.mxu0 0.0
    %2267 = vmatprep.subr.mxu0 0.0
    %2268 = vmatpush1.msra.mxu0 0.0
    %2269 = vmatprep.subr.mxu0 0.0
    %2270 = vmatpush1.msra.mxu0 0.0
    %2271 = vmatprep.subr.mxu0 0.0
    %2272 = vmatpush1.msra.mxu0 0.0
    %2273 = vmatprep.subr.mxu0 0.0
    %2274 = vmatpush1.msra.mxu0 0.0
    %2275 = vmatprep.subr.mxu0 0.0
    %2276 = vmatpush1.msra.mxu0 0.0
    %2277 = vmatprep.subr.mxu0 0.0
    %2278 = vmatpush1.msra.mxu0 0.0
    %2279 = vmatprep.subr.mxu0 0.0
    %2280 = vmatpush1.msra.mxu0 0.0
    %2281 = vmatprep.subr.mxu0 0.0
    %2282 = vmatpush1.msra.mxu0 0.0
    %2283 = vmatprep.subr.mxu0 0.0
    %2284 = vmatpush1.msra.mxu0 0.0
    %2285 = vmatprep.subr.mxu0 0.0
    %2286 = vmatpush1.msra.mxu0 0.0
    %2287 = vmatprep.subr.mxu0 0.0
    %2288 = vmatpush1.msra.mxu0 0.0
    %2289 = vmatprep.subr.mxu0 0.0
    %2290 = vmatpush1.msra.mxu0 0.0
    %2291 = vmatprep.subr.mxu0 0.0
    %2292 = vmatpush1.msra.mxu0 0.0
    %2293 = vmatprep.subr.mxu0 0.0
    %2294 = vmatpush1.msra.mxu0 0.0
    %2295 = vmatprep.mubr.f32.mxu0 0.0
    %2296 = vmatmul.mubr.f32.gmra.mrb[0].mxu0 %v1995
    %v2297 = vpop.f32.mrb[0].mxu0
    %v2298 = vadd.f32 %v1987, %v2297
    %v2299 = vpop.f32.mrb[0].mxu0
    %v2300 = vadd.f32 %v1987, %v2299
    %2301 = vmatprep.mubr.f32.mxu0 0.0
    %2302 = vmatmul.mubr.f32.gmra.mrb[0].mxu0 %v1998
    %v2303 = vpop.f32.mrb[0].mxu0
    %v2304 = vadd.f32 %v1992, %v2303
    %v2305 = vpop.f32.mrb[0].mxu0
    %v2306 = vadd.f32 %v1992, %v2305
    %2307 = vdwg.mxu0
    %2308 = vmatprep.subr.mxu0 %v1943
    %2309 = vmatpush1.msra.mxu0 %v1942
    %2310 = vmatprep.subr.mxu0 %v1955
    %2311 = vmatpush1.msra.mxu0 %v1954
    %2312 = vmatprep.subr.mxu0 %v1967
    %2313 = vmatpush1.msra.mxu0 %v1966
    %2314 = vmatprep.subr.mxu0 %v1979
    %2315 = vmatpush1.msra.mxu0 %v1978
    %2316 = vmatprep.subr.mxu0 0.0
    %2317 = vmatpush1.msra.mxu0 0.0
    %2318 = vmatprep.subr.mxu0 0.0
    %2319 = vmatpush1.msra.mxu0 0.0
    %2320 = vmatprep.subr.mxu0 0.0
    %2321 = vmatpush1.msra.mxu0 0.0
    %2322 = vmatprep.subr.mxu0 0.0
    %2323 = vmatpush1.msra.mxu0 0.0
    %2324 = vmatprep.subr.mxu0 0.0
    %2325 = vmatpush1.msra.mxu0 0.0
    %2326 = vmatprep.subr.mxu0 0.0
    %2327 = vmatpush1.msra.mxu0 0.0
    %2328 = vmatprep.subr.mxu0 0.0
    %2329 = vmatpush1.msra.mxu0 0.0
    %2330 = vmatprep.subr.mxu0 0.0
    %2331 = vmatpush1.msra.mxu0 0.0
    %2332 = vmatprep.subr.mxu0 0.0
    %2333 = vmatpush1.msra.mxu0 0.0
    %2334 = vmatprep.subr.mxu0 0.0
    %2335 = vmatpush1.msra.mxu0 0.0
    %2336 = vmatprep.subr.mxu0 0.0
    %2337 = vmatpush1.msra.mxu0 0.0
    %2338 = vmatprep.subr.mxu0 0.0
    %2339 = vmatpush1.msra.mxu0 0.0
    %2340 = vmatprep.subr.mxu0 0.0
    %2341 = vmatpush1.msra.mxu0 0.0
    %2342 = vmatprep.subr.mxu0 0.0
    %2343 = vmatpush1.msra.mxu0 0.0
    %2344 = vmatprep.subr.mxu0 0.0
    %2345 = vmatpush1.msra.mxu0 0.0
    %2346 = vmatprep.subr.mxu0 0.0
    %2347 = vmatpush1.msra.mxu0 0.0
    %2348 = vmatprep.subr.mxu0 0.0
    %2349 = vmatpush1.msra.mxu0 0.0
    %2350 = vmatprep.subr.mxu0 0.0
    %2351 = vmatpush1.msra.mxu0 0.0
    %2352 = vmatprep.subr.mxu0 0.0
    %2353 = vmatpush1.msra.mxu0 0.0
    %2354 = vmatprep.subr.mxu0 0.0
    %2355 = vmatpush1.msra.mxu0 0.0
    %2356 = vmatprep.subr.mxu0 0.0
    %2357 = vmatpush1.msra.mxu0 0.0
    %2358 = vmatprep.subr.mxu0 0.0
    %2359 = vmatpush1.msra.mxu0 0.0
    %2360 = vmatprep.subr.mxu0 0.0
    %2361 = vmatpush1.msra.mxu0 0.0
    %2362 = vmatprep.subr.mxu0 0.0
    %2363 = vmatpush1.msra.mxu0 0.0
    %2364 = vmatprep.subr.mxu0 0.0
    %2365 = vmatpush1.msra.mxu0 0.0
    %2366 = vmatprep.subr.mxu0 0.0
    %2367 = vmatpush1.msra.mxu0 0.0
    %2368 = vmatprep.subr.mxu0 0.0
    %2369 = vmatpush1.msra.mxu0 0.0
    %2370 = vmatprep.subr.mxu0 0.0
    %2371 = vmatpush1.msra.mxu0 0.0
    %2372 = vmatprep.mubr.f32.mxu0 0.0
    %2373 = vmatmul.mubr.f32.gmra.mrb[0].mxu0 %v1995
    %v2374 = vpop.f32.mrb[0].mxu0
    %v2375 = vadd.f32 %v1987, %v2374
    %v2376 = vpop.f32.mrb[0].mxu0
    %v2377 = vadd.f32 %v1987, %v2376
    %2378 = vmatprep.mubr.f32.mxu0 0.0
    %2379 = vmatmul.mubr.f32.gmra.mrb[0].mxu0 %v1998
    %v2380 = vpop.f32.mrb[0].mxu0
    %v2381 = vadd.f32 %v1992, %v2380
    %v2382 = vpop.f32.mrb[0].mxu0
    %v2383 = vadd.f32 %v1992, %v2382
    %2384 = vdwg.mxu0
    %2385 = vmatprep.subr.mxu0 %v1945
    %2386 = vmatpush1.msra.mxu0 %v1944
    %2387 = vmatprep.subr.mxu0 %v1957
    %2388 = vmatpush1.msra.mxu0 %v1956
    %2389 = vmatprep.subr.mxu0 %v1969
    %2390 = vmatpush1.msra.mxu0 %v1968
    %2391 = vmatprep.subr.mxu0 %v1981
    %2392 = vmatpush1.msra.mxu0 %v1980
    %2393 = vmatprep.subr.mxu0 0.0
    %2394 = vmatpush1.msra.mxu0 0.0
    %2395 = vmatprep.subr.mxu0 0.0
    %2396 = vmatpush1.msra.mxu0 0.0
    %2397 = vmatprep.subr.mxu0 0.0
    %2398 = vmatpush1.msra.mxu0 0.0
    %2399 = vmatprep.subr.mxu0 0.0
    %2400 = vmatpush1.msra.mxu0 0.0
    %2401 = vmatprep.subr.mxu0 0.0
    %2402 = vmatpush1.msra.mxu0 0.0
    %2403 = vmatprep.subr.mxu0 0.0
    %2404 = vmatpush1.msra.mxu0 0.0
    %2405 = vmatprep.subr.mxu0 0.0
    %2406 = vmatpush1.msra.mxu0 0.0
    %2407 = vmatprep.subr.mxu0 0.0
    %2408 = vmatpush1.msra.mxu0 0.0
    %2409 = vmatprep.subr.mxu0 0.0
    %2410 = vmatpush1.msra.mxu0 0.0
    %2411 = vmatprep.subr.mxu0 0.0
    %2412 = vmatpush1.msra.mxu0 0.0
    %2413 = vmatprep.subr.mxu0 0.0
    %2414 = vmatpush1.msra.mxu0 0.0
    %2415 = vmatprep.subr.mxu0 0.0
    %2416 = vmatpush1.msra.mxu0 0.0
    %2417 = vmatprep.subr.mxu0 0.0
    %2418 = vmatpush1.msra.mxu0 0.0
    %2419 = vmatprep.subr.mxu0 0.0
    %2420 = vmatpush1.msra.mxu0 0.0
    %2421 = vmatprep.subr.mxu0 0.0
    %2422 = vmatpush1.msra.mxu0 0.0
    %2423 = vmatprep.subr.mxu0 0.0
    %2424 = vmatpush1.msra.mxu0 0.0
    %2425 = vmatprep.subr.mxu0 0.0
    %2426 = vmatpush1.msra.mxu0 0.0
    %2427 = vmatprep.subr.mxu0 0.0
    %2428 = vmatpush1.msra.mxu0 0.0
    %2429 = vmatprep.subr.mxu0 0.0
    %2430 = vmatpush1.msra.mxu0 0.0
    %2431 = vmatprep.subr.mxu0 0.0
    %2432 = vmatpush1.msra.mxu0 0.0
    %2433 = vmatprep.subr.mxu0 0.0
    %2434 = vmatpush1.msra.mxu0 0.0
    %2435 = vmatprep.subr.mxu0 0.0
    %2436 = vmatpush1.msra.mxu0 0.0
    %2437 = vmatprep.subr.mxu0 0.0
    %2438 = vmatpush1.msra.mxu0 0.0
    %2439 = vmatprep.subr.mxu0 0.0
    %2440 = vmatpush1.msra.mxu0 0.0
    %2441 = vmatprep.subr.mxu0 0.0
    %2442 = vmatpush1.msra.mxu0 0.0
    %2443 = vmatprep.subr.mxu0 0.0
    %2444 = vmatpush1.msra.mxu0 0.0
    %2445 = vmatprep.subr.mxu0 0.0
    %2446 = vmatpush1.msra.mxu0 0.0
    %2447 = vmatprep.subr.mxu0 0.0
    %2448 = vmatpush1.msra.mxu0 0.0
    %2449 = vmatprep.mubr.f32.mxu0 0.0
    %2450 = vmatmul.mubr.f32.gmra.mrb[0].mxu0 %v1995
    %v2451 = vpop.f32.mrb[0].mxu0
    %v2452 = vadd.f32 %v1987, %v2451
    %v2453 = vpop.f32.mrb[0].mxu0
    %v2454 = vadd.f32 %v1987, %v2453
    %2455 = vmatprep.mubr.f32.mxu0 0.0
    %2456 = vmatmul.mubr.f32.gmra.mrb[0].mxu0 %v1998
    %v2457 = vpop.f32.mrb[0].mxu0
    %v2458 = vadd.f32 %v1992, %v2457
    %v2459 = vpop.f32.mrb[0].mxu0
    %v2460 = vadd.f32 %v1992, %v2459
    %2461 = vdwg.mxu0
    %v2462 = vadd.f32 %v2067, %v2069
    %v2463 = vadd.f32 %v2462, %v2144
    %v2464 = vadd.f32 %v2463, %v2146
    %v2465 = vadd.f32 %v2464, %v2221
    %v2466 = vadd.f32 %v2465, %v2223
    %v2467 = vadd.f32 %v2466, %v2073
    %v2468 = vadd.f32 %v2467, %v2075
    %v2469 = vadd.f32 %v2468, %v2150
    %v2470 = vadd.f32 %v2469, %v2152
    %v2471 = vadd.f32 %v2470, %v2227
    %v2472 = vadd.f32 %v2471, %v2229
    %2473 = vadd.xlane.f32.xlu0 %v2472
    %v2474 = vpop.xlane.xlu0 %2473
    %v2475 = vrot.slane %v2474, 4
    %v2476 = vadd.f32 %v2474, %v2475
    %v2477 = vrot.slane %v2476, 2
    %v2478 = vadd.f32 %v2476, %v2477
    %v2479 = vrot.slane %v2478, 1
    %v2480 = vadd.f32 %v2478, %v2479
    %s2481 = vtos %v2480
    %v2482 = vstv %s2481
    %v2483 = vmul.f32 %v2067, %v2067
    %v2484 = vmul.f32 %v2069, %v2069
    %v2485 = vmul.f32 %v2144, %v2144
    %v2486 = vmul.f32 %v2146, %v2146
    %v2487 = vmul.f32 %v2221, %v2221
    %v2488 = vmul.f32 %v2223, %v2223
    %v2489 = vmul.f32 %v2073, %v2073
    %v2490 = vmul.f32 %v2075, %v2075
    %v2491 = vmul.f32 %v2150, %v2150
    %v2492 = vmul.f32 %v2152, %v2152
    %v2493 = vmul.f32 %v2227, %v2227
    %v2494 = vmul.f32 %v2229, %v2229
    %v2495 = vadd.f32 %v2483, %v2484
    %v2496 = vadd.f32 %v2495, %v2485
    %v2497 = vadd.f32 %v2496, %v2486
    %v2498 = vadd.f32 %v2497, %v2487
    %v2499 = vadd.f32 %v2498, %v2488
    %v2500 = vadd.f32 %v2499, %v2489
    %v2501 = vadd.f32 %v2500, %v2490
    %v2502 = vadd.f32 %v2501, %v2491
    %v2503 = vadd.f32 %v2502, %v2492
    %v2504 = vadd.f32 %v2503, %v2493
    %v2505 = vadd.f32 %v2504, %v2494
    %2506 = vadd.xlane.f32.xlu0 %v2505
    %v2507 = vpop.xlane.xlu0 %2506
    %v2508 = vrot.slane %v2507, 4
    %v2509 = vadd.f32 %v2507, %v2508
    %v2510 = vrot.slane %v2509, 2
    %v2511 = vadd.f32 %v2509, %v2510
    %v2512 = vrot.slane %v2511, 1
    %v2513 = vadd.f32 %v2511, %v2512
    %s2514 = vtos %v2513
    %v2515 = vstv %s2514
    %v2516 = vmul.f32 %v2482, 8.138021e-05
    %v2517 = vmul.f32 %v2515, 8.138021e-05
    %v2518 = vmul.f32 %v2516, %v2516
    %v2519 = vsub.f32 %v2517, %v2518
    %v2520 = vadd.f32 %v2519, 1e-05
    %v2521 = vrsqrt.pop %v2520
    %v2522 = vsub.f32 %v2067, %v2516
    %v2523 = vsub.f32 %v2069, %v2516
    %v2524 = vsub.f32 %v2144, %v2516
    %v2525 = vsub.f32 %v2146, %v2516
    %v2526 = vsub.f32 %v2221, %v2516
    %v2527 = vsub.f32 %v2223, %v2516
    %v2528 = vsub.f32 %v2073, %v2516
    %v2529 = vsub.f32 %v2075, %v2516
    %v2530 = vsub.f32 %v2150, %v2516
    %v2531 = vsub.f32 %v2152, %v2516
    %v2532 = vsub.f32 %v2227, %v2516
    %v2533 = vsub.f32 %v2229, %v2516
    %v2534 = vmul.f32 %v2522, %v2521
    %v2535 = vmul.f32 %v2523, %v2521
    %v2536 = vmul.f32 %v2524, %v2521
    %v2537 = vmul.f32 %v2525, %v2521
    %v2538 = vmul.f32 %v2526, %v2521
    %v2539 = vmul.f32 %v2527, %v2521
    %v2540 = vmul.f32 %v2528, %v2521
    %v2541 = vmul.f32 %v2529, %v2521
    %v2542 = vmul.f32 %v2530, %v2521
    %v2543 = vmul.f32 %v2531, %v2521
    %v2544 = vmul.f32 %v2532, %v2521
    %v2545 = vmul.f32 %v2533, %v2521
    %v2546 = vld [vmem:[#allocation8] sm:$0xff]
    %v2547 = vld [vmem:[#allocation8 + $0x8] sm:$0xff]
    %v2548 = vld [vmem:[#allocation8 + $0x10] sm:$0xff]
    %v2549 = vld [vmem:[#allocation8 + $0x18] sm:$0xff]
    %v2550 = vld [vmem:[#allocation8 + $0x20] sm:$0xff]
    %v2551 = vld [vmem:[#allocation8 + $0x28] sm:$0xff]
    %v2552 = vld [vmem:[#allocation8 + $0x30] sm:$0xff]
    %v2553 = vld [vmem:[#allocation8 + $0x38] sm:$0xff]
    %v2554 = vld [vmem:[#allocation8 + $0x40] sm:$0xff]
    %v2555 = vld [vmem:[#allocation8 + $0x48] sm:$0xff]
    %v2556 = vld [vmem:[#allocation8 + $0x50] sm:$0xff]
    %v2557 = vld [vmem:[#allocation8 + $0x58] sm:$0xff]
    %v2558 = vmul.f32 %v2534, %v2546
    %v2559 = vmul.f32 %v2535, %v2547
    %v2560 = vmul.f32 %v2536, %v2548
    %v2561 = vmul.f32 %v2537, %v2549
    %v2562 = vmul.f32 %v2538, %v2550
    %v2563 = vmul.f32 %v2539, %v2551
    %v2564 = vmul.f32 %v2540, %v2552
    %v2565 = vmul.f32 %v2541, %v2553
    %v2566 = vmul.f32 %v2542, %v2554
    %v2567 = vmul.f32 %v2543, %v2555
    %v2568 = vmul.f32 %v2544, %v2556
    %v2569 = vmul.f32 %v2545, %v2557
    %v2570 = vld [vmem:[#allocation9] sm:$0xff]
    %v2571 = vld [vmem:[#allocation9 + $0x8] sm:$0xff]
    %v2572 = vld [vmem:[#allocation9 + $0x10] sm:$0xff]
    %v2573 = vld [vmem:[#allocation9 + $0x18] sm:$0xff]
    %v2574 = vld [vmem:[#allocation9 + $0x20] sm:$0xff]
    %v2575 = vld [vmem:[#allocation9 + $0x28] sm:$0xff]
    %v2576 = vld [vmem:[#allocation9 + $0x30] sm:$0xff]
    %v2577 = vld [vmem:[#allocation9 + $0x38] sm:$0xff]
    %v2578 = vld [vmem:[#allocation9 + $0x40] sm:$0xff]
    %v2579 = vld [vmem:[#allocation9 + $0x48] sm:$0xff]
    %v2580 = vld [vmem:[#allocation9 + $0x50] sm:$0xff]
    %v2581 = vld [vmem:[#allocation9 + $0x58] sm:$0xff]
    %v2582 = vadd.f32 %v2558, %v2570
    %v2583 = vadd.f32 %v2559, %v2571
    %v2584 = vadd.f32 %v2560, %v2572
    %v2585 = vadd.f32 %v2561, %v2573
    %v2586 = vadd.f32 %v2562, %v2574
    %v2587 = vadd.f32 %v2563, %v2575
    %v2588 = vadd.f32 %v2564, %v2576
    %v2589 = vadd.f32 %v2565, %v2577
    %v2590 = vadd.f32 %v2566, %v2578
    %v2591 = vadd.f32 %v2567, %v2579
    %v2592 = vadd.f32 %v2568, %v2580
    %v2593 = vadd.f32 %v2569, %v2581
    %2594 = vst [vmem:[#allocation11] sm:$0xff] %v2582
    %2595 = vst [vmem:[#allocation11 + $0x8] sm:$0xff] %v2583
    %2596 = vst [vmem:[#allocation11 + $0x10] sm:$0xff] %v2584
    %2597 = vst [vmem:[#allocation11 + $0x18] sm:$0xff] %v2585
    %2598 = vst [vmem:[#allocation11 + $0x20] sm:$0xff] %v2586
    %2599 = vst [vmem:[#allocation11 + $0x28] sm:$0xff] %v2587
    %2600 = vst [vmem:[#allocation11 + $0x30] sm:$0xff] %v2588
    %2601 = vst [vmem:[#allocation11 + $0x38] sm:$0xff] %v2589
    %2602 = vst [vmem:[#allocation11 + $0x40] sm:$0xff] %v2590
    %2603 = vst [vmem:[#allocation11 + $0x48] sm:$0xff] %v2591
    %2604 = vst [vmem:[#allocation11 + $0x50] sm:$0xff] %v2592
    %2605 = vst [vmem:[#allocation11 + $0x58] sm:$0xff] %v2593
    %v2606 = vadd.f32 %v2298, %v2300
    %v2607 = vadd.f32 %v2606, %v2375
    %v2608 = vadd.f32 %v2607, %v2377
    %v2609 = vadd.f32 %v2608, %v2452
    %v2610 = vadd.f32 %v2609, %v2454
    %v2611 = vadd.f32 %v2610, %v2304
    %v2612 = vadd.f32 %v2611, %v2306
    %v2613 = vadd.f32 %v2612, %v2381
    %v2614 = vadd.f32 %v2613, %v2383
    %v2615 = vadd.f32 %v2614, %v2458
    %v2616 = vadd.f32 %v2615, %v2460
    %2617 = vadd.xlane.f32.xlu0 %v2616
    %v2618 = vpop.xlane.xlu0 %2617
    %v2619 = vrot.slane %v2618, 4
    %v2620 = vadd.f32 %v2618, %v2619
    %v2621 = vrot.slane %v2620, 2
    %v2622 = vadd.f32 %v2620, %v2621
    %v2623 = vrot.slane %v2622, 1
    %v2624 = vadd.f32 %v2622, %v2623
    %s2625 = vtos %v2624
    %v2626 = vstv %s2625
    %v2627 = vmul.f32 %v2298, %v2298
    %v2628 = vmul.f32 %v2300, %v2300
    %v2629 = vmul.f32 %v2375, %v2375
    %v2630 = vmul.f32 %v2377, %v2377
    %v2631 = vmul.f32 %v2452, %v2452
    %v2632 = vmul.f32 %v2454, %v2454
    %v2633 = vmul.f32 %v2304, %v2304
    %v2634 = vmul.f32 %v2306, %v2306
    %v2635 = vmul.f32 %v2381, %v2381
    %v2636 = vmul.f32 %v2383, %v2383
    %v2637 = vmul.f32 %v2458, %v2458
    %v2638 = vmul.f32 %v2460, %v2460
    %v2639 = vadd.f32 %v2627, %v2628
    %v2640 = vadd.f32 %v2639, %v2629
    %v2641 = vadd.f32 %v2640, %v2630
    %v2642 = vadd.f32 %v2641, %v2631
    %v2643 = vadd.f32 %v2642, %v2632
    %v2644 = vadd.f32 %v2643, %v2633
    %v2645 = vadd.f32 %v2644, %v2634
    %v2646 = vadd.f32 %v2645, %v2635
    %v2647 = vadd.f32 %v2646, %v2636
    %v2648 = vadd.f32 %v2647, %v2637
    %v2649 = vadd.f32 %v2648, %v2638
    %2650 = vadd.xlane.f32.xlu0 %v2649
    %v2651 = vpop.xlane.xlu0 %2650
    %v2652 = vrot.slane %v2651, 4
    %v2653 = vadd.f32 %v2651, %v2652
    %v2654 = vrot.slane %v2653, 2
    %v2655 = vadd.f32 %v2653, %v2654
    %v2656 = vrot.slane %v2655, 1
    %v2657 = vadd.f32 %v2655, %v2656
    %s2658 = vtos %v2657
    %v2659 = vstv %s2658
    %v2660 = vmul.f32 %v2626, 8.138021e-05
    %v2661 = vmul.f32 %v2659, 8.138021e-05
    %v2662 = vmul.f32 %v2660, %v2660
    %v2663 = vsub.f32 %v2661, %v2662
    %v2664 = vadd.f32 %v2663, 1e-05
    %v2665 = vrsqrt.pop %v2664
    %v2666 = vsub.f32 %v2298, %v2660
    %v2667 = vsub.f32 %v2300, %v2660
    %v2668 = vsub.f32 %v2375, %v2660
    %v2669 = vsub.f32 %v2377, %v2660
    %v2670 = vsub.f32 %v2452, %v2660
    %v2671 = vsub.f32 %v2454, %v2660
    %v2672 = vsub.f32 %v2304, %v2660
    %v2673 = vsub.f32 %v2306, %v2660
    %v2674 = vsub.f32 %v2381, %v2660
    %v2675 = vsub.f32 %v2383, %v2660
    %v2676 = vsub.f32 %v2458, %v2660
    %v2677 = vsub.f32 %v2460, %v2660
    %v2678 = vmul.f32 %v2666, %v2665
    %v2679 = vmul.f32 %v2667, %v2665
    %v2680 = vmul.f32 %v2668, %v2665
    %v2681 = vmul.f32 %v2669, %v2665
    %v2682 = vmul.f32 %v2670, %v2665
    %v2683 = vmul.f32 %v2671, %v2665
    %v2684 = vmul.f32 %v2672, %v2665
    %v2685 = vmul.f32 %v2673, %v2665
    %v2686 = vmul.f32 %v2674, %v2665
    %v2687 = vmul.f32 %v2675, %v2665
    %v2688 = vmul.f32 %v2676, %v2665
    %v2689 = vmul.f32 %v2677, %v2665
    %v2690 = vld [vmem:[#allocation8] sm:$0xff]
    %v2691 = vld [vmem:[#allocation8 + $0x8] sm:$0xff]
    %v2692 = vld [vmem:[#allocation8 + $0x10] sm:$0xff]
    %v2693 = vld [vmem:[#allocation8 + $0x18] sm:$0xff]
    %v2694 = vld [vmem:[#allocation8 + $0x20] sm:$0xff]
    %v2695 = vld [vmem:[#allocation8 + $0x28] sm:$0xff]
    %v2696 = vld [vmem:[#allocation8 + $0x30] sm:$0xff]
    %v2697 = vld [vmem:[#allocation8 + $0x38] sm:$0xff]
    %v2698 = vld [vmem:[#allocation8 + $0x40] sm:$0xff]
    %v2699 = vld [vmem:[#allocation8 + $0x48] sm:$0xff]
    %v2700 = vld [vmem:[#allocation8 + $0x50] sm:$0xff]
    %v2701 = vld [vmem:[#allocation8 + $0x58] sm:$0xff]
    %v2702 = vmul.f32 %v2678, %v2690
    %v2703 = vmul.f32 %v2679, %v2691
    %v2704 = vmul.f32 %v2680, %v2692
    %v2705 = vmul.f32 %v2681, %v2693
    %v2706 = vmul.f32 %v2682, %v2694
    %v2707 = vmul.f32 %v2683, %v2695
    %v2708 = vmul.f32 %v2684, %v2696
    %v2709 = vmul.f32 %v2685, %v2697
    %v2710 = vmul.f32 %v2686, %v2698
    %v2711 = vmul.f32 %v2687, %v2699
    %v2712 = vmul.f32 %v2688, %v2700
    %v2713 = vmul.f32 %v2689, %v2701
    %v2714 = vld [vmem:[#allocation9] sm:$0xff]
    %v2715 = vld [vmem:[#allocation9 + $0x8] sm:$0xff]
    %v2716 = vld [vmem:[#allocation9 + $0x10] sm:$0xff]
    %v2717 = vld [vmem:[#allocation9 + $0x18] sm:$0xff]
    %v2718 = vld [vmem:[#allocation9 + $0x20] sm:$0xff]
    %v2719 = vld [vmem:[#allocation9 + $0x28] sm:$0xff]
    %v2720 = vld [vmem:[#allocation9 + $0x30] sm:$0xff]
    %v2721 = vld [vmem:[#allocation9 + $0x38] sm:$0xff]
    %v2722 = vld [vmem:[#allocation9 + $0x40] sm:$0xff]
    %v2723 = vld [vmem:[#allocation9 + $0x48] sm:$0xff]
    %v2724 = vld [vmem:[#allocation9 + $0x50] sm:$0xff]
    %v2725 = vld [vmem:[#allocation9 + $0x58] sm:$0xff]
    %v2726 = vadd.f32 %v2702, %v2714
    %v2727 = vadd.f32 %v2703, %v2715
    %v2728 = vadd.f32 %v2704, %v2716
    %v2729 = vadd.f32 %v2705, %v2717
    %v2730 = vadd.f32 %v2706, %v2718
    %v2731 = vadd.f32 %v2707, %v2719
    %v2732 = vadd.f32 %v2708, %v2720
    %v2733 = vadd.f32 %v2709, %v2721
    %v2734 = vadd.f32 %v2710, %v2722
    %v2735 = vadd.f32 %v2711, %v2723
    %v2736 = vadd.f32 %v2712, %v2724
    %v2737 = vadd.f32 %v2713, %v2725
    %s2738 = scalar_lea.vmem [#allocation11], 96
    %2739 = vst [vmem:[%s2738] sm:$0xff] %v2726
    %2740 = vst [vmem:[%s2738 + $0x8] sm:$0xff] %v2727
    %2741 = vst [vmem:[%s2738 + $0x10] sm:$0xff] %v2728
    %2742 = vst [vmem:[%s2738 + $0x18] sm:$0xff] %v2729
    %2743 = vst [vmem:[%s2738 + $0x20] sm:$0xff] %v2730
    %2744 = vst [vmem:[%s2738 + $0x28] sm:$0xff] %v2731
    %2745 = vst [vmem:[%s2738 + $0x30] sm:$0xff] %v2732
    %2746 = vst [vmem:[%s2738 + $0x38] sm:$0xff] %v2733
    %2747 = vst [vmem:[%s2738 + $0x40] sm:$0xff] %v2734
    %2748 = vst [vmem:[%s2738 + $0x48] sm:$0xff] %v2735
    %2749 = vst [vmem:[%s2738 + $0x50] sm:$0xff] %v2736
    %2750 = vst [vmem:[%s2738 + $0x58] sm:$0xff] %v2737
    // Predicated region
    $region54: #{tpu_custom_call.1} parent=1 // pred_check
      _
    $region55: #{tpu_custom_call.1} parent=1 // pred_check_branch
      %2752 = sbr.rel (0) target = $region57
    $region56: #{tpu_custom_call.1} parent=1 // pred_region
      %s2754 = ssub.s32 3072, 3072
      %2755 = vsyncadd [#allocation5], %s2754
      %s2756 = sshll.u32 [#allocation11], 4
      %s2757 = int_to_ptr.vmem [resolvable:$true] %s2756
      %2762 = dma.vmem_to_hbm [thread:$0]  %s2757, 3072, %s9, [#allocation5], 768, 768, 48
    $region57: #{tpu_custom_call.1} parent=1 // pred_fallthru
      _
    // Predicated region
    $region58: #{tpu_custom_call.1} parent=1 // pred_check
      _
    $region59: #{tpu_custom_call.1} parent=1 // pred_check_branch
      %2764 = sbr.rel (0) target = $region61
    $region60: #{tpu_custom_call.1} parent=1 // pred_region
      %2765 = dma.done [#allocation5], 3072
    $region61: #{tpu_custom_call.1} parent=1 // pred_fallthru
      _
    %2766 = vsyncpa [#allocation4], 1
    %2767 = vsyncpa [#allocation7], 1
    %2768 = vsyncpa [#allocation10], 1
    %2769 = vsyncpa [#allocation5], 1

</llo_original>
